<compile_context>
chip_gen: v7x
topology: tpu7x:2x2x1
jax: 0.10.0
libtpu: 0.0.40
codegen_flags: <defaults>
</compile_context>

<pallas_src>
import jax
import jax.numpy as jnp
from jax import lax
from jax.experimental import pallas as pl
from jax.experimental.pallas import tpu as pltpu

# ------------------------- model hyper-parameters (small) -------------------------
CLASSES_NUM = 5
D_A = 24          # (350 in the original)
HIDDEN_SIZE = 32  # (300 in the original)
MLP_HIDDEN = 64   # (2000 in the original)
R = 10
WORD_NUM = 64     # (357361 in the original)
WORD_SIZE = 16    # (100 in the original)

BATCH = 2
SEQ = 8


def _full_spec(shape):
    # whole-array block, grid=(1,)
    return pl.BlockSpec(shape, lambda i: (0,) * len(shape))


# =============================== Fused forward kernel ===============================
def fused_net_kernel(ids_ref, emb_ref, wih_ref, whh_ref, b_ref,
                     ws1_ref, ws2_ref, w1_ref, b1_ref, w2_ref, b2_ref,
                     logits_ref, pen_ref, h_scr):
    # ids_ref : (T*B, 1) int32, time-major flat (row t*B + b = token at time t, batch b)
    # emb_ref : (V, E)
    # wih_ref : (E, 8H)   = [Wih_fwd | Wih_bwd]
    # whh_ref : (H, 8H)   = [Whh_fwd | Whh_bwd] (side-by-side, NOT block-diagonal)
    # b_ref   : (1, 8H)   = [b_fwd | b_bwd]  (b_ih + b_hh folded)
    # ws1_ref : (2H, D_A), ws2_ref: (D_A, R)
    # w1_ref  : (R*2H, MLP_HIDDEN), b1_ref: (1, MLP_HIDDEN)
    # w2_ref  : (MLP_HIDDEN, C),    b2_ref: (1, C)
    # h_scr   : (B, T, 2H) VMEM scratch holding the BiLSTM output
    f32 = jnp.float32
    B, T, U = h_scr.shape
    H = U // 2
    V = emb_ref.shape[0]
    R_ = ws2_ref.shape[1]

    # ---- Embedding lookup (table fully resident in VMEM; one-hot matmul) ----
    # TODO(synk): at the full-scale vocab (357361) this must become a manual
    # make_async_copy row gather from pl.ANY/HBM with ids scalar-prefetched in SMEM,
    # and w1 tiled over MLP_HIDDEN; at WORD_NUM=64 the one-hot matmul is cheapest.
    ids = ids_ref[...]                                                 # (T*B, 1) int32
    vocab_iota = lax.broadcasted_iota(jnp.int32, (T * B, V), 1)
    onehot = (vocab_iota == ids).astype(f32)                           # (T*B, V)
    x = jnp.dot(onehot, emb_ref[...], preferred_element_type=f32)      # (T*B, E)

    # ---- Hoisted input projection for BOTH directions (one matmul, bias folded) ----
    zxa = jnp.dot(x, wih_ref[...], preferred_element_type=f32) + b_ref[...]  # (T*B, 8H)

    # ---- Per-step direction-stacked input slabs (2B, 4H) = one (4,128) vreg each.
    # These depend only on zxa, so they sit OFF the serial recurrent chain and the
    # scheduler can precompute them around the loop.
    zpre = []
    for t in range(T):
        s = T - 1 - t                                                  # bwd time index
        zf = zxa[t * B:(t + 1) * B, 0:4 * H]                           # fwd gates @ t
        zb = zxa[s * B:(s + 1) * B, 4 * H:8 * H]                       # bwd gates @ s
        zpre.append(jnp.concatenate([zf, zb], axis=0))                 # (2B, 4H)

    # ---- Bidirectional LSTM recurrence, fully unrolled, directions stacked on
    #      sublanes: rows 0..B-1 = forward, rows B..2B-1 = backward. ----
    whh = whh_ref[...]                                                 # (H, 8H), loaded once
    top = lax.broadcasted_iota(jnp.int32, (2 * B, 1), 0) < B           # fwd-row mask
    hs = jnp.zeros((2 * B, H), f32)                                    # [h_f ; h_b]
    cs = jnp.zeros((2 * B, H), f32)                                    # [c_f ; c_b]
    fwd = [None] * T
    bwd = [None] * T
    for t in range(T):
        s = T - 1 - t
        if t == 0:
            z = zpre[0]                                                # h0 = 0: no recurrent term
        else:
            # one MXU push covers both directions; lane-tile-aligned (4H=128) slices
            # + a row select pick each direction's own Whh (no XLU concat on the chain)
            rec_wide = jnp.dot(hs, whh, preferred_element_type=f32)    # (2B, 8H)
            rec = jnp.where(top, rec_wide[:, 0:4 * H], rec_wide[:, 4 * H:8 * H])
            z = zpre[t] + rec                                          # (2B, 4H)
        sg = jax.nn.sigmoid(z)                                         # 1 EUP op (i,f,o used)
        g = jnp.tanh(z[:, 2 * H:3 * H])                                # 1 EUP op (g gate only)
        if t == 0:
            cs = sg[:, 0:H] * g                                        # c0 = 0
        else:
            cs = sg[:, H:2 * H] * cs + sg[:, 0:H] * g                  # f*c + i*g
        hs = sg[:, 3 * H:4 * H] * jnp.tanh(cs)                         # 1 EUP op (joint cell)
        fwd[t] = hs[0:B, :]
        bwd[s] = hs[B:2 * B, :]

    # Assemble BiLSTM output H = (B, T, 2H) (concat order [fwd, bwd] like PyTorch).
    # TODO(synk): these are masked sublane stores; kept because this exact form is
    # proven to lower, and it is a small one-time epilogue off the recurrent chain.
    for t in range(T):
        h_scr[:, t, :] = jnp.concatenate([fwd[t], bwd[t]], axis=1)
    h = h_scr[...]                                                     # (B, T, U)

    # ---- Structured self-attention aggregation ----
    s1 = jnp.tanh(jnp.einsum('btu,ud->btd', h, ws1_ref[...],
                             preferred_element_type=f32))              # (B, T, D_A)
    scores = jnp.einsum('btd,dr->btr', s1, ws2_ref[...],
                        preferred_element_type=f32)                    # (B, T, R)
    a = jax.nn.softmax(scores, axis=1)                                 # softmax over seq (T)
    m = jnp.einsum('btr,btu->bru', a, h, preferred_element_type=f32)   # (B, R, U)

    # penalty: || A A^T - I ||_F^2 summed over the batch
    aat = jnp.einsum('btr,bts->brs', a, a, preferred_element_type=f32)  # (B, R, R)
    eye = jnp.eye(R_, dtype=f32)
    diff = aat - eye[None, :, :]
    pen_ref[...] = jnp.sum(diff * diff).reshape(1, 1)

    # ---- MLP predictor: one lane-dense (B, R*U) slab, single K=R*U contraction ----
    # m_flat[:, r*U + u] = m[:, r, u]  ==  m.view(B, R*U) in the PyTorch reference.
    m_flat = jnp.concatenate([m[:, r, :] for r in range(R_)], axis=1)   # (B, R*U)
    hidden = jnp.dot(m_flat, w1_ref[...], preferred_element_type=f32) + b1_ref[...]
    hidden = jnp.maximum(hidden, 0.0)                                   # ReLU
    logits_ref[...] = jnp.dot(hidden, w2_ref[...],
                              preferred_element_type=f32) + b2_ref[...]
    # TODO(synk): dropout (p=0.5) between LSTM layers is a no-op for num_layers=1 (eval mode).


def run_net_fused(ids_tm, emb, wih, whh, b, ws1, ws2, w1, b1, w2, b2, *, batch, seq):
    U = wih.shape[1] // 4         # 2H
    classes = w2.shape[1]
    return pl.pallas_call(
        fused_net_kernel,
        out_shape=(jax.ShapeDtypeStruct((batch, classes), jnp.float32),
                   jax.ShapeDtypeStruct((1, 1), jnp.float32)),
        grid=(1,),
        in_specs=[_full_spec(ids_tm.shape),
                  _full_spec(emb.shape),
                  _full_spec(wih.shape),
                  _full_spec(whh.shape),
                  _full_spec(b.shape),
                  _full_spec(ws1.shape),
                  _full_spec(ws2.shape),
                  _full_spec(w1.shape),
                  _full_spec(b1.shape),
                  _full_spec(w2.shape),
                  _full_spec(b2.shape)],
        out_specs=(_full_spec((batch, classes)),
                   _full_spec((1, 1))),
        scratch_shapes=[pltpu.VMEM((batch, seq, U), jnp.float32)],
        compiler_params=pltpu.CompilerParams(
            # Single grid point: one TensorCore is enough at B=2.  At realistic
            # batch sizes, grid over batch with ("parallel",) to use both v7x TCs.
            dimension_semantics=("arbitrary",)),
    )(ids_tm, emb, wih, whh, b, ws1, ws2, w1, b1, w2, b2)


# =============================== Parameters ===============================
def init_params(key):
    ks = jax.random.split(key, 12)
    H, I = HIDDEN_SIZE, WORD_SIZE
    k_lstm = 1.0 / jnp.sqrt(H)

    def u(k, shape, scale):
        return jax.random.uniform(k, shape, jnp.float32, -scale, scale)

    params = {
        'emb': u(ks[0], (WORD_NUM, WORD_SIZE), 1.0),
        # forward LSTM (bias = b_ih + b_hh folded together)
        'wih_f': u(ks[1], (I, 4 * H), k_lstm),
        'whh_f': u(ks[2], (H, 4 * H), k_lstm),
        'b_f':   u(ks[3], (1, 4 * H), k_lstm),
        # backward LSTM
        'wih_b': u(ks[4], (I, 4 * H), k_lstm),
        'whh_b': u(ks[5], (H, 4 * H), k_lstm),
        'b_b':   u(ks[6], (1, 4 * H), k_lstm),
        # self-attention
        'ws1': u(ks[7], (2 * H, D_A), 1.0 / jnp.sqrt(2 * H)),
        'ws2': u(ks[8], (D_A, R), 1.0 / jnp.sqrt(D_A)),
        # MLP
        'w1': u(ks[9], (R * 2 * H, MLP_HIDDEN), 1.0 / jnp.sqrt(R * 2 * H)),
        'b1': jnp.zeros((1, MLP_HIDDEN), jnp.float32),
        'w2': u(ks[10], (MLP_HIDDEN, CLASSES_NUM), 1.0 / jnp.sqrt(MLP_HIDDEN)),
        'b2': jnp.zeros((1, CLASSES_NUM), jnp.float32),
    }
    return params


def fuse_params(p):
    """One-time re-layout of the per-direction LSTM weights into the fused forms.

    TODO(synk): at original dims, store these as bf16 (cast in-kernel, f32 accumulate)
    to fit the v7x 64 MiB VMEM; irrelevant at toy sizes.
    """
    return {
        'emb': p['emb'],
        'wih': jnp.concatenate([p['wih_f'], p['wih_b']], axis=1),      # (E, 8H)
        'whh': jnp.concatenate([p['whh_f'], p['whh_b']], axis=1),      # (H, 8H) side-by-side
        'b':   jnp.concatenate([p['b_f'], p['b_b']], axis=1),          # (1, 8H)
        'ws1': p['ws1'], 'ws2': p['ws2'],
        'w1': p['w1'], 'b1': p['b1'], 'w2': p['w2'], 'b2': p['b2'],
    }


# =============================== Forward pass ===============================
@jax.jit
def net_forward(fused, token_ids):
    B, T = token_ids.shape
    # time-major flat token ids: row t*B + b -> token at time t, batch b
    ids_tm = jnp.transpose(token_ids, (1, 0)).reshape(T * B, 1).astype(jnp.int32)
    logits, pen = run_net_fused(
        ids_tm, fused['emb'], fused['wih'], fused['whh'], fused['b'],
        fused['ws1'], fused['ws2'], fused['w1'], fused['b1'],
        fused['w2'], fused['b2'], batch=B, seq=T)
    return logits, pen[0, 0]


# =============================== Main ===============================
if __name__ == "__main__":
    key = jax.random.PRNGKey(0)
    k_param, k_data = jax.random.split(key)
    params = init_params(k_param)
    fused = fuse_params(params)
    token_ids = jax.random.randint(k_data, (BATCH, SEQ), 0, WORD_NUM, dtype=jnp.int32)

    logits, penalty = net_forward(fused, token_ids)
    jax.block_until_ready((logits, penalty))

    assert logits.shape == (BATCH, CLASSES_NUM)
    assert penalty.shape == ()
    print("KERNEL_OK")
</pallas_src>

<mosaic_0001>
module attributes {stable_mosaic.version = 11 : i64} {
  func.func @fused_net_kernel(%arg0: i32, %arg1: memref<16x1xi32, #tpu.memory_space<vmem>>, %arg2: memref<64x16xf32, #tpu.memory_space<vmem>>, %arg3: memref<16x256xf32, #tpu.memory_space<vmem>>, %arg4: memref<32x256xf32, #tpu.memory_space<vmem>>, %arg5: memref<1x256xf32, #tpu.memory_space<vmem>>, %arg6: memref<64x24xf32, #tpu.memory_space<vmem>>, %arg7: memref<24x10xf32, #tpu.memory_space<vmem>>, %arg8: memref<640x64xf32, #tpu.memory_space<vmem>>, %arg9: memref<1x64xf32, #tpu.memory_space<vmem>>, %arg10: memref<64x5xf32, #tpu.memory_space<vmem>>, %arg11: memref<1x5xf32, #tpu.memory_space<vmem>>, %arg12: memref<2x5xf32, #tpu.memory_space<vmem>>, %arg13: memref<1x1xf32, #tpu.memory_space<vmem>>, %arg14: memref<2x8x64xf32, #tpu.memory_space<vmem>>) attributes {dimension_semantics = [#tpu.dimension_semantics<arbitrary>], iteration_bounds = array<i64: 1>, scalar_prefetch = 0 : i64, scratch_operands = 1 : i64, tpu.core_type = #tpu.core_type<tc>, window_params = [{pipeline_mode = #tpu.pipeline_mode<synchronous>, transform_indices = @transform_0, window_bounds = array<i64: 16, 1>}, {pipeline_mode = #tpu.pipeline_mode<synchronous>, transform_indices = @transform_1, window_bounds = array<i64: 64, 16>}, {pipeline_mode = #tpu.pipeline_mode<synchronous>, transform_indices = @transform_2, window_bounds = array<i64: 16, 256>}, {pipeline_mode = #tpu.pipeline_mode<synchronous>, transform_indices = @transform_3, window_bounds = array<i64: 32, 256>}, {pipeline_mode = #tpu.pipeline_mode<synchronous>, transform_indices = @transform_4, window_bounds = array<i64: 1, 256>}, {pipeline_mode = #tpu.pipeline_mode<synchronous>, transform_indices = @transform_5, window_bounds = array<i64: 64, 24>}, {pipeline_mode = #tpu.pipeline_mode<synchronous>, transform_indices = @transform_6, window_bounds = array<i64: 24, 10>}, {pipeline_mode = #tpu.pipeline_mode<synchronous>, transform_indices = @transform_7, window_bounds = array<i64: 640, 64>}, {pipeline_mode = #tpu.pipeline_mode<synchronous>, transform_indices = @transform_8, window_bounds = array<i64: 1, 64>}, {pipeline_mode = #tpu.pipeline_mode<synchronous>, transform_indices = @transform_9, window_bounds = array<i64: 64, 5>}, {pipeline_mode = #tpu.pipeline_mode<synchronous>, transform_indices = @transform_10, window_bounds = array<i64: 1, 5>}, {pipeline_mode = #tpu.pipeline_mode<synchronous>, transform_indices = @transform_11, window_bounds = array<i64: 2, 5>}, {pipeline_mode = #tpu.pipeline_mode<synchronous>, transform_indices = @transform_12, window_bounds = array<i64: 1, 1>}]} {
    %c0 = arith.constant 0 : index
    %c0_0 = arith.constant 0 : index
    %0 = vector.load %arg1[%c0, %c0_0] : memref<16x1xi32, #tpu.memory_space<vmem>>, vector<16x1xi32>
    %1 = tpu.iota {dimensions = array<i32: 1>} : vector<16x64xi32>
    %2 = vector.broadcast %0 : vector<16x1xi32> to vector<16x64xi32>
    %3 = arith.cmpi eq, %1, %2 : vector<16x64xi32>
    %4 = arith.extui %3 : vector<16x64xi1> to vector<16x64xi32>
    %5 = arith.sitofp %4 : vector<16x64xi32> to vector<16x64xf32>
    %c0_1 = arith.constant 0 : index
    %c0_2 = arith.constant 0 : index
    %6 = vector.load %arg2[%c0_1, %c0_2] : memref<64x16xf32, #tpu.memory_space<vmem>>, vector<64x16xf32>
    %cst = arith.constant dense<0.000000e+00> : vector<16x16xf32>
    %7 = tpu.matmul %5, %6, %cst {dimension_numbers = #tpu.dot_dimension_numbers<[1], [0], [0], [1], [0, 0, 1, 1], [], []>} : vector<16x64xf32>, vector<64x16xf32>, vector<16x16xf32> -> vector<16x16xf32>
    %c0_3 = arith.constant 0 : index
    %c0_4 = arith.constant 0 : index
    %8 = vector.load %arg3[%c0_3, %c0_4] : memref<16x256xf32, #tpu.memory_space<vmem>>, vector<16x256xf32>
    %cst_5 = arith.constant dense<0.000000e+00> : vector<16x256xf32>
    %9 = tpu.matmul %7, %8, %cst_5 {dimension_numbers = #tpu.dot_dimension_numbers<[1], [0], [0], [1], [0, 0, 1, 1], [], []>} : vector<16x16xf32>, vector<16x256xf32>, vector<16x256xf32> -> vector<16x256xf32>
    %c0_6 = arith.constant 0 : index
    %c0_7 = arith.constant 0 : index
    %10 = vector.load %arg5[%c0_6, %c0_7] : memref<1x256xf32, #tpu.memory_space<vmem>>, vector<1x256xf32>
    %11 = vector.broadcast %10 : vector<1x256xf32> to vector<16x256xf32>
    %12 = arith.addf %9, %11 : vector<16x256xf32>
    %13 = vector.extract_strided_slice %12 {offsets = [0, 0], sizes = [2, 128], strides = [1, 1]} : vector<16x256xf32> to vector<2x128xf32>
    %14 = vector.extract_strided_slice %12 {offsets = [14, 128], sizes = [2, 128], strides = [1, 1]} : vector<16x256xf32> to vector<2x128xf32>
    %15 = tpu.concatenate %13, %14 in 0 : vector<2x128xf32>, vector<2x128xf32> -> vector<4x128xf32>
    %16 = vector.extract_strided_slice %12 {offsets = [2, 0], sizes = [2, 128], strides = [1, 1]} : vector<16x256xf32> to vector<2x128xf32>
    %17 = vector.extract_strided_slice %12 {offsets = [12, 128], sizes = [2, 128], strides = [1, 1]} : vector<16x256xf32> to vector<2x128xf32>
    %18 = tpu.concatenate %16, %17 in 0 : vector<2x128xf32>, vector<2x128xf32> -> vector<4x128xf32>
    %19 = vector.extract_strided_slice %12 {offsets = [4, 0], sizes = [2, 128], strides = [1, 1]} : vector<16x256xf32> to vector<2x128xf32>
    %20 = vector.extract_strided_slice %12 {offsets = [10, 128], sizes = [2, 128], strides = [1, 1]} : vector<16x256xf32> to vector<2x128xf32>
    %21 = tpu.concatenate %19, %20 in 0 : vector<2x128xf32>, vector<2x128xf32> -> vector<4x128xf32>
    %22 = vector.extract_strided_slice %12 {offsets = [6, 0], sizes = [2, 128], strides = [1, 1]} : vector<16x256xf32> to vector<2x128xf32>
    %23 = vector.extract_strided_slice %12 {offsets = [8, 128], sizes = [2, 128], strides = [1, 1]} : vector<16x256xf32> to vector<2x128xf32>
    %24 = tpu.concatenate %22, %23 in 0 : vector<2x128xf32>, vector<2x128xf32> -> vector<4x128xf32>
    %25 = vector.extract_strided_slice %12 {offsets = [8, 0], sizes = [2, 128], strides = [1, 1]} : vector<16x256xf32> to vector<2x128xf32>
    %26 = vector.extract_strided_slice %12 {offsets = [6, 128], sizes = [2, 128], strides = [1, 1]} : vector<16x256xf32> to vector<2x128xf32>
    %27 = tpu.concatenate %25, %26 in 0 : vector<2x128xf32>, vector<2x128xf32> -> vector<4x128xf32>
    %28 = vector.extract_strided_slice %12 {offsets = [10, 0], sizes = [2, 128], strides = [1, 1]} : vector<16x256xf32> to vector<2x128xf32>
    %29 = vector.extract_strided_slice %12 {offsets = [4, 128], sizes = [2, 128], strides = [1, 1]} : vector<16x256xf32> to vector<2x128xf32>
    %30 = tpu.concatenate %28, %29 in 0 : vector<2x128xf32>, vector<2x128xf32> -> vector<4x128xf32>
    %31 = vector.extract_strided_slice %12 {offsets = [12, 0], sizes = [2, 128], strides = [1, 1]} : vector<16x256xf32> to vector<2x128xf32>
    %32 = vector.extract_strided_slice %12 {offsets = [2, 128], sizes = [2, 128], strides = [1, 1]} : vector<16x256xf32> to vector<2x128xf32>
    %33 = tpu.concatenate %31, %32 in 0 : vector<2x128xf32>, vector<2x128xf32> -> vector<4x128xf32>
    %34 = vector.extract_strided_slice %12 {offsets = [14, 0], sizes = [2, 128], strides = [1, 1]} : vector<16x256xf32> to vector<2x128xf32>
    %35 = vector.extract_strided_slice %12 {offsets = [0, 128], sizes = [2, 128], strides = [1, 1]} : vector<16x256xf32> to vector<2x128xf32>
    %36 = tpu.concatenate %34, %35 in 0 : vector<2x128xf32>, vector<2x128xf32> -> vector<4x128xf32>
    %c0_8 = arith.constant 0 : index
    %c0_9 = arith.constant 0 : index
    %37 = vector.load %arg4[%c0_8, %c0_9] : memref<32x256xf32, #tpu.memory_space<vmem>>, vector<32x256xf32>
    %38 = tpu.iota {dimensions = array<i32: 0>} : vector<4x1xi32>
    %c2_i32 = arith.constant 2 : i32
    %39 = vector.broadcast %c2_i32 : i32 to vector<4x1xi32>
    %40 = arith.cmpi slt, %38, %39 : vector<4x1xi32>
    %41 = arith.negf %15 : vector<4x128xf32>
    %42 = math.exp %41 : vector<4x128xf32>
    %cst_10 = arith.constant 1.000000e+00 : f32
    %43 = vector.broadcast %cst_10 : f32 to vector<4x128xf32>
    %44 = arith.addf %43, %42 : vector<4x128xf32>
    %45 = arith.divf %43, %44 : vector<4x128xf32>
    %46 = vector.extract_strided_slice %15 {offsets = [0, 64], sizes = [4, 32], strides = [1, 1]} : vector<4x128xf32> to vector<4x32xf32>
    %47 = math.tanh %46 : vector<4x32xf32>
    %48 = vector.extract_strided_slice %45 {offsets = [0, 0], sizes = [4, 32], strides = [1, 1]} : vector<4x128xf32> to vector<4x32xf32>
    %49 = arith.mulf %48, %47 : vector<4x32xf32>
    %50 = vector.extract_strided_slice %45 {offsets = [0, 96], sizes = [4, 32], strides = [1, 1]} : vector<4x128xf32> to vector<4x32xf32>
    %51 = math.tanh %49 : vector<4x32xf32>
    %52 = arith.mulf %50, %51 : vector<4x32xf32>
    %53 = vector.extract_strided_slice %52 {offsets = [0, 0], sizes = [2, 32], strides = [1, 1]} : vector<4x32xf32> to vector<2x32xf32>
    %54 = vector.extract_strided_slice %52 {offsets = [2, 0], sizes = [2, 32], strides = [1, 1]} : vector<4x32xf32> to vector<2x32xf32>
    %cst_11 = arith.constant dense<0.000000e+00> : vector<4x256xf32>
    %55 = tpu.matmul %52, %37, %cst_11 {dimension_numbers = #tpu.dot_dimension_numbers<[1], [0], [0], [1], [0, 0, 1, 1], [], []>} : vector<4x32xf32>, vector<32x256xf32>, vector<4x256xf32> -> vector<4x256xf32>
    %56 = vector.extract_strided_slice %55 {offsets = [0, 0], sizes = [4, 128], strides = [1, 1]} : vector<4x256xf32> to vector<4x128xf32>
    %57 = vector.extract_strided_slice %55 {offsets = [0, 128], sizes = [4, 128], strides = [1, 1]} : vector<4x256xf32> to vector<4x128xf32>
    %58 = vector.shape_cast %40 : vector<4x1xi1> to vector<4x1xi1>
    %59 = vector.broadcast %58 : vector<4x1xi1> to vector<4x128xi1>
    %60 = arith.select %59, %56, %57 : vector<4x128xi1>, vector<4x128xf32>
    %61 = arith.addf %18, %60 : vector<4x128xf32>
    %62 = arith.negf %61 : vector<4x128xf32>
    %63 = math.exp %62 : vector<4x128xf32>
    %cst_12 = arith.constant 1.000000e+00 : f32
    %64 = vector.broadcast %cst_12 : f32 to vector<4x128xf32>
    %65 = arith.addf %64, %63 : vector<4x128xf32>
    %66 = arith.divf %64, %65 : vector<4x128xf32>
    %67 = vector.extract_strided_slice %61 {offsets = [0, 64], sizes = [4, 32], strides = [1, 1]} : vector<4x128xf32> to vector<4x32xf32>
    %68 = math.tanh %67 : vector<4x32xf32>
    %69 = vector.extract_strided_slice %66 {offsets = [0, 32], sizes = [4, 32], strides = [1, 1]} : vector<4x128xf32> to vector<4x32xf32>
    %70 = arith.mulf %69, %49 : vector<4x32xf32>
    %71 = vector.extract_strided_slice %66 {offsets = [0, 0], sizes = [4, 32], strides = [1, 1]} : vector<4x128xf32> to vector<4x32xf32>
    %72 = arith.mulf %71, %68 : vector<4x32xf32>
    %73 = arith.addf %70, %72 : vector<4x32xf32>
    %74 = vector.extract_strided_slice %66 {offsets = [0, 96], sizes = [4, 32], strides = [1, 1]} : vector<4x128xf32> to vector<4x32xf32>
    %75 = math.tanh %73 : vector<4x32xf32>
    %76 = arith.mulf %74, %75 : vector<4x32xf32>
    %77 = vector.extract_strided_slice %76 {offsets = [0, 0], sizes = [2, 32], strides = [1, 1]} : vector<4x32xf32> to vector<2x32xf32>
    %78 = vector.extract_strided_slice %76 {offsets = [2, 0], sizes = [2, 32], strides = [1, 1]} : vector<4x32xf32> to vector<2x32xf32>
    %cst_13 = arith.constant dense<0.000000e+00> : vector<4x256xf32>
    %79 = tpu.matmul %76, %37, %cst_13 {dimension_numbers = #tpu.dot_dimension_numbers<[1], [0], [0], [1], [0, 0, 1, 1], [], []>} : vector<4x32xf32>, vector<32x256xf32>, vector<4x256xf32> -> vector<4x256xf32>
    %80 = vector.extract_strided_slice %79 {offsets = [0, 0], sizes = [4, 128], strides = [1, 1]} : vector<4x256xf32> to vector<4x128xf32>
    %81 = vector.extract_strided_slice %79 {offsets = [0, 128], sizes = [4, 128], strides = [1, 1]} : vector<4x256xf32> to vector<4x128xf32>
    %82 = vector.shape_cast %40 : vector<4x1xi1> to vector<4x1xi1>
    %83 = vector.broadcast %82 : vector<4x1xi1> to vector<4x128xi1>
    %84 = arith.select %83, %80, %81 : vector<4x128xi1>, vector<4x128xf32>
    %85 = arith.addf %21, %84 : vector<4x128xf32>
    %86 = arith.negf %85 : vector<4x128xf32>
    %87 = math.exp %86 : vector<4x128xf32>
    %cst_14 = arith.constant 1.000000e+00 : f32
    %88 = vector.broadcast %cst_14 : f32 to vector<4x128xf32>
    %89 = arith.addf %88, %87 : vector<4x128xf32>
    %90 = arith.divf %88, %89 : vector<4x128xf32>
    %91 = vector.extract_strided_slice %85 {offsets = [0, 64], sizes = [4, 32], strides = [1, 1]} : vector<4x128xf32> to vector<4x32xf32>
    %92 = math.tanh %91 : vector<4x32xf32>
    %93 = vector.extract_strided_slice %90 {offsets = [0, 32], sizes = [4, 32], strides = [1, 1]} : vector<4x128xf32> to vector<4x32xf32>
    %94 = arith.mulf %93, %73 : vector<4x32xf32>
    %95 = vector.extract_strided_slice %90 {offsets = [0, 0], sizes = [4, 32], strides = [1, 1]} : vector<4x128xf32> to vector<4x32xf32>
    %96 = arith.mulf %95, %92 : vector<4x32xf32>
    %97 = arith.addf %94, %96 : vector<4x32xf32>
    %98 = vector.extract_strided_slice %90 {offsets = [0, 96], sizes = [4, 32], strides = [1, 1]} : vector<4x128xf32> to vector<4x32xf32>
    %99 = math.tanh %97 : vector<4x32xf32>
    %100 = arith.mulf %98, %99 : vector<4x32xf32>
    %101 = vector.extract_strided_slice %100 {offsets = [0, 0], sizes = [2, 32], strides = [1, 1]} : vector<4x32xf32> to vector<2x32xf32>
    %102 = vector.extract_strided_slice %100 {offsets = [2, 0], sizes = [2, 32], strides = [1, 1]} : vector<4x32xf32> to vector<2x32xf32>
    %cst_15 = arith.constant dense<0.000000e+00> : vector<4x256xf32>
    %103 = tpu.matmul %100, %37, %cst_15 {dimension_numbers = #tpu.dot_dimension_numbers<[1], [0], [0], [1], [0, 0, 1, 1], [], []>} : vector<4x32xf32>, vector<32x256xf32>, vector<4x256xf32> -> vector<4x256xf32>
    %104 = vector.extract_strided_slice %103 {offsets = [0, 0], sizes = [4, 128], strides = [1, 1]} : vector<4x256xf32> to vector<4x128xf32>
    %105 = vector.extract_strided_slice %103 {offsets = [0, 128], sizes = [4, 128], strides = [1, 1]} : vector<4x256xf32> to vector<4x128xf32>
    %106 = vector.shape_cast %40 : vector<4x1xi1> to vector<4x1xi1>
    %107 = vector.broadcast %106 : vector<4x1xi1> to vector<4x128xi1>
    %108 = arith.select %107, %104, %105 : vector<4x128xi1>, vector<4x128xf32>
    %109 = arith.addf %24, %108 : vector<4x128xf32>
    %110 = arith.negf %109 : vector<4x128xf32>
    %111 = math.exp %110 : vector<4x128xf32>
    %cst_16 = arith.constant 1.000000e+00 : f32
    %112 = vector.broadcast %cst_16 : f32 to vector<4x128xf32>
    %113 = arith.addf %112, %111 : vector<4x128xf32>
    %114 = arith.divf %112, %113 : vector<4x128xf32>
    %115 = vector.extract_strided_slice %109 {offsets = [0, 64], sizes = [4, 32], strides = [1, 1]} : vector<4x128xf32> to vector<4x32xf32>
    %116 = math.tanh %115 : vector<4x32xf32>
    %117 = vector.extract_strided_slice %114 {offsets = [0, 32], sizes = [4, 32], strides = [1, 1]} : vector<4x128xf32> to vector<4x32xf32>
    %118 = arith.mulf %117, %97 : vector<4x32xf32>
    %119 = vector.extract_strided_slice %114 {offsets = [0, 0], sizes = [4, 32], strides = [1, 1]} : vector<4x128xf32> to vector<4x32xf32>
    %120 = arith.mulf %119, %116 : vector<4x32xf32>
    %121 = arith.addf %118, %120 : vector<4x32xf32>
    %122 = vector.extract_strided_slice %114 {offsets = [0, 96], sizes = [4, 32], strides = [1, 1]} : vector<4x128xf32> to vector<4x32xf32>
    %123 = math.tanh %121 : vector<4x32xf32>
    %124 = arith.mulf %122, %123 : vector<4x32xf32>
    %125 = vector.extract_strided_slice %124 {offsets = [0, 0], sizes = [2, 32], strides = [1, 1]} : vector<4x32xf32> to vector<2x32xf32>
    %126 = vector.extract_strided_slice %124 {offsets = [2, 0], sizes = [2, 32], strides = [1, 1]} : vector<4x32xf32> to vector<2x32xf32>
    %cst_17 = arith.constant dense<0.000000e+00> : vector<4x256xf32>
    %127 = tpu.matmul %124, %37, %cst_17 {dimension_numbers = #tpu.dot_dimension_numbers<[1], [0], [0], [1], [0, 0, 1, 1], [], []>} : vector<4x32xf32>, vector<32x256xf32>, vector<4x256xf32> -> vector<4x256xf32>
    %128 = vector.extract_strided_slice %127 {offsets = [0, 0], sizes = [4, 128], strides = [1, 1]} : vector<4x256xf32> to vector<4x128xf32>
    %129 = vector.extract_strided_slice %127 {offsets = [0, 128], sizes = [4, 128], strides = [1, 1]} : vector<4x256xf32> to vector<4x128xf32>
    %130 = vector.shape_cast %40 : vector<4x1xi1> to vector<4x1xi1>
    %131 = vector.broadcast %130 : vector<4x1xi1> to vector<4x128xi1>
    %132 = arith.select %131, %128, %129 : vector<4x128xi1>, vector<4x128xf32>
    %133 = arith.addf %27, %132 : vector<4x128xf32>
    %134 = arith.negf %133 : vector<4x128xf32>
    %135 = math.exp %134 : vector<4x128xf32>
    %cst_18 = arith.constant 1.000000e+00 : f32
    %136 = vector.broadcast %cst_18 : f32 to vector<4x128xf32>
    %137 = arith.addf %136, %135 : vector<4x128xf32>
    %138 = arith.divf %136, %137 : vector<4x128xf32>
    %139 = vector.extract_strided_slice %133 {offsets = [0, 64], sizes = [4, 32], strides = [1, 1]} : vector<4x128xf32> to vector<4x32xf32>
    %140 = math.tanh %139 : vector<4x32xf32>
    %141 = vector.extract_strided_slice %138 {offsets = [0, 32], sizes = [4, 32], strides = [1, 1]} : vector<4x128xf32> to vector<4x32xf32>
    %142 = arith.mulf %141, %121 : vector<4x32xf32>
    %143 = vector.extract_strided_slice %138 {offsets = [0, 0], sizes = [4, 32], strides = [1, 1]} : vector<4x128xf32> to vector<4x32xf32>
    %144 = arith.mulf %143, %140 : vector<4x32xf32>
    %145 = arith.addf %142, %144 : vector<4x32xf32>
    %146 = vector.extract_strided_slice %138 {offsets = [0, 96], sizes = [4, 32], strides = [1, 1]} : vector<4x128xf32> to vector<4x32xf32>
    %147 = math.tanh %145 : vector<4x32xf32>
    %148 = arith.mulf %146, %147 : vector<4x32xf32>
    %149 = vector.extract_strided_slice %148 {offsets = [0, 0], sizes = [2, 32], strides = [1, 1]} : vector<4x32xf32> to vector<2x32xf32>
    %150 = vector.extract_strided_slice %148 {offsets = [2, 0], sizes = [2, 32], strides = [1, 1]} : vector<4x32xf32> to vector<2x32xf32>
    %cst_19 = arith.constant dense<0.000000e+00> : vector<4x256xf32>
    %151 = tpu.matmul %148, %37, %cst_19 {dimension_numbers = #tpu.dot_dimension_numbers<[1], [0], [0], [1], [0, 0, 1, 1], [], []>} : vector<4x32xf32>, vector<32x256xf32>, vector<4x256xf32> -> vector<4x256xf32>
    %152 = vector.extract_strided_slice %151 {offsets = [0, 0], sizes = [4, 128], strides = [1, 1]} : vector<4x256xf32> to vector<4x128xf32>
    %153 = vector.extract_strided_slice %151 {offsets = [0, 128], sizes = [4, 128], strides = [1, 1]} : vector<4x256xf32> to vector<4x128xf32>
    %154 = vector.shape_cast %40 : vector<4x1xi1> to vector<4x1xi1>
    %155 = vector.broadcast %154 : vector<4x1xi1> to vector<4x128xi1>
    %156 = arith.select %155, %152, %153 : vector<4x128xi1>, vector<4x128xf32>
    %157 = arith.addf %30, %156 : vector<4x128xf32>
    %158 = arith.negf %157 : vector<4x128xf32>
    %159 = math.exp %158 : vector<4x128xf32>
    %cst_20 = arith.constant 1.000000e+00 : f32
    %160 = vector.broadcast %cst_20 : f32 to vector<4x128xf32>
    %161 = arith.addf %160, %159 : vector<4x128xf32>
    %162 = arith.divf %160, %161 : vector<4x128xf32>
    %163 = vector.extract_strided_slice %157 {offsets = [0, 64], sizes = [4, 32], strides = [1, 1]} : vector<4x128xf32> to vector<4x32xf32>
    %164 = math.tanh %163 : vector<4x32xf32>
    %165 = vector.extract_strided_slice %162 {offsets = [0, 32], sizes = [4, 32], strides = [1, 1]} : vector<4x128xf32> to vector<4x32xf32>
    %166 = arith.mulf %165, %145 : vector<4x32xf32>
    %167 = vector.extract_strided_slice %162 {offsets = [0, 0], sizes = [4, 32], strides = [1, 1]} : vector<4x128xf32> to vector<4x32xf32>
    %168 = arith.mulf %167, %164 : vector<4x32xf32>
    %169 = arith.addf %166, %168 : vector<4x32xf32>
    %170 = vector.extract_strided_slice %162 {offsets = [0, 96], sizes = [4, 32], strides = [1, 1]} : vector<4x128xf32> to vector<4x32xf32>
    %171 = math.tanh %169 : vector<4x32xf32>
    %172 = arith.mulf %170, %171 : vector<4x32xf32>
    %173 = vector.extract_strided_slice %172 {offsets = [0, 0], sizes = [2, 32], strides = [1, 1]} : vector<4x32xf32> to vector<2x32xf32>
    %174 = vector.extract_strided_slice %172 {offsets = [2, 0], sizes = [2, 32], strides = [1, 1]} : vector<4x32xf32> to vector<2x32xf32>
    %cst_21 = arith.constant dense<0.000000e+00> : vector<4x256xf32>
    %175 = tpu.matmul %172, %37, %cst_21 {dimension_numbers = #tpu.dot_dimension_numbers<[1], [0], [0], [1], [0, 0, 1, 1], [], []>} : vector<4x32xf32>, vector<32x256xf32>, vector<4x256xf32> -> vector<4x256xf32>
    %176 = vector.extract_strided_slice %175 {offsets = [0, 0], sizes = [4, 128], strides = [1, 1]} : vector<4x256xf32> to vector<4x128xf32>
    %177 = vector.extract_strided_slice %175 {offsets = [0, 128], sizes = [4, 128], strides = [1, 1]} : vector<4x256xf32> to vector<4x128xf32>
    %178 = vector.shape_cast %40 : vector<4x1xi1> to vector<4x1xi1>
    %179 = vector.broadcast %178 : vector<4x1xi1> to vector<4x128xi1>
    %180 = arith.select %179, %176, %177 : vector<4x128xi1>, vector<4x128xf32>
    %181 = arith.addf %33, %180 : vector<4x128xf32>
    %182 = arith.negf %181 : vector<4x128xf32>
    %183 = math.exp %182 : vector<4x128xf32>
    %cst_22 = arith.constant 1.000000e+00 : f32
    %184 = vector.broadcast %cst_22 : f32 to vector<4x128xf32>
    %185 = arith.addf %184, %183 : vector<4x128xf32>
    %186 = arith.divf %184, %185 : vector<4x128xf32>
    %187 = vector.extract_strided_slice %181 {offsets = [0, 64], sizes = [4, 32], strides = [1, 1]} : vector<4x128xf32> to vector<4x32xf32>
    %188 = math.tanh %187 : vector<4x32xf32>
    %189 = vector.extract_strided_slice %186 {offsets = [0, 32], sizes = [4, 32], strides = [1, 1]} : vector<4x128xf32> to vector<4x32xf32>
    %190 = arith.mulf %189, %169 : vector<4x32xf32>
    %191 = vector.extract_strided_slice %186 {offsets = [0, 0], sizes = [4, 32], strides = [1, 1]} : vector<4x128xf32> to vector<4x32xf32>
    %192 = arith.mulf %191, %188 : vector<4x32xf32>
    %193 = arith.addf %190, %192 : vector<4x32xf32>
    %194 = vector.extract_strided_slice %186 {offsets = [0, 96], sizes = [4, 32], strides = [1, 1]} : vector<4x128xf32> to vector<4x32xf32>
    %195 = math.tanh %193 : vector<4x32xf32>
    %196 = arith.mulf %194, %195 : vector<4x32xf32>
    %197 = vector.extract_strided_slice %196 {offsets = [0, 0], sizes = [2, 32], strides = [1, 1]} : vector<4x32xf32> to vector<2x32xf32>
    %198 = vector.extract_strided_slice %196 {offsets = [2, 0], sizes = [2, 32], strides = [1, 1]} : vector<4x32xf32> to vector<2x32xf32>
    %cst_23 = arith.constant dense<0.000000e+00> : vector<4x256xf32>
    %199 = tpu.matmul %196, %37, %cst_23 {dimension_numbers = #tpu.dot_dimension_numbers<[1], [0], [0], [1], [0, 0, 1, 1], [], []>} : vector<4x32xf32>, vector<32x256xf32>, vector<4x256xf32> -> vector<4x256xf32>
    %200 = vector.extract_strided_slice %199 {offsets = [0, 0], sizes = [4, 128], strides = [1, 1]} : vector<4x256xf32> to vector<4x128xf32>
    %201 = vector.extract_strided_slice %199 {offsets = [0, 128], sizes = [4, 128], strides = [1, 1]} : vector<4x256xf32> to vector<4x128xf32>
    %202 = vector.shape_cast %40 : vector<4x1xi1> to vector<4x1xi1>
    %203 = vector.broadcast %202 : vector<4x1xi1> to vector<4x128xi1>
    %204 = arith.select %203, %200, %201 : vector<4x128xi1>, vector<4x128xf32>
    %205 = arith.addf %36, %204 : vector<4x128xf32>
    %206 = arith.negf %205 : vector<4x128xf32>
    %207 = math.exp %206 : vector<4x128xf32>
    %cst_24 = arith.constant 1.000000e+00 : f32
    %208 = vector.broadcast %cst_24 : f32 to vector<4x128xf32>
    %209 = arith.addf %208, %207 : vector<4x128xf32>
    %210 = arith.divf %208, %209 : vector<4x128xf32>
    %211 = vector.extract_strided_slice %205 {offsets = [0, 64], sizes = [4, 32], strides = [1, 1]} : vector<4x128xf32> to vector<4x32xf32>
    %212 = math.tanh %211 : vector<4x32xf32>
    %213 = vector.extract_strided_slice %210 {offsets = [0, 32], sizes = [4, 32], strides = [1, 1]} : vector<4x128xf32> to vector<4x32xf32>
    %214 = arith.mulf %213, %193 : vector<4x32xf32>
    %215 = vector.extract_strided_slice %210 {offsets = [0, 0], sizes = [4, 32], strides = [1, 1]} : vector<4x128xf32> to vector<4x32xf32>
    %216 = arith.mulf %215, %212 : vector<4x32xf32>
    %217 = arith.addf %214, %216 : vector<4x32xf32>
    %218 = vector.extract_strided_slice %210 {offsets = [0, 96], sizes = [4, 32], strides = [1, 1]} : vector<4x128xf32> to vector<4x32xf32>
    %219 = math.tanh %217 : vector<4x32xf32>
    %220 = arith.mulf %218, %219 : vector<4x32xf32>
    %221 = vector.extract_strided_slice %220 {offsets = [0, 0], sizes = [2, 32], strides = [1, 1]} : vector<4x32xf32> to vector<2x32xf32>
    %222 = vector.extract_strided_slice %220 {offsets = [2, 0], sizes = [2, 32], strides = [1, 1]} : vector<4x32xf32> to vector<2x32xf32>
    %223 = tpu.concatenate %53, %222 in 1 : vector<2x32xf32>, vector<2x32xf32> -> vector<2x64xf32>
    %c0_25 = arith.constant 0 : index
    %c0_26 = arith.constant 0 : index
    %c0_27 = arith.constant 0 : index
    %224 = vector.load %arg14[%c0_25, %c0_26, %c0_27] : memref<2x8x64xf32, #tpu.memory_space<vmem>>, vector<2x1x64xf32>
    %225 = vector.shape_cast %224 : vector<2x1x64xf32> to vector<2x64xf32>
    %226 = vector.shape_cast %223 : vector<2x64xf32> to vector<2x1x64xf32>
    tpu.vector_store %arg14[%c0_25, %c0_26, %c0_27], %226 {strides = array<i32>} : memref<2x8x64xf32, #tpu.memory_space<vmem>>, vector<2x1x64xf32>,
    %227 = tpu.concatenate %77, %198 in 1 : vector<2x32xf32>, vector<2x32xf32> -> vector<2x64xf32>
    %c0_28 = arith.constant 0 : index
    %c1 = arith.constant 1 : index
    %c0_29 = arith.constant 0 : index
    %228 = vector.load %arg14[%c0_28, %c1, %c0_29] : memref<2x8x64xf32, #tpu.memory_space<vmem>>, vector<2x1x64xf32>
    %229 = vector.shape_cast %228 : vector<2x1x64xf32> to vector<2x64xf32>
    %230 = vector.shape_cast %227 : vector<2x64xf32> to vector<2x1x64xf32>
    tpu.vector_store %arg14[%c0_28, %c1, %c0_29], %230 {strides = array<i32>} : memref<2x8x64xf32, #tpu.memory_space<vmem>>, vector<2x1x64xf32>,
    %231 = tpu.concatenate %101, %174 in 1 : vector<2x32xf32>, vector<2x32xf32> -> vector<2x64xf32>
    %c0_30 = arith.constant 0 : index
    %c2 = arith.constant 2 : index
    %c0_31 = arith.constant 0 : index
    %232 = vector.load %arg14[%c0_30, %c2, %c0_31] : memref<2x8x64xf32, #tpu.memory_space<vmem>>, vector<2x1x64xf32>
    %233 = vector.shape_cast %232 : vector<2x1x64xf32> to vector<2x64xf32>
    %234 = vector.shape_cast %231 : vector<2x64xf32> to vector<2x1x64xf32>
    tpu.vector_store %arg14[%c0_30, %c2, %c0_31], %234 {strides = array<i32>} : memref<2x8x64xf32, #tpu.memory_space<vmem>>, vector<2x1x64xf32>,
    %235 = tpu.concatenate %125, %150 in 1 : vector<2x32xf32>, vector<2x32xf32> -> vector<2x64xf32>
    %c0_32 = arith.constant 0 : index
    %c3 = arith.constant 3 : index
    %c0_33 = arith.constant 0 : index
    %236 = vector.load %arg14[%c0_32, %c3, %c0_33] : memref<2x8x64xf32, #tpu.memory_space<vmem>>, vector<2x1x64xf32>
    %237 = vector.shape_cast %236 : vector<2x1x64xf32> to vector<2x64xf32>
    %238 = vector.shape_cast %235 : vector<2x64xf32> to vector<2x1x64xf32>
    tpu.vector_store %arg14[%c0_32, %c3, %c0_33], %238 {strides = array<i32>} : memref<2x8x64xf32, #tpu.memory_space<vmem>>, vector<2x1x64xf32>,
    %239 = tpu.concatenate %149, %126 in 1 : vector<2x32xf32>, vector<2x32xf32> -> vector<2x64xf32>
    %c0_34 = arith.constant 0 : index
    %c4 = arith.constant 4 : index
    %c0_35 = arith.constant 0 : index
    %240 = vector.load %arg14[%c0_34, %c4, %c0_35] : memref<2x8x64xf32, #tpu.memory_space<vmem>>, vector<2x1x64xf32>
    %241 = vector.shape_cast %240 : vector<2x1x64xf32> to vector<2x64xf32>
    %242 = vector.shape_cast %239 : vector<2x64xf32> to vector<2x1x64xf32>
    tpu.vector_store %arg14[%c0_34, %c4, %c0_35], %242 {strides = array<i32>} : memref<2x8x64xf32, #tpu.memory_space<vmem>>, vector<2x1x64xf32>,
    %243 = tpu.concatenate %173, %102 in 1 : vector<2x32xf32>, vector<2x32xf32> -> vector<2x64xf32>
    %c0_36 = arith.constant 0 : index
    %c5 = arith.constant 5 : index
    %c0_37 = arith.constant 0 : index
    %244 = vector.load %arg14[%c0_36, %c5, %c0_37] : memref<2x8x64xf32, #tpu.memory_space<vmem>>, vector<2x1x64xf32>
    %245 = vector.shape_cast %244 : vector<2x1x64xf32> to vector<2x64xf32>
    %246 = vector.shape_cast %243 : vector<2x64xf32> to vector<2x1x64xf32>
    tpu.vector_store %arg14[%c0_36, %c5, %c0_37], %246 {strides = array<i32>} : memref<2x8x64xf32, #tpu.memory_space<vmem>>, vector<2x1x64xf32>,
    %247 = tpu.concatenate %197, %78 in 1 : vector<2x32xf32>, vector<2x32xf32> -> vector<2x64xf32>
    %c0_38 = arith.constant 0 : index
    %c6 = arith.constant 6 : index
    %c0_39 = arith.constant 0 : index
    %248 = vector.load %arg14[%c0_38, %c6, %c0_39] : memref<2x8x64xf32, #tpu.memory_space<vmem>>, vector<2x1x64xf32>
    %249 = vector.shape_cast %248 : vector<2x1x64xf32> to vector<2x64xf32>
    %250 = vector.shape_cast %247 : vector<2x64xf32> to vector<2x1x64xf32>
    tpu.vector_store %arg14[%c0_38, %c6, %c0_39], %250 {strides = array<i32>} : memref<2x8x64xf32, #tpu.memory_space<vmem>>, vector<2x1x64xf32>,
    %251 = tpu.concatenate %221, %54 in 1 : vector<2x32xf32>, vector<2x32xf32> -> vector<2x64xf32>
    %c0_40 = arith.constant 0 : index
    %c7 = arith.constant 7 : index
    %c0_41 = arith.constant 0 : index
    %252 = vector.load %arg14[%c0_40, %c7, %c0_41] : memref<2x8x64xf32, #tpu.memory_space<vmem>>, vector<2x1x64xf32>
    %253 = vector.shape_cast %252 : vector<2x1x64xf32> to vector<2x64xf32>
    %254 = vector.shape_cast %251 : vector<2x64xf32> to vector<2x1x64xf32>
    tpu.vector_store %arg14[%c0_40, %c7, %c0_41], %254 {strides = array<i32>} : memref<2x8x64xf32, #tpu.memory_space<vmem>>, vector<2x1x64xf32>,
    %c0_42 = arith.constant 0 : index
    %c0_43 = arith.constant 0 : index
    %c0_44 = arith.constant 0 : index
    %255 = vector.load %arg14[%c0_42, %c0_43, %c0_44] : memref<2x8x64xf32, #tpu.memory_space<vmem>>, vector<2x8x64xf32>
    %c0_45 = arith.constant 0 : index
    %c0_46 = arith.constant 0 : index
    %256 = vector.load %arg6[%c0_45, %c0_46] : memref<64x24xf32, #tpu.memory_space<vmem>>, vector<64x24xf32>
    "tpu.trace_start"() <{level = 10 : i32, message = "btu,ud->btd"}> : () -> ()
    %cst_47 = arith.constant dense<0.000000e+00> : vector<2x8x24xf32>
    %257 = tpu.matmul %255, %256, %cst_47 {dimension_numbers = #tpu.dot_dimension_numbers<[2], [0], [0, 1], [1], [0, 0, 0, 1, 1, 1], [], []>} : vector<2x8x64xf32>, vector<64x24xf32>, vector<2x8x24xf32> -> vector<2x8x24xf32>
    "tpu.trace_stop"() : () -> ()
    %258 = math.tanh %257 : vector<2x8x24xf32>
    %c0_48 = arith.constant 0 : index
    %c0_49 = arith.constant 0 : index
    %259 = vector.load %arg7[%c0_48, %c0_49] : memref<24x10xf32, #tpu.memory_space<vmem>>, vector<24x10xf32>
    "tpu.trace_start"() <{level = 10 : i32, message = "btd,dr->btr"}> : () -> ()
    %cst_50 = arith.constant dense<0.000000e+00> : vector<2x8x10xf32>
    %260 = tpu.matmul %258, %259, %cst_50 {dimension_numbers = #tpu.dot_dimension_numbers<[2], [0], [0, 1], [1], [0, 0, 0, 1, 1, 1], [], []>} : vector<2x8x24xf32>, vector<24x10xf32>, vector<2x8x10xf32> -> vector<2x8x10xf32>
    "tpu.trace_stop"() : () -> ()
    %cst_51 = arith.constant dense<0xFF800000> : vector<2x10xf32>
    %261 = vector.multi_reduction <maximumf>, %260, %cst_51 [1] : vector<2x8x10xf32> to vector<2x10xf32>
    %cst_52 = arith.constant 0xFF800000 : f32
    %262 = vector.broadcast %cst_52 : f32 to vector<2x10xf32>
    %263 = arith.maximumf %262, %261 : vector<2x10xf32>
    %264 = vector.shape_cast %263 : vector<2x10xf32> to vector<2x1x10xf32>
    %265 = vector.broadcast %264 : vector<2x1x10xf32> to vector<2x8x10xf32>
    %266 = arith.subf %260, %265 : vector<2x8x10xf32>
    %267 = math.exp %266 : vector<2x8x10xf32>
    %cst_53 = arith.constant dense<0.000000e+00> : vector<2x10xf32>
    %268 = vector.multi_reduction <add>, %267, %cst_53 [1] : vector<2x8x10xf32> to vector<2x10xf32>
    %269 = vector.shape_cast %268 : vector<2x10xf32> to vector<2x1x10xf32>
    %270 = vector.broadcast %269 : vector<2x1x10xf32> to vector<2x8x10xf32>
    %271 = arith.divf %267, %270 : vector<2x8x10xf32>
    "tpu.trace_start"() <{level = 10 : i32, message = "btr,btu->bru"}> : () -> ()
    %cst_54 = arith.constant dense<0.000000e+00> : vector<2x10x64xf32>
    %272 = tpu.matmul %271, %255, %cst_54 {dimension_numbers = #tpu.dot_dimension_numbers<[1], [1], [2], [2], [0, 0, 0, 2, 1, 2], [0], [0]>} : vector<2x8x10xf32>, vector<2x8x64xf32>, vector<2x10x64xf32> -> vector<2x10x64xf32>
    "tpu.trace_stop"() : () -> ()
    "tpu.trace_start"() <{level = 10 : i32, message = "btr,bts->brs"}> : () -> ()
    %cst_55 = arith.constant dense<0.000000e+00> : vector<2x10x10xf32>
    %273 = tpu.matmul %271, %271, %cst_55 {dimension_numbers = #tpu.dot_dimension_numbers<[1], [1], [2], [2], [0, 0, 0, 2, 1, 2], [0], [0]>} : vector<2x8x10xf32>, vector<2x8x10xf32>, vector<2x10x10xf32> -> vector<2x10x10xf32>
    "tpu.trace_stop"() : () -> ()
    %274 = tpu.iota {dimensions = array<i32: 0>} : vector<10x10xi32>
    %275 = tpu.iota {dimensions = array<i32: 1>} : vector<10x10xi32>
    %c0_i32 = arith.constant 0 : i32
    %276 = vector.broadcast %c0_i32 : i32 to vector<10x10xi32>
    %277 = arith.addi %274, %276 : vector<10x10xi32>
    %278 = arith.cmpi eq, %277, %275 : vector<10x10xi32>
    %279 = arith.extui %278 : vector<10x10xi1> to vector<10x10xi32>
    %280 = arith.sitofp %279 : vector<10x10xi32> to vector<10x10xf32>
    %281 = vector.shape_cast %280 : vector<10x10xf32> to vector<1x10x10xf32>
    %282 = vector.broadcast %281 : vector<1x10x10xf32> to vector<2x10x10xf32>
    %283 = arith.subf %273, %282 : vector<2x10x10xf32>
    %284 = arith.mulf %283, %283 : vector<2x10x10xf32>
    %285 = vector.shape_cast %284 : vector<2x10x10xf32> to vector<1x2x10x10xf32>
    %cst_56 = arith.constant dense<0.000000e+00> : vector<1xf32>
    %286 = vector.multi_reduction <add>, %285, %cst_56 [1, 2, 3] : vector<1x2x10x10xf32> to vector<1xf32>
    %287 = vector.shape_cast %286 : vector<1xf32> to vector<1x1x1x1xf32>
    %288 = vector.extract %287[0, 0, 0, 0] : f32 from vector<1x1x1x1xf32>
    %289 = vector.broadcast %288 : f32 to vector<1x1xf32>
    %c0_57 = arith.constant 0 : index
    %c0_58 = arith.constant 0 : index
    %290 = vector.load %arg13[%c0_57, %c0_58] : memref<1x1xf32, #tpu.memory_space<vmem>>, vector<1x1xf32>
    tpu.vector_store %arg13[%c0_57, %c0_58], %289 {strides = array<i32>} : memref<1x1xf32, #tpu.memory_space<vmem>>, vector<1x1xf32>,
    %291 = vector.extract_strided_slice %272 {offsets = [0, 0, 0], sizes = [2, 1, 64], strides = [1, 1, 1]} : vector<2x10x64xf32> to vector<2x1x64xf32>
    %292 = vector.shape_cast %291 : vector<2x1x64xf32> to vector<2x64xf32>
    %293 = vector.extract_strided_slice %272 {offsets = [0, 1, 0], sizes = [2, 1, 64], strides = [1, 1, 1]} : vector<2x10x64xf32> to vector<2x1x64xf32>
    %294 = vector.shape_cast %293 : vector<2x1x64xf32> to vector<2x64xf32>
    %295 = vector.extract_strided_slice %272 {offsets = [0, 2, 0], sizes = [2, 1, 64], strides = [1, 1, 1]} : vector<2x10x64xf32> to vector<2x1x64xf32>
    %296 = vector.shape_cast %295 : vector<2x1x64xf32> to vector<2x64xf32>
    %297 = vector.extract_strided_slice %272 {offsets = [0, 3, 0], sizes = [2, 1, 64], strides = [1, 1, 1]} : vector<2x10x64xf32> to vector<2x1x64xf32>
    %298 = vector.shape_cast %297 : vector<2x1x64xf32> to vector<2x64xf32>
    %299 = vector.extract_strided_slice %272 {offsets = [0, 4, 0], sizes = [2, 1, 64], strides = [1, 1, 1]} : vector<2x10x64xf32> to vector<2x1x64xf32>
    %300 = vector.shape_cast %299 : vector<2x1x64xf32> to vector<2x64xf32>
    %301 = vector.extract_strided_slice %272 {offsets = [0, 5, 0], sizes = [2, 1, 64], strides = [1, 1, 1]} : vector<2x10x64xf32> to vector<2x1x64xf32>
    %302 = vector.shape_cast %301 : vector<2x1x64xf32> to vector<2x64xf32>
    %303 = vector.extract_strided_slice %272 {offsets = [0, 6, 0], sizes = [2, 1, 64], strides = [1, 1, 1]} : vector<2x10x64xf32> to vector<2x1x64xf32>
    %304 = vector.shape_cast %303 : vector<2x1x64xf32> to vector<2x64xf32>
    %305 = vector.extract_strided_slice %272 {offsets = [0, 7, 0], sizes = [2, 1, 64], strides = [1, 1, 1]} : vector<2x10x64xf32> to vector<2x1x64xf32>
    %306 = vector.shape_cast %305 : vector<2x1x64xf32> to vector<2x64xf32>
    %307 = vector.extract_strided_slice %272 {offsets = [0, 8, 0], sizes = [2, 1, 64], strides = [1, 1, 1]} : vector<2x10x64xf32> to vector<2x1x64xf32>
    %308 = vector.shape_cast %307 : vector<2x1x64xf32> to vector<2x64xf32>
    %309 = vector.extract_strided_slice %272 {offsets = [0, 9, 0], sizes = [2, 1, 64], strides = [1, 1, 1]} : vector<2x10x64xf32> to vector<2x1x64xf32>
    %310 = vector.shape_cast %309 : vector<2x1x64xf32> to vector<2x64xf32>
    %311 = tpu.concatenate %292, %294, %296, %298, %300, %302, %304, %306, %308, %310 in 1 : vector<2x64xf32>, vector<2x64xf32>, vector<2x64xf32>, vector<2x64xf32>, vector<2x64xf32>, vector<2x64xf32>, vector<2x64xf32>, vector<2x64xf32>, vector<2x64xf32>, vector<2x64xf32> -> vector<2x640xf32>
    %c0_59 = arith.constant 0 : index
    %c0_60 = arith.constant 0 : index
    %312 = vector.load %arg8[%c0_59, %c0_60] : memref<640x64xf32, #tpu.memory_space<vmem>>, vector<640x64xf32>
    %cst_61 = arith.constant dense<0.000000e+00> : vector<2x64xf32>
    %313 = tpu.matmul %311, %312, %cst_61 {dimension_numbers = #tpu.dot_dimension_numbers<[1], [0], [0], [1], [0, 0, 1, 1], [], []>} : vector<2x640xf32>, vector<640x64xf32>, vector<2x64xf32> -> vector<2x64xf32>
    %c0_62 = arith.constant 0 : index
    %c0_63 = arith.constant 0 : index
    %314 = vector.load %arg9[%c0_62, %c0_63] : memref<1x64xf32, #tpu.memory_space<vmem>>, vector<1x64xf32>
    %315 = vector.broadcast %314 : vector<1x64xf32> to vector<2x64xf32>
    %316 = arith.addf %313, %315 : vector<2x64xf32>
    %cst_64 = arith.constant 0.000000e+00 : f32
    %317 = vector.broadcast %cst_64 : f32 to vector<2x64xf32>
    %318 = arith.maximumf %316, %317 : vector<2x64xf32>
    %c0_65 = arith.constant 0 : index
    %c0_66 = arith.constant 0 : index
    %319 = vector.load %arg10[%c0_65, %c0_66] : memref<64x5xf32, #tpu.memory_space<vmem>>, vector<64x5xf32>
    %cst_67 = arith.constant dense<0.000000e+00> : vector<2x5xf32>
    %320 = tpu.matmul %318, %319, %cst_67 {dimension_numbers = #tpu.dot_dimension_numbers<[1], [0], [0], [1], [0, 0, 1, 1], [], []>} : vector<2x64xf32>, vector<64x5xf32>, vector<2x5xf32> -> vector<2x5xf32>
    %c0_68 = arith.constant 0 : index
    %c0_69 = arith.constant 0 : index
    %321 = vector.load %arg11[%c0_68, %c0_69] : memref<1x5xf32, #tpu.memory_space<vmem>>, vector<1x5xf32>
    %322 = vector.broadcast %321 : vector<1x5xf32> to vector<2x5xf32>
    %323 = arith.addf %320, %322 : vector<2x5xf32>
    %c0_70 = arith.constant 0 : index
    %c0_71 = arith.constant 0 : index
    %324 = vector.load %arg12[%c0_70, %c0_71] : memref<2x5xf32, #tpu.memory_space<vmem>>, vector<2x5xf32>
    tpu.vector_store %arg12[%c0_70, %c0_71], %323 {strides = array<i32>} : memref<2x5xf32, #tpu.memory_space<vmem>>, vector<2x5xf32>,
    return
  }
  func.func @transform_0(%arg0: i32) -> (i32, i32) {
    %c0_i32 = arith.constant 0 : i32
    %c0_i32_0 = arith.constant 0 : i32
    %c0_i32_1 = arith.constant 0 : i32
    return %c0_i32, %c0_i32_0 : i32, i32
  }
  func.func @transform_1(%arg0: i32) -> (i32, i32) {
    %c0_i32 = arith.constant 0 : i32
    %c0_i32_0 = arith.constant 0 : i32
    %c0_i32_1 = arith.constant 0 : i32
    return %c0_i32, %c0_i32_0 : i32, i32
  }
  func.func @transform_2(%arg0: i32) -> (i32, i32) {
    %c0_i32 = arith.constant 0 : i32
    %c0_i32_0 = arith.constant 0 : i32
    %c0_i32_1 = arith.constant 0 : i32
    return %c0_i32, %c0_i32_0 : i32, i32
  }
  func.func @transform_3(%arg0: i32) -> (i32, i32) {
    %c0_i32 = arith.constant 0 : i32
    %c0_i32_0 = arith.constant 0 : i32
    %c0_i32_1 = arith.constant 0 : i32
    return %c0_i32, %c0_i32_0 : i32, i32
  }
  func.func @transform_4(%arg0: i32) -> (i32, i32) {
    %c0_i32 = arith.constant 0 : i32
    %c0_i32_0 = arith.constant 0 : i32
    %c0_i32_1 = arith.constant 0 : i32
    return %c0_i32, %c0_i32_0 : i32, i32
  }
  func.func @transform_5(%arg0: i32) -> (i32, i32) {
    %c0_i32 = arith.constant 0 : i32
    %c0_i32_0 = arith.constant 0 : i32
    %c0_i32_1 = arith.constant 0 : i32
    return %c0_i32, %c0_i32_0 : i32, i32
  }
  func.func @transform_6(%arg0: i32) -> (i32, i32) {
    %c0_i32 = arith.constant 0 : i32
    %c0_i32_0 = arith.constant 0 : i32
    %c0_i32_1 = arith.constant 0 : i32
    return %c0_i32, %c0_i32_0 : i32, i32
  }
  func.func @transform_7(%arg0: i32) -> (i32, i32) {
    %c0_i32 = arith.constant 0 : i32
    %c0_i32_0 = arith.constant 0 : i32
    %c0_i32_1 = arith.constant 0 : i32
    return %c0_i32, %c0_i32_0 : i32, i32
  }
  func.func @transform_8(%arg0: i32) -> (i32, i32) {
    %c0_i32 = arith.constant 0 : i32
    %c0_i32_0 = arith.constant 0 : i32
    %c0_i32_1 = arith.constant 0 : i32
    return %c0_i32, %c0_i32_0 : i32, i32
  }
  func.func @transform_9(%arg0: i32) -> (i32, i32) {
    %c0_i32 = arith.constant 0 : i32
    %c0_i32_0 = arith.constant 0 : i32
    %c0_i32_1 = arith.constant 0 : i32
    return %c0_i32, %c0_i32_0 : i32, i32
  }
  func.func @transform_10(%arg0: i32) -> (i32, i32) {
    %c0_i32 = arith.constant 0 : i32
    %c0_i32_0 = arith.constant 0 : i32
    %c0_i32_1 = arith.constant 0 : i32
    return %c0_i32, %c0_i32_0 : i32, i32
  }
  func.func @transform_11(%arg0: i32) -> (i32, i32) {
    %c0_i32 = arith.constant 0 : i32
    %c0_i32_0 = arith.constant 0 : i32
    %c0_i32_1 = arith.constant 0 : i32
    return %c0_i32, %c0_i32_0 : i32, i32
  }
  func.func @transform_12(%arg0: i32) -> (i32, i32) {
    %c0_i32 = arith.constant 0 : i32
    %c0_i32_0 = arith.constant 0 : i32
    %c0_i32_1 = arith.constant 0 : i32
    return %c0_i32, %c0_i32_0 : i32, i32
  }
}

</mosaic_0001>

<llo_original>
// kernel: net_forward.1
$region0: #{net_forward.1}
  #allocation0 [shape = 'u32[]', space=smem, size = 0x4, offset = 0x4, fixed_abs, tag = 'smem constant byte address 0x4 - core index']
  #allocation1 [shape = 'u32[144,128]{1,0:T(1,128)}', space=vmem, size = 0x12000, scoped, tag = 'internal scratch']
  #allocation2 [shape = 'f32[2,8,64]{2,1,0:T(8,128)}', space=vmem, size = 0x2000, scoped, tag = 'scratch operand']
  %s0 = inlined_call_operand.vmem [shape: s32[16,1], index: 0, kind: input, shape index: {}]
  %s1 = inlined_call_operand.vmem [shape: f32[64,16], index: 1, kind: input, shape index: {}]
  %s2 = inlined_call_operand.vmem [shape: f32[16,256], index: 2, kind: input, shape index: {}]
  %s3 = inlined_call_operand.vmem [shape: f32[32,256], index: 3, kind: input, shape index: {}]
  %s4 = inlined_call_operand.vmem [shape: f32[1,256], index: 4, kind: input, shape index: {}]
  %s5 = inlined_call_operand.vmem [shape: f32[64,24], index: 5, kind: input, shape index: {}]
  %s6 = inlined_call_operand.vmem [shape: f32[24,10], index: 6, kind: input, shape index: {}]
  %s7 = inlined_call_operand.vmem [shape: f32[640,64], index: 7, kind: input, shape index: {}]
  %s8 = inlined_call_operand.vmem [shape: f32[1,64], index: 8, kind: input, shape index: {}]
  %s9 = inlined_call_operand.vmem [shape: f32[64,5], index: 9, kind: input, shape index: {}]
  %s10 = inlined_call_operand.vmem [shape: f32[1,5], index: 10, kind: input, shape index: {}]
  %s11 = inlined_call_operand.hbm [shape: f32[2,5], index: 11, kind: output, shape index: {0}]
  %s12 = inlined_call_operand.hbm [shape: f32[1,1], index: 12, kind: output, shape index: {1}]
  %13 = xla_tuple %s11, %s12
  %s14 = sld [smem:[#allocation0]]
  $region62: #{net_forward.1} parent=0
    _
  %s16 = ssub.s32 1, %s14
  %s17 = scalar_select 0, %s16, %s14
  $region1: #{net_forward.1} parent=0
    #allocation3 [shape = 'u8[1024]{0}', space=vmem, size = 0x400, scoped, tag = 'output window, operand 0, single buffered']
    #allocation4 [shape = 's32[1]{0}', space=sflag, size = 0x4, scoped, tag = 'scoped memory for net_forward.1']
    #allocation5 [shape = 'u8[512]{0}', space=vmem, size = 0x400, scoped, tag = 'output window, operand 1, single buffered']
    #allocation6 [shape = 's32[1]{0}', space=sflag, size = 0x4, scoped, tag = 'scoped memory for net_forward.1']
    %18 = vsyncpa [#allocation4], 0
    %19 = vsyncpa [#allocation6], 0
    // Predicated region
    $region2: #{net_forward.1} parent=1 // pred_check
      _
    $region3: #{net_forward.1} parent=1 // pred_check_branch
      %21 = sbr.rel (0) target = $region5
    $region4: #{net_forward.1} parent=1 // pred_region
      _
    $region5: #{net_forward.1} parent=1 // pred_fallthru
      _
    // Predicated region
    $region6: #{net_forward.1} parent=1 // pred_check
      _
    $region7: #{net_forward.1} parent=1 // pred_check_branch
      %23 = sbr.rel (0) target = $region9
    $region8: #{net_forward.1} parent=1 // pred_region
      _
    $region9: #{net_forward.1} parent=1 // pred_fallthru
      _
    // Predicated region
    $region10: #{net_forward.1} parent=1 // pred_check
      _
    $region11: #{net_forward.1} parent=1 // pred_check_branch
      %25 = sbr.rel (0) target = $region13
    $region12: #{net_forward.1} parent=1 // pred_region
      _
    $region13: #{net_forward.1} parent=1 // pred_fallthru
      _
    // Predicated region
    $region14: #{net_forward.1} parent=1 // pred_check
      _
    $region15: #{net_forward.1} parent=1 // pred_check_branch
      %27 = sbr.rel (0) target = $region17
    $region16: #{net_forward.1} parent=1 // pred_region
      _
    $region17: #{net_forward.1} parent=1 // pred_fallthru
      _
    // Predicated region
    $region18: #{net_forward.1} parent=1 // pred_check
      _
    $region19: #{net_forward.1} parent=1 // pred_check_branch
      %29 = sbr.rel (0) target = $region21
    $region20: #{net_forward.1} parent=1 // pred_region
      _
    $region21: #{net_forward.1} parent=1 // pred_fallthru
      _
    // Predicated region
    $region22: #{net_forward.1} parent=1 // pred_check
      _
    $region23: #{net_forward.1} parent=1 // pred_check_branch
      %31 = sbr.rel (0) target = $region25
    $region24: #{net_forward.1} parent=1 // pred_region
      _
    $region25: #{net_forward.1} parent=1 // pred_fallthru
      _
    // Predicated region
    $region26: #{net_forward.1} parent=1 // pred_check
      _
    $region27: #{net_forward.1} parent=1 // pred_check_branch
      %33 = sbr.rel (0) target = $region29
    $region28: #{net_forward.1} parent=1 // pred_region
      _
    $region29: #{net_forward.1} parent=1 // pred_fallthru
      _
    // Predicated region
    $region30: #{net_forward.1} parent=1 // pred_check
      _
    $region31: #{net_forward.1} parent=1 // pred_check_branch
      %35 = sbr.rel (0) target = $region33
    $region32: #{net_forward.1} parent=1 // pred_region
      _
    $region33: #{net_forward.1} parent=1 // pred_fallthru
      _
    // Predicated region
    $region34: #{net_forward.1} parent=1 // pred_check
      _
    $region35: #{net_forward.1} parent=1 // pred_check_branch
      %37 = sbr.rel (0) target = $region37
    $region36: #{net_forward.1} parent=1 // pred_region
      _
    $region37: #{net_forward.1} parent=1 // pred_fallthru
      _
    // Predicated region
    $region38: #{net_forward.1} parent=1 // pred_check
      _
    $region39: #{net_forward.1} parent=1 // pred_check_branch
      %39 = sbr.rel (0) target = $region41
    $region40: #{net_forward.1} parent=1 // pred_region
      _
    $region41: #{net_forward.1} parent=1 // pred_fallthru
      _
    // Predicated region
    $region42: #{net_forward.1} parent=1 // pred_check
      _
    $region43: #{net_forward.1} parent=1 // pred_check_branch
      %41 = sbr.rel (0) target = $region45
    $region44: #{net_forward.1} parent=1 // pred_region
      _
    $region45: #{net_forward.1} parent=1 // pred_fallthru
      _
    %v42 = vld [vmem:[%s0] sm:$0xff]
    %v43 = vld [vmem:[%s0 + $0x8] sm:$0xff]
    %v44 = vlaneseq
    %v45 = vand.u32 %v44, 127
    %46 = vset.pattern.permute.xlu0 0
    %47 = vperm.xlu0 %46, %v42
    %v48 = vpop.permute.xlu0 %47
    %49 = vset.pattern.permute.xlu0 0
    %50 = vperm.xlu0 %49, %v43
    %v51 = vpop.permute.xlu0 %50
    %vm52 = vcmp.eq.s32.totalorder %v45, %v48
    %vm53 = vcmp.eq.s32.totalorder %v45, %v51
    %v54 = vsel %vm52, 1, 0
    %v55 = vsel %vm53, 1, 0
    %v56 = vcvt.s32.f32 %v54
    %v57 = vcvt.s32.f32 %v55
    %v58 = vld [vmem:[%s1] sm:$0xff]
    %v59 = vld [vmem:[%s1 + $0x8] sm:$0xff]
    %v60 = vld [vmem:[%s1 + $0x10] sm:$0xff]
    %v61 = vld [vmem:[%s1 + $0x18] sm:$0xff]
    %v62 = vld [vmem:[%s1 + $0x20] sm:$0xff]
    %v63 = vld [vmem:[%s1 + $0x28] sm:$0xff]
    %v64 = vld [vmem:[%s1 + $0x30] sm:$0xff]
    %v65 = vld [vmem:[%s1 + $0x38] sm:$0xff]
    %vm66 = vcmask 523264
    %v68 = vsel %vm66, %v56, 0
    %v71 = vsel %vm66, %v57, 0
    %73 = vmatprep.subr.mxu0 0.0
    %74 = vmatpush1.msra.mxu0 %v58
    %75 = vmatprep.subr.mxu0 0.0
    %76 = vmatpush1.msra.mxu0 %v59
    %77 = vmatprep.subr.mxu0 0.0
    %78 = vmatpush1.msra.mxu0 %v60
    %79 = vmatprep.subr.mxu0 0.0
    %80 = vmatpush1.msra.mxu0 %v61
    %81 = vmatprep.subr.mxu0 0.0
    %82 = vmatpush1.msra.mxu0 %v62
    %83 = vmatprep.subr.mxu0 0.0
    %84 = vmatpush1.msra.mxu0 %v63
    %85 = vmatprep.subr.mxu0 0.0
    %86 = vmatpush1.msra.mxu0 %v64
    %87 = vmatprep.subr.mxu0 0.0
    %88 = vmatpush1.msra.mxu0 %v65
    %89 = vmatprep.subr.mxu0 0.0
    %90 = vmatpush1.msra.mxu0 0.0
    %91 = vmatprep.subr.mxu0 0.0
    %92 = vmatpush1.msra.mxu0 0.0
    %93 = vmatprep.subr.mxu0 0.0
    %94 = vmatpush1.msra.mxu0 0.0
    %95 = vmatprep.subr.mxu0 0.0
    %96 = vmatpush1.msra.mxu0 0.0
    %97 = vmatprep.subr.mxu0 0.0
    %98 = vmatpush1.msra.mxu0 0.0
    %99 = vmatprep.subr.mxu0 0.0
    %100 = vmatpush1.msra.mxu0 0.0
    %101 = vmatprep.subr.mxu0 0.0
    %102 = vmatpush1.msra.mxu0 0.0
    %103 = vmatprep.subr.mxu0 0.0
    %104 = vmatpush1.msra.mxu0 0.0
    %105 = vmatprep.subr.mxu0 0.0
    %106 = vmatpush1.msra.mxu0 0.0
    %107 = vmatprep.subr.mxu0 0.0
    %108 = vmatpush1.msra.mxu0 0.0
    %109 = vmatprep.subr.mxu0 0.0
    %110 = vmatpush1.msra.mxu0 0.0
    %111 = vmatprep.subr.mxu0 0.0
    %112 = vmatpush1.msra.mxu0 0.0
    %113 = vmatprep.subr.mxu0 0.0
    %114 = vmatpush1.msra.mxu0 0.0
    %115 = vmatprep.subr.mxu0 0.0
    %116 = vmatpush1.msra.mxu0 0.0
    %117 = vmatprep.subr.mxu0 0.0
    %118 = vmatpush1.msra.mxu0 0.0
    %119 = vmatprep.subr.mxu0 0.0
    %120 = vmatpush1.msra.mxu0 0.0
    %121 = vmatprep.subr.mxu0 0.0
    %122 = vmatpush1.msra.mxu0 0.0
    %123 = vmatprep.subr.mxu0 0.0
    %124 = vmatpush1.msra.mxu0 0.0
    %125 = vmatprep.subr.mxu0 0.0
    %126 = vmatpush1.msra.mxu0 0.0
    %127 = vmatprep.subr.mxu0 0.0
    %128 = vmatpush1.msra.mxu0 0.0
    %129 = vmatprep.subr.mxu0 0.0
    %130 = vmatpush1.msra.mxu0 0.0
    %131 = vmatprep.subr.mxu0 0.0
    %132 = vmatpush1.msra.mxu0 0.0
    %133 = vmatprep.subr.mxu0 0.0
    %134 = vmatpush1.msra.mxu0 0.0
    %135 = vmatprep.subr.mxu0 0.0
    %136 = vmatpush1.msra.mxu0 0.0
    %137 = vmatprep.mubr.f32.mxu0 0.0
    %138 = vmatmul.mubr.f32.gmra.mrb[0].mxu0 %v68
    %v139 = vpop.f32.mrb[0].mxu0
    %v140 = vadd.f32 0.0, %v139
    %v141 = vpop.f32.mrb[0].mxu0
    %142 = vmatprep.mubr.f32.mxu0 0.0
    %143 = vmatmul.mubr.f32.gmra.mrb[0].mxu0 %v71
    %v144 = vpop.f32.mrb[0].mxu0
    %v145 = vadd.f32 0.0, %v144
    %v146 = vpop.f32.mrb[0].mxu0
    %147 = vdwg.mxu0
    %v148 = vld [vmem:[%s2] sm:$0xff]
    %v149 = vld [vmem:[%s2 + $0x8] sm:$0xff]
    %v150 = vld [vmem:[%s2 + $0x10] sm:$0xff]
    %v151 = vld [vmem:[%s2 + $0x18] sm:$0xff]
    %v152 = vld [vmem:[%s4] sm:$0x3]
    %v154 = vlaneseq
    %v155 = vshrl.u32 %v154, 7
    %v156 = vsub.s32 0, %v155
    %v157 = vrot.slane %v152, %v156
    %v158 = vlaneseq
    %v159 = vshrl.u32 %v158, 7
    %v160 = vsub.s32 1, %v159
    %v161 = vrot.slane %v152, %v160
    %vm164 = vcmask 130048
    %v166 = vsel %vm164, %v140, 0
    %v169 = vsel %vm164, %v145, 0
    %171 = vmatprep.subr.mxu0 %v149
    %172 = vmatpush1.msra.mxu0 %v148
    %173 = vmatprep.subr.mxu0 %v151
    %174 = vmatpush1.msra.mxu0 %v150
    %175 = vmatprep.subr.mxu0 0.0
    %176 = vmatpush1.msra.mxu0 0.0
    %177 = vmatprep.subr.mxu0 0.0
    %178 = vmatpush1.msra.mxu0 0.0
    %179 = vmatprep.subr.mxu0 0.0
    %180 = vmatpush1.msra.mxu0 0.0
    %181 = vmatprep.subr.mxu0 0.0
    %182 = vmatpush1.msra.mxu0 0.0
    %183 = vmatprep.subr.mxu0 0.0
    %184 = vmatpush1.msra.mxu0 0.0
    %185 = vmatprep.subr.mxu0 0.0
    %186 = vmatpush1.msra.mxu0 0.0
    %187 = vmatprep.subr.mxu0 0.0
    %188 = vmatpush1.msra.mxu0 0.0
    %189 = vmatprep.subr.mxu0 0.0
    %190 = vmatpush1.msra.mxu0 0.0
    %191 = vmatprep.subr.mxu0 0.0
    %192 = vmatpush1.msra.mxu0 0.0
    %193 = vmatprep.subr.mxu0 0.0
    %194 = vmatpush1.msra.mxu0 0.0
    %195 = vmatprep.subr.mxu0 0.0
    %196 = vmatpush1.msra.mxu0 0.0
    %197 = vmatprep.subr.mxu0 0.0
    %198 = vmatpush1.msra.mxu0 0.0
    %199 = vmatprep.subr.mxu0 0.0
    %200 = vmatpush1.msra.mxu0 0.0
    %201 = vmatprep.subr.mxu0 0.0
    %202 = vmatpush1.msra.mxu0 0.0
    %203 = vmatprep.subr.mxu0 0.0
    %204 = vmatpush1.msra.mxu0 0.0
    %205 = vmatprep.subr.mxu0 0.0
    %206 = vmatpush1.msra.mxu0 0.0
    %207 = vmatprep.subr.mxu0 0.0
    %208 = vmatpush1.msra.mxu0 0.0
    %209 = vmatprep.subr.mxu0 0.0
    %210 = vmatpush1.msra.mxu0 0.0
    %211 = vmatprep.subr.mxu0 0.0
    %212 = vmatpush1.msra.mxu0 0.0
    %213 = vmatprep.subr.mxu0 0.0
    %214 = vmatpush1.msra.mxu0 0.0
    %215 = vmatprep.subr.mxu0 0.0
    %216 = vmatpush1.msra.mxu0 0.0
    %217 = vmatprep.subr.mxu0 0.0
    %218 = vmatpush1.msra.mxu0 0.0
    %219 = vmatprep.subr.mxu0 0.0
    %220 = vmatpush1.msra.mxu0 0.0
    %221 = vmatprep.subr.mxu0 0.0
    %222 = vmatpush1.msra.mxu0 0.0
    %223 = vmatprep.subr.mxu0 0.0
    %224 = vmatpush1.msra.mxu0 0.0
    %225 = vmatprep.subr.mxu0 0.0
    %226 = vmatpush1.msra.mxu0 0.0
    %227 = vmatprep.subr.mxu0 0.0
    %228 = vmatpush1.msra.mxu0 0.0
    %229 = vmatprep.subr.mxu0 0.0
    %230 = vmatpush1.msra.mxu0 0.0
    %231 = vmatprep.subr.mxu0 0.0
    %232 = vmatpush1.msra.mxu0 0.0
    %233 = vmatprep.subr.mxu0 0.0
    %234 = vmatpush1.msra.mxu0 0.0
    %235 = vmatprep.mubr.f32.mxu0 0.0
    %236 = vmatmul.mubr.f32.gmra.mrb[0].mxu0 %v166
    %v237 = vpop.f32.mrb[0].mxu0
    %v238 = vadd.f32 %v157, %v237
    %v239 = vpop.f32.mrb[0].mxu0
    %v240 = vadd.f32 %v161, %v239
    %241 = vmatprep.mubr.f32.mxu0 0.0
    %242 = vmatmul.mubr.f32.gmra.mrb[0].mxu0 %v169
    %v243 = vpop.f32.mrb[0].mxu0
    %v244 = vadd.f32 %v157, %v243
    %v245 = vpop.f32.mrb[0].mxu0
    %v246 = vadd.f32 %v161, %v245
    %247 = vdwg.mxu0
    %v249 = vrot.slane %v246, 4
    %vm251 = vcmask 1041408
    %v252 = vsel %vm251, %v238, %v249
    %v254 = vrot.slane %v238, 2
    %v256 = vrot.slane %v246, 2
    %v258 = vsel %vm251, %v254, %v256
    %v259 = vrot.slane %v238, 4
    %v261 = vsel %vm251, %v259, %v246
    %v262 = vrot.slane %v238, 6
    %v264 = vrot.slane %v246, 6
    %v266 = vsel %vm251, %v262, %v264
    %v268 = vrot.slane %v240, 4
    %v270 = vsel %vm251, %v244, %v268
    %v272 = vrot.slane %v244, 2
    %v274 = vrot.slane %v240, 2
    %v276 = vsel %vm251, %v272, %v274
    %v277 = vrot.slane %v244, 4
    %v279 = vsel %vm251, %v277, %v240
    %v280 = vrot.slane %v244, 6
    %v282 = vrot.slane %v240, 6
    %v284 = vsel %vm251, %v280, %v282
    %v285 = vld [vmem:[%s3] sm:$0xff]
    %v286 = vld [vmem:[%s3 + $0x8] sm:$0xff]
    %v287 = vld [vmem:[%s3 + $0x10] sm:$0xff]
    %v288 = vld [vmem:[%s3 + $0x18] sm:$0xff]
    %v289 = vld [vmem:[%s3 + $0x20] sm:$0xff]
    %v290 = vld [vmem:[%s3 + $0x28] sm:$0xff]
    %v291 = vld [vmem:[%s3 + $0x30] sm:$0xff]
    %v292 = vld [vmem:[%s3 + $0x38] sm:$0xff]
    %v293 = vlaneseq
    %v294 = vshrl.u32 %v293, 7
    %vm295 = vcmp.lt.s32.totalorder %v294, 2
    %v296 = vxor.u32 %v252, 2147483648
    %v297 = vmul.f32 %v296, 1.442695
    %v298 = vpow.pop %v297
    %v299 = vadd.f32 %v298, 1.0
    %v300 = vrcp.pop %v299
    %v301 = vmul.f32 1.0, %v300
    %v302 = vtanh.pop %v252
    %304 = vrot.lane.b32.xlu0 %v302, 64
    %v305 = vpop.permute.xlu0 %304
    %v307 = vmul.f32 %v301, %v305
    %v308 = vtanh.pop %v307
    %310 = vrot.lane.b32.xlu0 %v308, 96
    %v311 = vpop.permute.xlu0 %310
    %v313 = vmul.f32 %v301, %v311
    %315 = vrot.lane.b32.xlu0 %v313, 32
    %v316 = vpop.permute.xlu0 %315
    %vm317 = vcmask 261120
    %v318 = vsel %vm317, %v316, 0
    %320 = vmatprep.subr.mxu0 %v286
    %321 = vmatpush1.msra.mxu0 %v285
    %322 = vmatprep.subr.mxu0 %v288
    %323 = vmatpush1.msra.mxu0 %v287
    %324 = vmatprep.subr.mxu0 %v290
    %325 = vmatpush1.msra.mxu0 %v289
    %326 = vmatprep.subr.mxu0 %v292
    %327 = vmatpush1.msra.mxu0 %v291
    %328 = vmatprep.subr.mxu0 0.0
    %329 = vmatpush1.msra.mxu0 0.0
    %330 = vmatprep.subr.mxu0 0.0
    %331 = vmatpush1.msra.mxu0 0.0
    %332 = vmatprep.subr.mxu0 0.0
    %333 = vmatpush1.msra.mxu0 0.0
    %334 = vmatprep.subr.mxu0 0.0
    %335 = vmatpush1.msra.mxu0 0.0
    %336 = vmatprep.subr.mxu0 0.0
    %337 = vmatpush1.msra.mxu0 0.0
    %338 = vmatprep.subr.mxu0 0.0
    %339 = vmatpush1.msra.mxu0 0.0
    %340 = vmatprep.subr.mxu0 0.0
    %341 = vmatpush1.msra.mxu0 0.0
    %342 = vmatprep.subr.mxu0 0.0
    %343 = vmatpush1.msra.mxu0 0.0
    %344 = vmatprep.subr.mxu0 0.0
    %345 = vmatpush1.msra.mxu0 0.0
    %346 = vmatprep.subr.mxu0 0.0
    %347 = vmatpush1.msra.mxu0 0.0
    %348 = vmatprep.subr.mxu0 0.0
    %349 = vmatpush1.msra.mxu0 0.0
    %350 = vmatprep.subr.mxu0 0.0
    %351 = vmatpush1.msra.mxu0 0.0
    %352 = vmatprep.subr.mxu0 0.0
    %353 = vmatpush1.msra.mxu0 0.0
    %354 = vmatprep.subr.mxu0 0.0
    %355 = vmatpush1.msra.mxu0 0.0
    %356 = vmatprep.subr.mxu0 0.0
    %357 = vmatpush1.msra.mxu0 0.0
    %358 = vmatprep.subr.mxu0 0.0
    %359 = vmatpush1.msra.mxu0 0.0
    %360 = vmatprep.subr.mxu0 0.0
    %361 = vmatpush1.msra.mxu0 0.0
    %362 = vmatprep.subr.mxu0 0.0
    %363 = vmatpush1.msra.mxu0 0.0
    %364 = vmatprep.subr.mxu0 0.0
    %365 = vmatpush1.msra.mxu0 0.0
    %366 = vmatprep.subr.mxu0 0.0
    %367 = vmatpush1.msra.mxu0 0.0
    %368 = vmatprep.subr.mxu0 0.0
    %369 = vmatpush1.msra.mxu0 0.0
    %370 = vmatprep.subr.mxu0 0.0
    %371 = vmatpush1.msra.mxu0 0.0
    %372 = vmatprep.subr.mxu0 0.0
    %373 = vmatpush1.msra.mxu0 0.0
    %374 = vmatprep.subr.mxu0 0.0
    %375 = vmatpush1.msra.mxu0 0.0
    %376 = vmatprep.subr.mxu0 0.0
    %377 = vmatpush1.msra.mxu0 0.0
    %378 = vmatprep.subr.mxu0 0.0
    %379 = vmatpush1.msra.mxu0 0.0
    %380 = vmatprep.subr.mxu0 0.0
    %381 = vmatpush1.msra.mxu0 0.0
    %382 = vmatprep.subr.mxu0 0.0
    %383 = vmatpush1.msra.mxu0 0.0
    %384 = vmatprep.mubr.f32.mxu0 0.0
    %385 = vmatmul.mubr.f32.gmra.mrb[0].mxu0 %v318
    %v386 = vpop.f32.mrb[0].mxu0
    %v387 = vadd.f32 0.0, %v386
    %v388 = vpop.f32.mrb[0].mxu0
    %v389 = vadd.f32 0.0, %v388
    %390 = vdwg.mxu0
    %v391 = vsel %vm295, 1, 0
    %vm392 = vcmp.eq.s32.totalorder %v391, 1
    %v393 = vsel %vm392, %v387, %v389
    %v394 = vadd.f32 %v258, %v393
    %v395 = vxor.u32 %v394, 2147483648
    %v396 = vmul.f32 %v395, 1.442695
    %v397 = vpow.pop %v396
    %v398 = vadd.f32 %v397, 1.0
    %v399 = vrcp.pop %v398
    %v400 = vmul.f32 1.0, %v399
    %v401 = vtanh.pop %v394
    %403 = vrot.lane.b32.xlu0 %v307, 32
    %v404 = vpop.permute.xlu0 %403
    %v406 = vmul.f32 %v400, %v404
    %408 = vrot.lane.b32.xlu0 %v401, 64
    %v409 = vpop.permute.xlu0 %408
    %v411 = vmul.f32 %v400, %v409
    %413 = vrot.lane.b32.xlu0 %v411, 32
    %v414 = vpop.permute.xlu0 %413
    %v416 = vadd.f32 %v406, %v414
    %v417 = vtanh.pop %v416
    %419 = vrot.lane.b32.xlu0 %v417, 64
    %v420 = vpop.permute.xlu0 %419
    %v422 = vmul.f32 %v400, %v420
    %424 = vrot.lane.b32.xlu0 %v422, 32
    %v425 = vpop.permute.xlu0 %424
    %v426 = vsel %vm317, %v425, 0
    %428 = vmatprep.subr.mxu0 %v286
    %429 = vmatpush1.msra.mxu0 %v285
    %430 = vmatprep.subr.mxu0 %v288
    %431 = vmatpush1.msra.mxu0 %v287
    %432 = vmatprep.subr.mxu0 %v290
    %433 = vmatpush1.msra.mxu0 %v289
    %434 = vmatprep.subr.mxu0 %v292
    %435 = vmatpush1.msra.mxu0 %v291
    %436 = vmatprep.subr.mxu0 0.0
    %437 = vmatpush1.msra.mxu0 0.0
    %438 = vmatprep.subr.mxu0 0.0
    %439 = vmatpush1.msra.mxu0 0.0
    %440 = vmatprep.subr.mxu0 0.0
    %441 = vmatpush1.msra.mxu0 0.0
    %442 = vmatprep.subr.mxu0 0.0
    %443 = vmatpush1.msra.mxu0 0.0
    %444 = vmatprep.subr.mxu0 0.0
    %445 = vmatpush1.msra.mxu0 0.0
    %446 = vmatprep.subr.mxu0 0.0
    %447 = vmatpush1.msra.mxu0 0.0
    %448 = vmatprep.subr.mxu0 0.0
    %449 = vmatpush1.msra.mxu0 0.0
    %450 = vmatprep.subr.mxu0 0.0
    %451 = vmatpush1.msra.mxu0 0.0
    %452 = vmatprep.subr.mxu0 0.0
    %453 = vmatpush1.msra.mxu0 0.0
    %454 = vmatprep.subr.mxu0 0.0
    %455 = vmatpush1.msra.mxu0 0.0
    %456 = vmatprep.subr.mxu0 0.0
    %457 = vmatpush1.msra.mxu0 0.0
    %458 = vmatprep.subr.mxu0 0.0
    %459 = vmatpush1.msra.mxu0 0.0
    %460 = vmatprep.subr.mxu0 0.0
    %461 = vmatpush1.msra.mxu0 0.0
    %462 = vmatprep.subr.mxu0 0.0
    %463 = vmatpush1.msra.mxu0 0.0
    %464 = vmatprep.subr.mxu0 0.0
    %465 = vmatpush1.msra.mxu0 0.0
    %466 = vmatprep.subr.mxu0 0.0
    %467 = vmatpush1.msra.mxu0 0.0
    %468 = vmatprep.subr.mxu0 0.0
    %469 = vmatpush1.msra.mxu0 0.0
    %470 = vmatprep.subr.mxu0 0.0
    %471 = vmatpush1.msra.mxu0 0.0
    %472 = vmatprep.subr.mxu0 0.0
    %473 = vmatpush1.msra.mxu0 0.0
    %474 = vmatprep.subr.mxu0 0.0
    %475 = vmatpush1.msra.mxu0 0.0
    %476 = vmatprep.subr.mxu0 0.0
    %477 = vmatpush1.msra.mxu0 0.0
    %478 = vmatprep.subr.mxu0 0.0
    %479 = vmatpush1.msra.mxu0 0.0
    %480 = vmatprep.subr.mxu0 0.0
    %481 = vmatpush1.msra.mxu0 0.0
    %482 = vmatprep.subr.mxu0 0.0
    %483 = vmatpush1.msra.mxu0 0.0
    %484 = vmatprep.subr.mxu0 0.0
    %485 = vmatpush1.msra.mxu0 0.0
    %486 = vmatprep.subr.mxu0 0.0
    %487 = vmatpush1.msra.mxu0 0.0
    %488 = vmatprep.subr.mxu0 0.0
    %489 = vmatpush1.msra.mxu0 0.0
    %490 = vmatprep.subr.mxu0 0.0
    %491 = vmatpush1.msra.mxu0 0.0
    %492 = vmatprep.mubr.f32.mxu0 0.0
    %493 = vmatmul.mubr.f32.gmra.mrb[0].mxu0 %v426
    %v494 = vpop.f32.mrb[0].mxu0
    %v495 = vadd.f32 0.0, %v494
    %v496 = vpop.f32.mrb[0].mxu0
    %v497 = vadd.f32 0.0, %v496
    %498 = vdwg.mxu0
    %v499 = vsel %vm392, %v495, %v497
    %v500 = vadd.f32 %v261, %v499
    %v501 = vxor.u32 %v500, 2147483648
    %v502 = vmul.f32 %v501, 1.442695
    %v503 = vpow.pop %v502
    %v504 = vadd.f32 %v503, 1.0
    %v505 = vrcp.pop %v504
    %v506 = vmul.f32 1.0, %v505
    %v507 = vtanh.pop %v500
    %v508 = vmul.f32 %v506, %v416
    %510 = vrot.lane.b32.xlu0 %v507, 64
    %v511 = vpop.permute.xlu0 %510
    %v513 = vmul.f32 %v506, %v511
    %515 = vrot.lane.b32.xlu0 %v513, 32
    %v516 = vpop.permute.xlu0 %515
    %v518 = vadd.f32 %v508, %v516
    %v519 = vtanh.pop %v518
    %521 = vrot.lane.b32.xlu0 %v519, 64
    %v522 = vpop.permute.xlu0 %521
    %v524 = vmul.f32 %v506, %v522
    %526 = vrot.lane.b32.xlu0 %v524, 32
    %v527 = vpop.permute.xlu0 %526
    %v528 = vsel %vm317, %v527, 0
    %530 = vmatprep.subr.mxu0 %v286
    %531 = vmatpush1.msra.mxu0 %v285
    %532 = vmatprep.subr.mxu0 %v288
    %533 = vmatpush1.msra.mxu0 %v287
    %534 = vmatprep.subr.mxu0 %v290
    %535 = vmatpush1.msra.mxu0 %v289
    %536 = vmatprep.subr.mxu0 %v292
    %537 = vmatpush1.msra.mxu0 %v291
    %538 = vmatprep.subr.mxu0 0.0
    %539 = vmatpush1.msra.mxu0 0.0
    %540 = vmatprep.subr.mxu0 0.0
    %541 = vmatpush1.msra.mxu0 0.0
    %542 = vmatprep.subr.mxu0 0.0
    %543 = vmatpush1.msra.mxu0 0.0
    %544 = vmatprep.subr.mxu0 0.0
    %545 = vmatpush1.msra.mxu0 0.0
    %546 = vmatprep.subr.mxu0 0.0
    %547 = vmatpush1.msra.mxu0 0.0
    %548 = vmatprep.subr.mxu0 0.0
    %549 = vmatpush1.msra.mxu0 0.0
    %550 = vmatprep.subr.mxu0 0.0
    %551 = vmatpush1.msra.mxu0 0.0
    %552 = vmatprep.subr.mxu0 0.0
    %553 = vmatpush1.msra.mxu0 0.0
    %554 = vmatprep.subr.mxu0 0.0
    %555 = vmatpush1.msra.mxu0 0.0
    %556 = vmatprep.subr.mxu0 0.0
    %557 = vmatpush1.msra.mxu0 0.0
    %558 = vmatprep.subr.mxu0 0.0
    %559 = vmatpush1.msra.mxu0 0.0
    %560 = vmatprep.subr.mxu0 0.0
    %561 = vmatpush1.msra.mxu0 0.0
    %562 = vmatprep.subr.mxu0 0.0
    %563 = vmatpush1.msra.mxu0 0.0
    %564 = vmatprep.subr.mxu0 0.0
    %565 = vmatpush1.msra.mxu0 0.0
    %566 = vmatprep.subr.mxu0 0.0
    %567 = vmatpush1.msra.mxu0 0.0
    %568 = vmatprep.subr.mxu0 0.0
    %569 = vmatpush1.msra.mxu0 0.0
    %570 = vmatprep.subr.mxu0 0.0
    %571 = vmatpush1.msra.mxu0 0.0
    %572 = vmatprep.subr.mxu0 0.0
    %573 = vmatpush1.msra.mxu0 0.0
    %574 = vmatprep.subr.mxu0 0.0
    %575 = vmatpush1.msra.mxu0 0.0
    %576 = vmatprep.subr.mxu0 0.0
    %577 = vmatpush1.msra.mxu0 0.0
    %578 = vmatprep.subr.mxu0 0.0
    %579 = vmatpush1.msra.mxu0 0.0
    %580 = vmatprep.subr.mxu0 0.0
    %581 = vmatpush1.msra.mxu0 0.0
    %582 = vmatprep.subr.mxu0 0.0
    %583 = vmatpush1.msra.mxu0 0.0
    %584 = vmatprep.subr.mxu0 0.0
    %585 = vmatpush1.msra.mxu0 0.0
    %586 = vmatprep.subr.mxu0 0.0
    %587 = vmatpush1.msra.mxu0 0.0
    %588 = vmatprep.subr.mxu0 0.0
    %589 = vmatpush1.msra.mxu0 0.0
    %590 = vmatprep.subr.mxu0 0.0
    %591 = vmatpush1.msra.mxu0 0.0
    %592 = vmatprep.subr.mxu0 0.0
    %593 = vmatpush1.msra.mxu0 0.0
    %594 = vmatprep.mubr.f32.mxu0 0.0
    %595 = vmatmul.mubr.f32.gmra.mrb[0].mxu0 %v528
    %v596 = vpop.f32.mrb[0].mxu0
    %v597 = vadd.f32 0.0, %v596
    %v598 = vpop.f32.mrb[0].mxu0
    %v599 = vadd.f32 0.0, %v598
    %600 = vdwg.mxu0
    %v601 = vsel %vm392, %v597, %v599
    %v602 = vadd.f32 %v266, %v601
    %v603 = vxor.u32 %v602, 2147483648
    %v604 = vmul.f32 %v603, 1.442695
    %v605 = vpow.pop %v604
    %v606 = vadd.f32 %v605, 1.0
    %v607 = vrcp.pop %v606
    %v608 = vmul.f32 1.0, %v607
    %v609 = vtanh.pop %v602
    %v610 = vmul.f32 %v608, %v518
    %612 = vrot.lane.b32.xlu0 %v609, 64
    %v613 = vpop.permute.xlu0 %612
    %v615 = vmul.f32 %v608, %v613
    %617 = vrot.lane.b32.xlu0 %v615, 32
    %v618 = vpop.permute.xlu0 %617
    %v620 = vadd.f32 %v610, %v618
    %v621 = vtanh.pop %v620
    %623 = vrot.lane.b32.xlu0 %v621, 64
    %v624 = vpop.permute.xlu0 %623
    %v626 = vmul.f32 %v608, %v624
    %628 = vrot.lane.b32.xlu0 %v626, 32
    %v629 = vpop.permute.xlu0 %628
    %v630 = vsel %vm317, %v629, 0
    %632 = vmatprep.subr.mxu0 %v286
    %633 = vmatpush1.msra.mxu0 %v285
    %634 = vmatprep.subr.mxu0 %v288
    %635 = vmatpush1.msra.mxu0 %v287
    %636 = vmatprep.subr.mxu0 %v290
    %637 = vmatpush1.msra.mxu0 %v289
    %638 = vmatprep.subr.mxu0 %v292
    %639 = vmatpush1.msra.mxu0 %v291
    %640 = vmatprep.subr.mxu0 0.0
    %641 = vmatpush1.msra.mxu0 0.0
    %642 = vmatprep.subr.mxu0 0.0
    %643 = vmatpush1.msra.mxu0 0.0
    %644 = vmatprep.subr.mxu0 0.0
    %645 = vmatpush1.msra.mxu0 0.0
    %646 = vmatprep.subr.mxu0 0.0
    %647 = vmatpush1.msra.mxu0 0.0
    %648 = vmatprep.subr.mxu0 0.0
    %649 = vmatpush1.msra.mxu0 0.0
    %650 = vmatprep.subr.mxu0 0.0
    %651 = vmatpush1.msra.mxu0 0.0
    %652 = vmatprep.subr.mxu0 0.0
    %653 = vmatpush1.msra.mxu0 0.0
    %654 = vmatprep.subr.mxu0 0.0
    %655 = vmatpush1.msra.mxu0 0.0
    %656 = vmatprep.subr.mxu0 0.0
    %657 = vmatpush1.msra.mxu0 0.0
    %658 = vmatprep.subr.mxu0 0.0
    %659 = vmatpush1.msra.mxu0 0.0
    %660 = vmatprep.subr.mxu0 0.0
    %661 = vmatpush1.msra.mxu0 0.0
    %662 = vmatprep.subr.mxu0 0.0
    %663 = vmatpush1.msra.mxu0 0.0
    %664 = vmatprep.subr.mxu0 0.0
    %665 = vmatpush1.msra.mxu0 0.0
    %666 = vmatprep.subr.mxu0 0.0
    %667 = vmatpush1.msra.mxu0 0.0
    %668 = vmatprep.subr.mxu0 0.0
    %669 = vmatpush1.msra.mxu0 0.0
    %670 = vmatprep.subr.mxu0 0.0
    %671 = vmatpush1.msra.mxu0 0.0
    %672 = vmatprep.subr.mxu0 0.0
    %673 = vmatpush1.msra.mxu0 0.0
    %674 = vmatprep.subr.mxu0 0.0
    %675 = vmatpush1.msra.mxu0 0.0
    %676 = vmatprep.subr.mxu0 0.0
    %677 = vmatpush1.msra.mxu0 0.0
    %678 = vmatprep.subr.mxu0 0.0
    %679 = vmatpush1.msra.mxu0 0.0
    %680 = vmatprep.subr.mxu0 0.0
    %681 = vmatpush1.msra.mxu0 0.0
    %682 = vmatprep.subr.mxu0 0.0
    %683 = vmatpush1.msra.mxu0 0.0
    %684 = vmatprep.subr.mxu0 0.0
    %685 = vmatpush1.msra.mxu0 0.0
    %686 = vmatprep.subr.mxu0 0.0
    %687 = vmatpush1.msra.mxu0 0.0
    %688 = vmatprep.subr.mxu0 0.0
    %689 = vmatpush1.msra.mxu0 0.0
    %690 = vmatprep.subr.mxu0 0.0
    %691 = vmatpush1.msra.mxu0 0.0
    %692 = vmatprep.subr.mxu0 0.0
    %693 = vmatpush1.msra.mxu0 0.0
    %694 = vmatprep.subr.mxu0 0.0
    %695 = vmatpush1.msra.mxu0 0.0
    %696 = vmatprep.mubr.f32.mxu0 0.0
    %697 = vmatmul.mubr.f32.gmra.mrb[0].mxu0 %v630
    %v698 = vpop.f32.mrb[0].mxu0
    %v699 = vadd.f32 0.0, %v698
    %v700 = vpop.f32.mrb[0].mxu0
    %v701 = vadd.f32 0.0, %v700
    %702 = vdwg.mxu0
    %v703 = vsel %vm392, %v699, %v701
    %v704 = vadd.f32 %v270, %v703
    %v705 = vxor.u32 %v704, 2147483648
    %v706 = vmul.f32 %v705, 1.442695
    %v707 = vpow.pop %v706
    %v708 = vadd.f32 %v707, 1.0
    %v709 = vrcp.pop %v708
    %v710 = vmul.f32 1.0, %v709
    %v711 = vtanh.pop %v704
    %v712 = vmul.f32 %v710, %v620
    %714 = vrot.lane.b32.xlu0 %v711, 64
    %v715 = vpop.permute.xlu0 %714
    %v717 = vmul.f32 %v710, %v715
    %719 = vrot.lane.b32.xlu0 %v717, 32
    %v720 = vpop.permute.xlu0 %719
    %v722 = vadd.f32 %v712, %v720
    %v723 = vtanh.pop %v722
    %725 = vrot.lane.b32.xlu0 %v723, 64
    %v726 = vpop.permute.xlu0 %725
    %v728 = vmul.f32 %v710, %v726
    %730 = vrot.lane.b32.xlu0 %v728, 32
    %v731 = vpop.permute.xlu0 %730
    %v732 = vsel %vm317, %v731, 0
    %734 = vmatprep.subr.mxu0 %v286
    %735 = vmatpush1.msra.mxu0 %v285
    %736 = vmatprep.subr.mxu0 %v288
    %737 = vmatpush1.msra.mxu0 %v287
    %738 = vmatprep.subr.mxu0 %v290
    %739 = vmatpush1.msra.mxu0 %v289
    %740 = vmatprep.subr.mxu0 %v292
    %741 = vmatpush1.msra.mxu0 %v291
    %742 = vmatprep.subr.mxu0 0.0
    %743 = vmatpush1.msra.mxu0 0.0
    %744 = vmatprep.subr.mxu0 0.0
    %745 = vmatpush1.msra.mxu0 0.0
    %746 = vmatprep.subr.mxu0 0.0
    %747 = vmatpush1.msra.mxu0 0.0
    %748 = vmatprep.subr.mxu0 0.0
    %749 = vmatpush1.msra.mxu0 0.0
    %750 = vmatprep.subr.mxu0 0.0
    %751 = vmatpush1.msra.mxu0 0.0
    %752 = vmatprep.subr.mxu0 0.0
    %753 = vmatpush1.msra.mxu0 0.0
    %754 = vmatprep.subr.mxu0 0.0
    %755 = vmatpush1.msra.mxu0 0.0
    %756 = vmatprep.subr.mxu0 0.0
    %757 = vmatpush1.msra.mxu0 0.0
    %758 = vmatprep.subr.mxu0 0.0
    %759 = vmatpush1.msra.mxu0 0.0
    %760 = vmatprep.subr.mxu0 0.0
    %761 = vmatpush1.msra.mxu0 0.0
    %762 = vmatprep.subr.mxu0 0.0
    %763 = vmatpush1.msra.mxu0 0.0
    %764 = vmatprep.subr.mxu0 0.0
    %765 = vmatpush1.msra.mxu0 0.0
    %766 = vmatprep.subr.mxu0 0.0
    %767 = vmatpush1.msra.mxu0 0.0
    %768 = vmatprep.subr.mxu0 0.0
    %769 = vmatpush1.msra.mxu0 0.0
    %770 = vmatprep.subr.mxu0 0.0
    %771 = vmatpush1.msra.mxu0 0.0
    %772 = vmatprep.subr.mxu0 0.0
    %773 = vmatpush1.msra.mxu0 0.0
    %774 = vmatprep.subr.mxu0 0.0
    %775 = vmatpush1.msra.mxu0 0.0
    %776 = vmatprep.subr.mxu0 0.0
    %777 = vmatpush1.msra.mxu0 0.0
    %778 = vmatprep.subr.mxu0 0.0
    %779 = vmatpush1.msra.mxu0 0.0
    %780 = vmatprep.subr.mxu0 0.0
    %781 = vmatpush1.msra.mxu0 0.0
    %782 = vmatprep.subr.mxu0 0.0
    %783 = vmatpush1.msra.mxu0 0.0
    %784 = vmatprep.subr.mxu0 0.0
    %785 = vmatpush1.msra.mxu0 0.0
    %786 = vmatprep.subr.mxu0 0.0
    %787 = vmatpush1.msra.mxu0 0.0
    %788 = vmatprep.subr.mxu0 0.0
    %789 = vmatpush1.msra.mxu0 0.0
    %790 = vmatprep.subr.mxu0 0.0
    %791 = vmatpush1.msra.mxu0 0.0
    %792 = vmatprep.subr.mxu0 0.0
    %793 = vmatpush1.msra.mxu0 0.0
    %794 = vmatprep.subr.mxu0 0.0
    %795 = vmatpush1.msra.mxu0 0.0
    %796 = vmatprep.subr.mxu0 0.0
    %797 = vmatpush1.msra.mxu0 0.0
    %798 = vmatprep.mubr.f32.mxu0 0.0
    %799 = vmatmul.mubr.f32.gmra.mrb[0].mxu0 %v732
    %v800 = vpop.f32.mrb[0].mxu0
    %v801 = vadd.f32 0.0, %v800
    %v802 = vpop.f32.mrb[0].mxu0
    %v803 = vadd.f32 0.0, %v802
    %804 = vdwg.mxu0
    %v805 = vsel %vm392, %v801, %v803
    %v806 = vadd.f32 %v276, %v805
    %v807 = vxor.u32 %v806, 2147483648
    %v808 = vmul.f32 %v807, 1.442695
    %v809 = vpow.pop %v808
    %v810 = vadd.f32 %v809, 1.0
    %v811 = vrcp.pop %v810
    %v812 = vmul.f32 1.0, %v811
    %v813 = vtanh.pop %v806
    %v814 = vmul.f32 %v812, %v722
    %816 = vrot.lane.b32.xlu0 %v813, 64
    %v817 = vpop.permute.xlu0 %816
    %v819 = vmul.f32 %v812, %v817
    %821 = vrot.lane.b32.xlu0 %v819, 32
    %v822 = vpop.permute.xlu0 %821
    %v824 = vadd.f32 %v814, %v822
    %v825 = vtanh.pop %v824
    %827 = vrot.lane.b32.xlu0 %v825, 64
    %v828 = vpop.permute.xlu0 %827
    %v830 = vmul.f32 %v812, %v828
    %832 = vrot.lane.b32.xlu0 %v830, 32
    %v833 = vpop.permute.xlu0 %832
    %v834 = vsel %vm317, %v833, 0
    %836 = vmatprep.subr.mxu0 %v286
    %837 = vmatpush1.msra.mxu0 %v285
    %838 = vmatprep.subr.mxu0 %v288
    %839 = vmatpush1.msra.mxu0 %v287
    %840 = vmatprep.subr.mxu0 %v290
    %841 = vmatpush1.msra.mxu0 %v289
    %842 = vmatprep.subr.mxu0 %v292
    %843 = vmatpush1.msra.mxu0 %v291
    %844 = vmatprep.subr.mxu0 0.0
    %845 = vmatpush1.msra.mxu0 0.0
    %846 = vmatprep.subr.mxu0 0.0
    %847 = vmatpush1.msra.mxu0 0.0
    %848 = vmatprep.subr.mxu0 0.0
    %849 = vmatpush1.msra.mxu0 0.0
    %850 = vmatprep.subr.mxu0 0.0
    %851 = vmatpush1.msra.mxu0 0.0
    %852 = vmatprep.subr.mxu0 0.0
    %853 = vmatpush1.msra.mxu0 0.0
    %854 = vmatprep.subr.mxu0 0.0
    %855 = vmatpush1.msra.mxu0 0.0
    %856 = vmatprep.subr.mxu0 0.0
    %857 = vmatpush1.msra.mxu0 0.0
    %858 = vmatprep.subr.mxu0 0.0
    %859 = vmatpush1.msra.mxu0 0.0
    %860 = vmatprep.subr.mxu0 0.0
    %861 = vmatpush1.msra.mxu0 0.0
    %862 = vmatprep.subr.mxu0 0.0
    %863 = vmatpush1.msra.mxu0 0.0
    %864 = vmatprep.subr.mxu0 0.0
    %865 = vmatpush1.msra.mxu0 0.0
    %866 = vmatprep.subr.mxu0 0.0
    %867 = vmatpush1.msra.mxu0 0.0
    %868 = vmatprep.subr.mxu0 0.0
    %869 = vmatpush1.msra.mxu0 0.0
    %870 = vmatprep.subr.mxu0 0.0
    %871 = vmatpush1.msra.mxu0 0.0
    %872 = vmatprep.subr.mxu0 0.0
    %873 = vmatpush1.msra.mxu0 0.0
    %874 = vmatprep.subr.mxu0 0.0
    %875 = vmatpush1.msra.mxu0 0.0
    %876 = vmatprep.subr.mxu0 0.0
    %877 = vmatpush1.msra.mxu0 0.0
    %878 = vmatprep.subr.mxu0 0.0
    %879 = vmatpush1.msra.mxu0 0.0
    %880 = vmatprep.subr.mxu0 0.0
    %881 = vmatpush1.msra.mxu0 0.0
    %882 = vmatprep.subr.mxu0 0.0
    %883 = vmatpush1.msra.mxu0 0.0
    %884 = vmatprep.subr.mxu0 0.0
    %885 = vmatpush1.msra.mxu0 0.0
    %886 = vmatprep.subr.mxu0 0.0
    %887 = vmatpush1.msra.mxu0 0.0
    %888 = vmatprep.subr.mxu0 0.0
    %889 = vmatpush1.msra.mxu0 0.0
    %890 = vmatprep.subr.mxu0 0.0
    %891 = vmatpush1.msra.mxu0 0.0
    %892 = vmatprep.subr.mxu0 0.0
    %893 = vmatpush1.msra.mxu0 0.0
    %894 = vmatprep.subr.mxu0 0.0
    %895 = vmatpush1.msra.mxu0 0.0
    %896 = vmatprep.subr.mxu0 0.0
    %897 = vmatpush1.msra.mxu0 0.0
    %898 = vmatprep.subr.mxu0 0.0
    %899 = vmatpush1.msra.mxu0 0.0
    %900 = vmatprep.mubr.f32.mxu0 0.0
    %901 = vmatmul.mubr.f32.gmra.mrb[0].mxu0 %v834
    %v902 = vpop.f32.mrb[0].mxu0
    %v903 = vadd.f32 0.0, %v902
    %v904 = vpop.f32.mrb[0].mxu0
    %v905 = vadd.f32 0.0, %v904
    %906 = vdwg.mxu0
    %v907 = vsel %vm392, %v903, %v905
    %v908 = vadd.f32 %v279, %v907
    %v909 = vxor.u32 %v908, 2147483648
    %v910 = vmul.f32 %v909, 1.442695
    %v911 = vpow.pop %v910
    %v912 = vadd.f32 %v911, 1.0
    %v913 = vrcp.pop %v912
    %v914 = vmul.f32 1.0, %v913
    %v915 = vtanh.pop %v908
    %v916 = vmul.f32 %v914, %v824
    %918 = vrot.lane.b32.xlu0 %v915, 64
    %v919 = vpop.permute.xlu0 %918
    %v921 = vmul.f32 %v914, %v919
    %923 = vrot.lane.b32.xlu0 %v921, 32
    %v924 = vpop.permute.xlu0 %923
    %v926 = vadd.f32 %v916, %v924
    %v927 = vtanh.pop %v926
    %929 = vrot.lane.b32.xlu0 %v927, 64
    %v930 = vpop.permute.xlu0 %929
    %v932 = vmul.f32 %v914, %v930
    %934 = vrot.lane.b32.xlu0 %v932, 32
    %v935 = vpop.permute.xlu0 %934
    %v936 = vsel %vm317, %v935, 0
    %938 = vmatprep.subr.mxu0 %v286
    %939 = vmatpush1.msra.mxu0 %v285
    %940 = vmatprep.subr.mxu0 %v288
    %941 = vmatpush1.msra.mxu0 %v287
    %942 = vmatprep.subr.mxu0 %v290
    %943 = vmatpush1.msra.mxu0 %v289
    %944 = vmatprep.subr.mxu0 %v292
    %945 = vmatpush1.msra.mxu0 %v291
    %946 = vmatprep.subr.mxu0 0.0
    %947 = vmatpush1.msra.mxu0 0.0
    %948 = vmatprep.subr.mxu0 0.0
    %949 = vmatpush1.msra.mxu0 0.0
    %950 = vmatprep.subr.mxu0 0.0
    %951 = vmatpush1.msra.mxu0 0.0
    %952 = vmatprep.subr.mxu0 0.0
    %953 = vmatpush1.msra.mxu0 0.0
    %954 = vmatprep.subr.mxu0 0.0
    %955 = vmatpush1.msra.mxu0 0.0
    %956 = vmatprep.subr.mxu0 0.0
    %957 = vmatpush1.msra.mxu0 0.0
    %958 = vmatprep.subr.mxu0 0.0
    %959 = vmatpush1.msra.mxu0 0.0
    %960 = vmatprep.subr.mxu0 0.0
    %961 = vmatpush1.msra.mxu0 0.0
    %962 = vmatprep.subr.mxu0 0.0
    %963 = vmatpush1.msra.mxu0 0.0
    %964 = vmatprep.subr.mxu0 0.0
    %965 = vmatpush1.msra.mxu0 0.0
    %966 = vmatprep.subr.mxu0 0.0
    %967 = vmatpush1.msra.mxu0 0.0
    %968 = vmatprep.subr.mxu0 0.0
    %969 = vmatpush1.msra.mxu0 0.0
    %970 = vmatprep.subr.mxu0 0.0
    %971 = vmatpush1.msra.mxu0 0.0
    %972 = vmatprep.subr.mxu0 0.0
    %973 = vmatpush1.msra.mxu0 0.0
    %974 = vmatprep.subr.mxu0 0.0
    %975 = vmatpush1.msra.mxu0 0.0
    %976 = vmatprep.subr.mxu0 0.0
    %977 = vmatpush1.msra.mxu0 0.0
    %978 = vmatprep.subr.mxu0 0.0
    %979 = vmatpush1.msra.mxu0 0.0
    %980 = vmatprep.subr.mxu0 0.0
    %981 = vmatpush1.msra.mxu0 0.0
    %982 = vmatprep.subr.mxu0 0.0
    %983 = vmatpush1.msra.mxu0 0.0
    %984 = vmatprep.subr.mxu0 0.0
    %985 = vmatpush1.msra.mxu0 0.0
    %986 = vmatprep.subr.mxu0 0.0
    %987 = vmatpush1.msra.mxu0 0.0
    %988 = vmatprep.subr.mxu0 0.0
    %989 = vmatpush1.msra.mxu0 0.0
    %990 = vmatprep.subr.mxu0 0.0
    %991 = vmatpush1.msra.mxu0 0.0
    %992 = vmatprep.subr.mxu0 0.0
    %993 = vmatpush1.msra.mxu0 0.0
    %994 = vmatprep.subr.mxu0 0.0
    %995 = vmatpush1.msra.mxu0 0.0
    %996 = vmatprep.subr.mxu0 0.0
    %997 = vmatpush1.msra.mxu0 0.0
    %998 = vmatprep.subr.mxu0 0.0
    %999 = vmatpush1.msra.mxu0 0.0
    %1000 = vmatprep.subr.mxu0 0.0
    %1001 = vmatpush1.msra.mxu0 0.0
    %1002 = vmatprep.mubr.f32.mxu0 0.0
    %1003 = vmatmul.mubr.f32.gmra.mrb[0].mxu0 %v936
    %v1004 = vpop.f32.mrb[0].mxu0
    %v1005 = vadd.f32 0.0, %v1004
    %v1006 = vpop.f32.mrb[0].mxu0
    %v1007 = vadd.f32 0.0, %v1006
    %1008 = vdwg.mxu0
    %v1009 = vsel %vm392, %v1005, %v1007
    %v1010 = vadd.f32 %v284, %v1009
    %v1011 = vxor.u32 %v1010, 2147483648
    %v1012 = vmul.f32 %v1011, 1.442695
    %v1013 = vpow.pop %v1012
    %v1014 = vadd.f32 %v1013, 1.0
    %v1015 = vrcp.pop %v1014
    %v1016 = vmul.f32 1.0, %v1015
    %v1017 = vtanh.pop %v1010
    %v1018 = vmul.f32 %v1016, %v926
    %1020 = vrot.lane.b32.xlu0 %v1017, 64
    %v1021 = vpop.permute.xlu0 %1020
    %v1023 = vmul.f32 %v1016, %v1021
    %1025 = vrot.lane.b32.xlu0 %v1023, 32
    %v1026 = vpop.permute.xlu0 %1025
    %v1028 = vadd.f32 %v1018, %v1026
    %v1029 = vtanh.pop %v1028
    %1031 = vrot.lane.b32.xlu0 %v1029, 64
    %v1032 = vpop.permute.xlu0 %1031
    %v1034 = vmul.f32 %v1016, %v1032
    %v1037 = vrot.slane %v1034, 2
    %1038 = vrot.lane.b32.xlu0 %v1037, 64
    %v1039 = vpop.permute.xlu0 %1038
    %v1041 = vsel %vm317, %v316, %v1039
    %v1044 = vunpack.c.l.s4 1966171168
    %v1045 = vunpack.c.0.s8 %v1044
    %v1046 = vlaneseq
    %v1047 = vshrl.u32 %v1046, 7
    %v1048 = vsub.s32 %v1045, %v1047
    %v1049 = vrot.slane %v1041, %v1048
    %v1050 = vcombine.high %v1049, %v1049
    %v1052 = vunpack.c.l.s4 1966171168
    %v1053 = vunpack.c.0.s8 %v1052
    %v1054 = vlaneseq
    %v1055 = vshrl.u32 %v1054, 7
    %v1056 = vsub.s32 %v1053, %v1055
    %v1057 = vrot.slane %v1049, %v1056
    %v1059 = vunpack.c.l.s4 1966171168
    %v1060 = vunpack.c.0.s8 %v1059
    %v1061 = vlaneseq
    %v1062 = vshrl.u32 %v1061, 7
    %v1063 = vsub.s32 %v1060, %v1062
    %v1064 = vrot.slane %v1050, %v1063
    %vm1067 = vcmask 516096
    %1068 = vst.msk [vmem:[#allocation2] sm:$0x1] %vm1067, %v1057
    %1069 = vst.msk [vmem:[#allocation2 + $0x8] sm:$0x1] %vm1067, %v1064
    %v1071 = vrot.slane %v932, 2
    %1072 = vrot.lane.b32.xlu0 %v1071, 64
    %v1073 = vpop.permute.xlu0 %1072
    %v1075 = vsel %vm317, %v425, %v1073
    %v1078 = vunpack.c.l.s4 1966171168
    %v1079 = vunpack.c.0.s8 %v1078
    %v1080 = vlaneseq
    %v1081 = vshrl.u32 %v1080, 7
    %v1082 = vsub.s32 %v1079, %v1081
    %v1083 = vrot.slane %v1075, %v1082
    %v1084 = vcombine.high %v1083, %v1083
    %v1086 = vunpack.c.l.s4 1966171168
    %v1087 = vunpack.c.0.s8 %v1086
    %v1088 = vlaneseq
    %v1089 = vshrl.u32 %v1088, 7
    %v1090 = vsub.s32 %v1087, %v1089
    %v1091 = vrot.slane %v1083, %v1090
    %v1093 = vunpack.c.l.s4 1966171168
    %v1094 = vunpack.c.0.s8 %v1093
    %v1095 = vlaneseq
    %v1096 = vshrl.u32 %v1095, 7
    %v1097 = vsub.s32 %v1094, %v1096
    %v1098 = vrot.slane %v1084, %v1097
    %1101 = vst.msk [vmem:[#allocation2 + $0x1] sm:$0x1] %vm1067, %v1091
    %1102 = vst.msk [vmem:[#allocation2 + $0x9] sm:$0x1] %vm1067, %v1098
    %v1104 = vrot.slane %v830, 2
    %1105 = vrot.lane.b32.xlu0 %v1104, 64
    %v1106 = vpop.permute.xlu0 %1105
    %v1108 = vsel %vm317, %v527, %v1106
    %v1111 = vunpack.c.l.s4 1966171168
    %v1112 = vunpack.c.0.s8 %v1111
    %v1113 = vlaneseq
    %v1114 = vshrl.u32 %v1113, 7
    %v1115 = vsub.s32 %v1112, %v1114
    %v1116 = vrot.slane %v1108, %v1115
    %v1117 = vcombine.high %v1116, %v1116
    %v1119 = vunpack.c.l.s4 1966171168
    %v1120 = vunpack.c.0.s8 %v1119
    %v1121 = vlaneseq
    %v1122 = vshrl.u32 %v1121, 7
    %v1123 = vsub.s32 %v1120, %v1122
    %v1124 = vrot.slane %v1116, %v1123
    %v1126 = vunpack.c.l.s4 1966171168
    %v1127 = vunpack.c.0.s8 %v1126
    %v1128 = vlaneseq
    %v1129 = vshrl.u32 %v1128, 7
    %v1130 = vsub.s32 %v1127, %v1129
    %v1131 = vrot.slane %v1117, %v1130
    %1134 = vst.msk [vmem:[#allocation2 + $0x2] sm:$0x1] %vm1067, %v1124
    %1135 = vst.msk [vmem:[#allocation2 + $0xa] sm:$0x1] %vm1067, %v1131
    %v1137 = vrot.slane %v728, 2
    %1138 = vrot.lane.b32.xlu0 %v1137, 64
    %v1139 = vpop.permute.xlu0 %1138
    %v1141 = vsel %vm317, %v629, %v1139
    %v1144 = vunpack.c.l.s4 1966171168
    %v1145 = vunpack.c.0.s8 %v1144
    %v1146 = vlaneseq
    %v1147 = vshrl.u32 %v1146, 7
    %v1148 = vsub.s32 %v1145, %v1147
    %v1149 = vrot.slane %v1141, %v1148
    %v1150 = vcombine.high %v1149, %v1149
    %v1152 = vunpack.c.l.s4 1966171168
    %v1153 = vunpack.c.0.s8 %v1152
    %v1154 = vlaneseq
    %v1155 = vshrl.u32 %v1154, 7
    %v1156 = vsub.s32 %v1153, %v1155
    %v1157 = vrot.slane %v1149, %v1156
    %v1159 = vunpack.c.l.s4 1966171168
    %v1160 = vunpack.c.0.s8 %v1159
    %v1161 = vlaneseq
    %v1162 = vshrl.u32 %v1161, 7
    %v1163 = vsub.s32 %v1160, %v1162
    %v1164 = vrot.slane %v1150, %v1163
    %1167 = vst.msk [vmem:[#allocation2 + $0x3] sm:$0x1] %vm1067, %v1157
    %1168 = vst.msk [vmem:[#allocation2 + $0xb] sm:$0x1] %vm1067, %v1164
    %v1170 = vrot.slane %v626, 2
    %1171 = vrot.lane.b32.xlu0 %v1170, 64
    %v1172 = vpop.permute.xlu0 %1171
    %v1174 = vsel %vm317, %v731, %v1172
    %v1177 = vunpack.c.l.s4 1966171168
    %v1178 = vunpack.c.0.s8 %v1177
    %v1179 = vlaneseq
    %v1180 = vshrl.u32 %v1179, 7
    %v1181 = vsub.s32 %v1178, %v1180
    %v1182 = vrot.slane %v1174, %v1181
    %v1183 = vcombine.high %v1182, %v1182
    %v1185 = vunpack.c.l.s4 1966171168
    %v1186 = vunpack.c.0.s8 %v1185
    %v1187 = vlaneseq
    %v1188 = vshrl.u32 %v1187, 7
    %v1189 = vsub.s32 %v1186, %v1188
    %v1190 = vrot.slane %v1182, %v1189
    %v1192 = vunpack.c.l.s4 1966171168
    %v1193 = vunpack.c.0.s8 %v1192
    %v1194 = vlaneseq
    %v1195 = vshrl.u32 %v1194, 7
    %v1196 = vsub.s32 %v1193, %v1195
    %v1197 = vrot.slane %v1183, %v1196
    %1200 = vst.msk [vmem:[#allocation2 + $0x4] sm:$0x1] %vm1067, %v1190
    %1201 = vst.msk [vmem:[#allocation2 + $0xc] sm:$0x1] %vm1067, %v1197
    %v1203 = vrot.slane %v524, 2
    %1204 = vrot.lane.b32.xlu0 %v1203, 64
    %v1205 = vpop.permute.xlu0 %1204
    %v1207 = vsel %vm317, %v833, %v1205
    %v1210 = vunpack.c.l.s4 1966171168
    %v1211 = vunpack.c.0.s8 %v1210
    %v1212 = vlaneseq
    %v1213 = vshrl.u32 %v1212, 7
    %v1214 = vsub.s32 %v1211, %v1213
    %v1215 = vrot.slane %v1207, %v1214
    %v1216 = vcombine.high %v1215, %v1215
    %v1218 = vunpack.c.l.s4 1966171168
    %v1219 = vunpack.c.0.s8 %v1218
    %v1220 = vlaneseq
    %v1221 = vshrl.u32 %v1220, 7
    %v1222 = vsub.s32 %v1219, %v1221
    %v1223 = vrot.slane %v1215, %v1222
    %v1225 = vunpack.c.l.s4 1966171168
    %v1226 = vunpack.c.0.s8 %v1225
    %v1227 = vlaneseq
    %v1228 = vshrl.u32 %v1227, 7
    %v1229 = vsub.s32 %v1226, %v1228
    %v1230 = vrot.slane %v1216, %v1229
    %1233 = vst.msk [vmem:[#allocation2 + $0x5] sm:$0x1] %vm1067, %v1223
    %1234 = vst.msk [vmem:[#allocation2 + $0xd] sm:$0x1] %vm1067, %v1230
    %v1236 = vrot.slane %v422, 2
    %1237 = vrot.lane.b32.xlu0 %v1236, 64
    %v1238 = vpop.permute.xlu0 %1237
    %v1240 = vsel %vm317, %v935, %v1238
    %v1243 = vunpack.c.l.s4 1966171168
    %v1244 = vunpack.c.0.s8 %v1243
    %v1245 = vlaneseq
    %v1246 = vshrl.u32 %v1245, 7
    %v1247 = vsub.s32 %v1244, %v1246
    %v1248 = vrot.slane %v1240, %v1247
    %v1249 = vcombine.high %v1248, %v1248
    %v1251 = vunpack.c.l.s4 1966171168
    %v1252 = vunpack.c.0.s8 %v1251
    %v1253 = vlaneseq
    %v1254 = vshrl.u32 %v1253, 7
    %v1255 = vsub.s32 %v1252, %v1254
    %v1256 = vrot.slane %v1248, %v1255
    %v1258 = vunpack.c.l.s4 1966171168
    %v1259 = vunpack.c.0.s8 %v1258
    %v1260 = vlaneseq
    %v1261 = vshrl.u32 %v1260, 7
    %v1262 = vsub.s32 %v1259, %v1261
    %v1263 = vrot.slane %v1249, %v1262
    %1266 = vst.msk [vmem:[#allocation2 + $0x6] sm:$0x1] %vm1067, %v1256
    %1267 = vst.msk [vmem:[#allocation2 + $0xe] sm:$0x1] %vm1067, %v1263
    %1268 = vrot.lane.b32.xlu0 %v1034, 32
    %v1269 = vpop.permute.xlu0 %1268
    %v1271 = vrot.slane %v313, 2
    %1272 = vrot.lane.b32.xlu0 %v1271, 64
    %v1273 = vpop.permute.xlu0 %1272
    %v1275 = vsel %vm317, %v1269, %v1273
    %v1278 = vunpack.c.l.s4 1966171168
    %v1279 = vunpack.c.0.s8 %v1278
    %v1280 = vlaneseq
    %v1281 = vshrl.u32 %v1280, 7
    %v1282 = vsub.s32 %v1279, %v1281
    %v1283 = vrot.slane %v1275, %v1282
    %v1284 = vcombine.high %v1283, %v1283
    %v1286 = vunpack.c.l.s4 1966171168
    %v1287 = vunpack.c.0.s8 %v1286
    %v1288 = vlaneseq
    %v1289 = vshrl.u32 %v1288, 7
    %v1290 = vsub.s32 %v1287, %v1289
    %v1291 = vrot.slane %v1283, %v1290
    %v1293 = vunpack.c.l.s4 1966171168
    %v1294 = vunpack.c.0.s8 %v1293
    %v1295 = vlaneseq
    %v1296 = vshrl.u32 %v1295, 7
    %v1297 = vsub.s32 %v1294, %v1296
    %v1298 = vrot.slane %v1284, %v1297
    %1301 = vst.msk [vmem:[#allocation2 + $0x7] sm:$0x1] %vm1067, %v1291
    %1302 = vst.msk [vmem:[#allocation2 + $0xf] sm:$0x1] %vm1067, %v1298
    %v1303 = vld [vmem:[#allocation2] sm:$0xff]
    %v1304 = vld [vmem:[#allocation2 + $0x8] sm:$0xff]
    %v1305 = vld [vmem:[%s5] sm:$0xff]
    %v1306 = vld [vmem:[%s5 + $0x8] sm:$0xff]
    %v1307 = vld [vmem:[%s5 + $0x10] sm:$0xff]
    %v1308 = vld [vmem:[%s5 + $0x18] sm:$0xff]
    %v1309 = vld [vmem:[%s5 + $0x20] sm:$0xff]
    %v1310 = vld [vmem:[%s5 + $0x28] sm:$0xff]
    %v1311 = vld [vmem:[%s5 + $0x30] sm:$0xff]
    %v1312 = vld [vmem:[%s5 + $0x38] sm:$0xff]
    %v1314 = vsel %vm66, %v1303, 0
    %v1317 = vsel %vm66, %v1304, 0
    %1319 = vmatprep.subr.mxu0 0.0
    %1320 = vmatpush1.msra.mxu0 %v1305
    %1321 = vmatprep.subr.mxu0 0.0
    %1322 = vmatpush1.msra.mxu0 %v1306
    %1323 = vmatprep.subr.mxu0 0.0
    %1324 = vmatpush1.msra.mxu0 %v1307
    %1325 = vmatprep.subr.mxu0 0.0
    %1326 = vmatpush1.msra.mxu0 %v1308
    %1327 = vmatprep.subr.mxu0 0.0
    %1328 = vmatpush1.msra.mxu0 %v1309
    %1329 = vmatprep.subr.mxu0 0.0
    %1330 = vmatpush1.msra.mxu0 %v1310
    %1331 = vmatprep.subr.mxu0 0.0
    %1332 = vmatpush1.msra.mxu0 %v1311
    %1333 = vmatprep.subr.mxu0 0.0
    %1334 = vmatpush1.msra.mxu0 %v1312
    %1335 = vmatprep.subr.mxu0 0.0
    %1336 = vmatpush1.msra.mxu0 0.0
    %1337 = vmatprep.subr.mxu0 0.0
    %1338 = vmatpush1.msra.mxu0 0.0
    %1339 = vmatprep.subr.mxu0 0.0
    %1340 = vmatpush1.msra.mxu0 0.0
    %1341 = vmatprep.subr.mxu0 0.0
    %1342 = vmatpush1.msra.mxu0 0.0
    %1343 = vmatprep.subr.mxu0 0.0
    %1344 = vmatpush1.msra.mxu0 0.0
    %1345 = vmatprep.subr.mxu0 0.0
    %1346 = vmatpush1.msra.mxu0 0.0
    %1347 = vmatprep.subr.mxu0 0.0
    %1348 = vmatpush1.msra.mxu0 0.0
    %1349 = vmatprep.subr.mxu0 0.0
    %1350 = vmatpush1.msra.mxu0 0.0
    %1351 = vmatprep.subr.mxu0 0.0
    %1352 = vmatpush1.msra.mxu0 0.0
    %1353 = vmatprep.subr.mxu0 0.0
    %1354 = vmatpush1.msra.mxu0 0.0
    %1355 = vmatprep.subr.mxu0 0.0
    %1356 = vmatpush1.msra.mxu0 0.0
    %1357 = vmatprep.subr.mxu0 0.0
    %1358 = vmatpush1.msra.mxu0 0.0
    %1359 = vmatprep.subr.mxu0 0.0
    %1360 = vmatpush1.msra.mxu0 0.0
    %1361 = vmatprep.subr.mxu0 0.0
    %1362 = vmatpush1.msra.mxu0 0.0
    %1363 = vmatprep.subr.mxu0 0.0
    %1364 = vmatpush1.msra.mxu0 0.0
    %1365 = vmatprep.subr.mxu0 0.0
    %1366 = vmatpush1.msra.mxu0 0.0
    %1367 = vmatprep.subr.mxu0 0.0
    %1368 = vmatpush1.msra.mxu0 0.0
    %1369 = vmatprep.subr.mxu0 0.0
    %1370 = vmatpush1.msra.mxu0 0.0
    %1371 = vmatprep.subr.mxu0 0.0
    %1372 = vmatpush1.msra.mxu0 0.0
    %1373 = vmatprep.subr.mxu0 0.0
    %1374 = vmatpush1.msra.mxu0 0.0
    %1375 = vmatprep.subr.mxu0 0.0
    %1376 = vmatpush1.msra.mxu0 0.0
    %1377 = vmatprep.subr.mxu0 0.0
    %1378 = vmatpush1.msra.mxu0 0.0
    %1379 = vmatprep.subr.mxu0 0.0
    %1380 = vmatpush1.msra.mxu0 0.0
    %1381 = vmatprep.subr.mxu0 0.0
    %1382 = vmatpush1.msra.mxu0 0.0
    %1383 = vmatprep.mubr.f32.mxu0 0.0
    %1384 = vmatmul.mubr.f32.gmra.mrb[0].mxu0 %v1314
    %v1385 = vpop.f32.mrb[0].mxu0
    %v1386 = vadd.f32 0.0, %v1385
    %v1387 = vpop.f32.mrb[0].mxu0
    %1388 = vmatprep.mubr.f32.mxu0 0.0
    %1389 = vmatmul.mubr.f32.gmra.mrb[0].mxu0 %v1317
    %v1390 = vpop.f32.mrb[0].mxu0
    %v1391 = vadd.f32 0.0, %v1390
    %v1392 = vpop.f32.mrb[0].mxu0
    %1393 = vdwg.mxu0
    %v1394 = vtanh.pop %v1386
    %v1395 = vtanh.pop %v1391
    %v1396 = vld [vmem:[%s6] sm:$0xff]
    %v1397 = vld [vmem:[%s6 + $0x8] sm:$0xff]
    %v1398 = vld [vmem:[%s6 + $0x10] sm:$0xff]
    %vm1399 = vcmask 195584
    %v1401 = vsel %vm1399, %v1394, 0
    %v1404 = vsel %vm1399, %v1395, 0
    %1406 = vmatprep.subr.mxu0 0.0
    %1407 = vmatpush1.msra.mxu0 %v1396
    %1408 = vmatprep.subr.mxu0 0.0
    %1409 = vmatpush1.msra.mxu0 %v1397
    %1410 = vmatprep.subr.mxu0 0.0
    %1411 = vmatpush1.msra.mxu0 %v1398
    %1412 = vmatprep.subr.mxu0 0.0
    %1413 = vmatpush1.msra.mxu0 0.0
    %1414 = vmatprep.subr.mxu0 0.0
    %1415 = vmatpush1.msra.mxu0 0.0
    %1416 = vmatprep.subr.mxu0 0.0
    %1417 = vmatpush1.msra.mxu0 0.0
    %1418 = vmatprep.subr.mxu0 0.0
    %1419 = vmatpush1.msra.mxu0 0.0
    %1420 = vmatprep.subr.mxu0 0.0
    %1421 = vmatpush1.msra.mxu0 0.0
    %1422 = vmatprep.subr.mxu0 0.0
    %1423 = vmatpush1.msra.mxu0 0.0
    %1424 = vmatprep.subr.mxu0 0.0
    %1425 = vmatpush1.msra.mxu0 0.0
    %1426 = vmatprep.subr.mxu0 0.0
    %1427 = vmatpush1.msra.mxu0 0.0
    %1428 = vmatprep.subr.mxu0 0.0
    %1429 = vmatpush1.msra.mxu0 0.0
    %1430 = vmatprep.subr.mxu0 0.0
    %1431 = vmatpush1.msra.mxu0 0.0
    %1432 = vmatprep.subr.mxu0 0.0
    %1433 = vmatpush1.msra.mxu0 0.0
    %1434 = vmatprep.subr.mxu0 0.0
    %1435 = vmatpush1.msra.mxu0 0.0
    %1436 = vmatprep.subr.mxu0 0.0
    %1437 = vmatpush1.msra.mxu0 0.0
    %1438 = vmatprep.subr.mxu0 0.0
    %1439 = vmatpush1.msra.mxu0 0.0
    %1440 = vmatprep.subr.mxu0 0.0
    %1441 = vmatpush1.msra.mxu0 0.0
    %1442 = vmatprep.subr.mxu0 0.0
    %1443 = vmatpush1.msra.mxu0 0.0
    %1444 = vmatprep.subr.mxu0 0.0
    %1445 = vmatpush1.msra.mxu0 0.0
    %1446 = vmatprep.subr.mxu0 0.0
    %1447 = vmatpush1.msra.mxu0 0.0
    %1448 = vmatprep.subr.mxu0 0.0
    %1449 = vmatpush1.msra.mxu0 0.0
    %1450 = vmatprep.subr.mxu0 0.0
    %1451 = vmatpush1.msra.mxu0 0.0
    %1452 = vmatprep.subr.mxu0 0.0
    %1453 = vmatpush1.msra.mxu0 0.0
    %1454 = vmatprep.subr.mxu0 0.0
    %1455 = vmatpush1.msra.mxu0 0.0
    %1456 = vmatprep.subr.mxu0 0.0
    %1457 = vmatpush1.msra.mxu0 0.0
    %1458 = vmatprep.subr.mxu0 0.0
    %1459 = vmatpush1.msra.mxu0 0.0
    %1460 = vmatprep.subr.mxu0 0.0
    %1461 = vmatpush1.msra.mxu0 0.0
    %1462 = vmatprep.subr.mxu0 0.0
    %1463 = vmatpush1.msra.mxu0 0.0
    %1464 = vmatprep.subr.mxu0 0.0
    %1465 = vmatpush1.msra.mxu0 0.0
    %1466 = vmatprep.subr.mxu0 0.0
    %1467 = vmatpush1.msra.mxu0 0.0
    %1468 = vmatprep.subr.mxu0 0.0
    %1469 = vmatpush1.msra.mxu0 0.0
    %1470 = vmatprep.mubr.f32.mxu0 0.0
    %1471 = vmatmul.mubr.f32.gmra.mrb[0].mxu0 %v1401
    %v1472 = vpop.f32.mrb[0].mxu0
    %v1473 = vadd.f32 0.0, %v1472
    %v1474 = vpop.f32.mrb[0].mxu0
    %1475 = vmatprep.mubr.f32.mxu0 0.0
    %1476 = vmatmul.mubr.f32.gmra.mrb[0].mxu0 %v1404
    %v1477 = vpop.f32.mrb[0].mxu0
    %v1478 = vadd.f32 0.0, %v1477
    %v1479 = vpop.f32.mrb[0].mxu0
    %1480 = vdwg.mxu0
    %vm1481 = vcmask 80896
    %v1482 = vsel %vm1481, %v1473, -inf
    %v1483 = vrot.slane %v1482, 4
    %v1484 = vmax.f32 %v1482, %v1483
    %v1485 = vrot.slane %v1484, 2
    %v1486 = vmax.f32 %v1484, %v1485
    %v1487 = vrot.slane %v1486, 1
    %v1488 = vmax.f32 %v1486, %v1487
    %v1489 = vsel %vm1481, %v1478, -inf
    %v1490 = vrot.slane %v1489, 4
    %v1491 = vmax.f32 %v1489, %v1490
    %v1492 = vrot.slane %v1491, 2
    %v1493 = vmax.f32 %v1491, %v1492
    %v1494 = vrot.slane %v1493, 1
    %v1495 = vmax.f32 %v1493, %v1494
    %v1496 = vsub.f32 %v1473, %v1488
    %v1497 = vsub.f32 %v1478, %v1495
    %v1498 = vmul.f32 %v1496, 1.442695
    %v1499 = vpow.pop %v1498
    %v1500 = vmul.f32 %v1497, 1.442695
    %v1501 = vpow.pop %v1500
    %v1502 = vsel %vm1481, %v1499, 0.0
    %v1503 = vrot.slane %v1502, 4
    %v1504 = vadd.f32 %v1502, %v1503
    %v1505 = vrot.slane %v1504, 2
    %v1506 = vadd.f32 %v1504, %v1505
    %v1507 = vrot.slane %v1506, 1
    %v1508 = vadd.f32 %v1506, %v1507
    %v1509 = vsel %vm1481, %v1501, 0.0
    %v1510 = vrot.slane %v1509, 4
    %v1511 = vadd.f32 %v1509, %v1510
    %v1512 = vrot.slane %v1511, 2
    %v1513 = vadd.f32 %v1511, %v1512
    %v1514 = vrot.slane %v1513, 1
    %v1515 = vadd.f32 %v1513, %v1514
    %v1516 = vrcp.pop %v1508
    %v1517 = vmul.f32 %v1499, %v1516
    %v1518 = vrcp.pop %v1515
    %v1519 = vmul.f32 %v1501, %v1518
    %1520 = vxpose.xlu0.b32.start [1/16] %v1517, 128
    %1521 = vxpose.xlu0.b32.cont [2/16] 0.0, 128
    %1522 = vxpose.xlu0.b32.cont [3/16] 0.0, 128
    %1523 = vxpose.xlu0.b32.cont [4/16] 0.0, 128
    %1524 = vxpose.xlu0.b32.cont [5/16] 0.0, 128
    %1525 = vxpose.xlu0.b32.cont [6/16] 0.0, 128
    %1526 = vxpose.xlu0.b32.cont [7/16] 0.0, 128
    %1527 = vxpose.xlu0.b32.cont [8/16] 0.0, 128
    %1528 = vxpose.xlu0.b32.cont [9/16] 0.0, 128
    %1529 = vxpose.xlu0.b32.cont [10/16] 0.0, 128
    %1530 = vxpose.xlu0.b32.cont [11/16] 0.0, 128
    %1531 = vxpose.xlu0.b32.cont [12/16] 0.0, 128
    %1532 = vxpose.xlu0.b32.cont [13/16] 0.0, 128
    %1533 = vxpose.xlu0.b32.cont [14/16] 0.0, 128
    %1534 = vxpose.xlu0.b32.cont [15/16] 0.0, 128
    %1535 = vxpose.xlu0.b32.end [16/16] 0.0, 128
    %v1536 = vpop.trf.xlu0
    %v1537 = vpop.trf.xlu0
    %v1538 = vpop.trf.xlu0
    %v1539 = vpop.trf.xlu0
    %v1540 = vpop.trf.xlu0
    %v1541 = vpop.trf.xlu0
    %v1542 = vpop.trf.xlu0
    %v1543 = vpop.trf.xlu0
    %v1544 = vpop.trf.xlu0
    %v1545 = vpop.trf.xlu0
    %v1546 = vpop.trf.xlu0
    %v1547 = vpop.trf.xlu0
    %v1548 = vpop.trf.xlu0
    %v1549 = vpop.trf.xlu0
    %v1550 = vpop.trf.xlu0
    %v1551 = vpop.trf.xlu0
    %vm1552 = vcmask 64512
    %v1554 = vsel %vm1552, %v1536, 0
    %v1557 = vsel %vm1552, %v1537, 0
    %1559 = vmatprep.subr.mxu0 0.0
    %1560 = vmatpush1.msra.mxu0 %v1303
    %1561 = vmatprep.subr.mxu0 0.0
    %1562 = vmatpush1.msra.mxu0 0.0
    %1563 = vmatprep.subr.mxu0 0.0
    %1564 = vmatpush1.msra.mxu0 0.0
    %1565 = vmatprep.subr.mxu0 0.0
    %1566 = vmatpush1.msra.mxu0 0.0
    %1567 = vmatprep.subr.mxu0 0.0
    %1568 = vmatpush1.msra.mxu0 0.0
    %1569 = vmatprep.subr.mxu0 0.0
    %1570 = vmatpush1.msra.mxu0 0.0
    %1571 = vmatprep.subr.mxu0 0.0
    %1572 = vmatpush1.msra.mxu0 0.0
    %1573 = vmatprep.subr.mxu0 0.0
    %1574 = vmatpush1.msra.mxu0 0.0
    %1575 = vmatprep.subr.mxu0 0.0
    %1576 = vmatpush1.msra.mxu0 0.0
    %1577 = vmatprep.subr.mxu0 0.0
    %1578 = vmatpush1.msra.mxu0 0.0
    %1579 = vmatprep.subr.mxu0 0.0
    %1580 = vmatpush1.msra.mxu0 0.0
    %1581 = vmatprep.subr.mxu0 0.0
    %1582 = vmatpush1.msra.mxu0 0.0
    %1583 = vmatprep.subr.mxu0 0.0
    %1584 = vmatpush1.msra.mxu0 0.0
    %1585 = vmatprep.subr.mxu0 0.0
    %1586 = vmatpush1.msra.mxu0 0.0
    %1587 = vmatprep.subr.mxu0 0.0
    %1588 = vmatpush1.msra.mxu0 0.0
    %1589 = vmatprep.subr.mxu0 0.0
    %1590 = vmatpush1.msra.mxu0 0.0
    %1591 = vmatprep.subr.mxu0 0.0
    %1592 = vmatpush1.msra.mxu0 0.0
    %1593 = vmatprep.subr.mxu0 0.0
    %1594 = vmatpush1.msra.mxu0 0.0
    %1595 = vmatprep.subr.mxu0 0.0
    %1596 = vmatpush1.msra.mxu0 0.0
    %1597 = vmatprep.subr.mxu0 0.0
    %1598 = vmatpush1.msra.mxu0 0.0
    %1599 = vmatprep.subr.mxu0 0.0
    %1600 = vmatpush1.msra.mxu0 0.0
    %1601 = vmatprep.subr.mxu0 0.0
    %1602 = vmatpush1.msra.mxu0 0.0
    %1603 = vmatprep.subr.mxu0 0.0
    %1604 = vmatpush1.msra.mxu0 0.0
    %1605 = vmatprep.subr.mxu0 0.0
    %1606 = vmatpush1.msra.mxu0 0.0
    %1607 = vmatprep.subr.mxu0 0.0
    %1608 = vmatpush1.msra.mxu0 0.0
    %1609 = vmatprep.subr.mxu0 0.0
    %1610 = vmatpush1.msra.mxu0 0.0
    %1611 = vmatprep.subr.mxu0 0.0
    %1612 = vmatpush1.msra.mxu0 0.0
    %1613 = vmatprep.subr.mxu0 0.0
    %1614 = vmatpush1.msra.mxu0 0.0
    %1615 = vmatprep.subr.mxu0 0.0
    %1616 = vmatpush1.msra.mxu0 0.0
    %1617 = vmatprep.subr.mxu0 0.0
    %1618 = vmatpush1.msra.mxu0 0.0
    %1619 = vmatprep.subr.mxu0 0.0
    %1620 = vmatpush1.msra.mxu0 0.0
    %1621 = vmatprep.subr.mxu0 0.0
    %1622 = vmatpush1.msra.mxu0 0.0
    %1623 = vmatprep.mubr.f32.mxu0 0.0
    %1624 = vmatmul.mubr.f32.gmra.mrb[0].mxu0 %v1554
    %v1625 = vpop.f32.mrb[0].mxu0
    %v1626 = vadd.f32 0.0, %v1625
    %v1627 = vpop.f32.mrb[0].mxu0
    %1628 = vmatprep.mubr.f32.mxu0 0.0
    %1629 = vmatmul.mubr.f32.gmra.mrb[0].mxu0 %v1557
    %v1630 = vpop.f32.mrb[0].mxu0
    %v1631 = vadd.f32 0.0, %v1630
    %v1632 = vpop.f32.mrb[0].mxu0
    %1633 = vdwg.mxu0
    %1634 = vxpose.xlu0.b32.start [1/16] %v1519, 128
    %1635 = vxpose.xlu0.b32.cont [2/16] 0.0, 128
    %1636 = vxpose.xlu0.b32.cont [3/16] 0.0, 128
    %1637 = vxpose.xlu0.b32.cont [4/16] 0.0, 128
    %1638 = vxpose.xlu0.b32.cont [5/16] 0.0, 128
    %1639 = vxpose.xlu0.b32.cont [6/16] 0.0, 128
    %1640 = vxpose.xlu0.b32.cont [7/16] 0.0, 128
    %1641 = vxpose.xlu0.b32.cont [8/16] 0.0, 128
    %1642 = vxpose.xlu0.b32.cont [9/16] 0.0, 128
    %1643 = vxpose.xlu0.b32.cont [10/16] 0.0, 128
    %1644 = vxpose.xlu0.b32.cont [11/16] 0.0, 128
    %1645 = vxpose.xlu0.b32.cont [12/16] 0.0, 128
    %1646 = vxpose.xlu0.b32.cont [13/16] 0.0, 128
    %1647 = vxpose.xlu0.b32.cont [14/16] 0.0, 128
    %1648 = vxpose.xlu0.b32.cont [15/16] 0.0, 128
    %1649 = vxpose.xlu0.b32.end [16/16] 0.0, 128
    %v1650 = vpop.trf.xlu0
    %v1651 = vpop.trf.xlu0
    %v1652 = vpop.trf.xlu0
    %v1653 = vpop.trf.xlu0
    %v1654 = vpop.trf.xlu0
    %v1655 = vpop.trf.xlu0
    %v1656 = vpop.trf.xlu0
    %v1657 = vpop.trf.xlu0
    %v1658 = vpop.trf.xlu0
    %v1659 = vpop.trf.xlu0
    %v1660 = vpop.trf.xlu0
    %v1661 = vpop.trf.xlu0
    %v1662 = vpop.trf.xlu0
    %v1663 = vpop.trf.xlu0
    %v1664 = vpop.trf.xlu0
    %v1665 = vpop.trf.xlu0
    %v1667 = vsel %vm1552, %v1650, 0
    %v1670 = vsel %vm1552, %v1651, 0
    %1672 = vmatprep.subr.mxu0 0.0
    %1673 = vmatpush1.msra.mxu0 %v1304
    %1674 = vmatprep.subr.mxu0 0.0
    %1675 = vmatpush1.msra.mxu0 0.0
    %1676 = vmatprep.subr.mxu0 0.0
    %1677 = vmatpush1.msra.mxu0 0.0
    %1678 = vmatprep.subr.mxu0 0.0
    %1679 = vmatpush1.msra.mxu0 0.0
    %1680 = vmatprep.subr.mxu0 0.0
    %1681 = vmatpush1.msra.mxu0 0.0
    %1682 = vmatprep.subr.mxu0 0.0
    %1683 = vmatpush1.msra.mxu0 0.0
    %1684 = vmatprep.subr.mxu0 0.0
    %1685 = vmatpush1.msra.mxu0 0.0
    %1686 = vmatprep.subr.mxu0 0.0
    %1687 = vmatpush1.msra.mxu0 0.0
    %1688 = vmatprep.subr.mxu0 0.0
    %1689 = vmatpush1.msra.mxu0 0.0
    %1690 = vmatprep.subr.mxu0 0.0
    %1691 = vmatpush1.msra.mxu0 0.0
    %1692 = vmatprep.subr.mxu0 0.0
    %1693 = vmatpush1.msra.mxu0 0.0
    %1694 = vmatprep.subr.mxu0 0.0
    %1695 = vmatpush1.msra.mxu0 0.0
    %1696 = vmatprep.subr.mxu0 0.0
    %1697 = vmatpush1.msra.mxu0 0.0
    %1698 = vmatprep.subr.mxu0 0.0
    %1699 = vmatpush1.msra.mxu0 0.0
    %1700 = vmatprep.subr.mxu0 0.0
    %1701 = vmatpush1.msra.mxu0 0.0
    %1702 = vmatprep.subr.mxu0 0.0
    %1703 = vmatpush1.msra.mxu0 0.0
    %1704 = vmatprep.subr.mxu0 0.0
    %1705 = vmatpush1.msra.mxu0 0.0
    %1706 = vmatprep.subr.mxu0 0.0
    %1707 = vmatpush1.msra.mxu0 0.0
    %1708 = vmatprep.subr.mxu0 0.0
    %1709 = vmatpush1.msra.mxu0 0.0
    %1710 = vmatprep.subr.mxu0 0.0
    %1711 = vmatpush1.msra.mxu0 0.0
    %1712 = vmatprep.subr.mxu0 0.0
    %1713 = vmatpush1.msra.mxu0 0.0
    %1714 = vmatprep.subr.mxu0 0.0
    %1715 = vmatpush1.msra.mxu0 0.0
    %1716 = vmatprep.subr.mxu0 0.0
    %1717 = vmatpush1.msra.mxu0 0.0
    %1718 = vmatprep.subr.mxu0 0.0
    %1719 = vmatpush1.msra.mxu0 0.0
    %1720 = vmatprep.subr.mxu0 0.0
    %1721 = vmatpush1.msra.mxu0 0.0
    %1722 = vmatprep.subr.mxu0 0.0
    %1723 = vmatpush1.msra.mxu0 0.0
    %1724 = vmatprep.subr.mxu0 0.0
    %1725 = vmatpush1.msra.mxu0 0.0
    %1726 = vmatprep.subr.mxu0 0.0
    %1727 = vmatpush1.msra.mxu0 0.0
    %1728 = vmatprep.subr.mxu0 0.0
    %1729 = vmatpush1.msra.mxu0 0.0
    %1730 = vmatprep.subr.mxu0 0.0
    %1731 = vmatpush1.msra.mxu0 0.0
    %1732 = vmatprep.subr.mxu0 0.0
    %1733 = vmatpush1.msra.mxu0 0.0
    %1734 = vmatprep.subr.mxu0 0.0
    %1735 = vmatpush1.msra.mxu0 0.0
    %1736 = vmatprep.mubr.f32.mxu0 0.0
    %1737 = vmatmul.mubr.f32.gmra.mrb[0].mxu0 %v1667
    %v1738 = vpop.f32.mrb[0].mxu0
    %v1739 = vadd.f32 0.0, %v1738
    %v1740 = vpop.f32.mrb[0].mxu0
    %1741 = vmatprep.mubr.f32.mxu0 0.0
    %1742 = vmatmul.mubr.f32.gmra.mrb[0].mxu0 %v1670
    %v1743 = vpop.f32.mrb[0].mxu0
    %v1744 = vadd.f32 0.0, %v1743
    %v1745 = vpop.f32.mrb[0].mxu0
    %1746 = vdwg.mxu0
    %1747 = vmatprep.subr.mxu0 0.0
    %1748 = vmatpush1.msra.mxu0 %v1517
    %1749 = vmatprep.subr.mxu0 0.0
    %1750 = vmatpush1.msra.mxu0 0.0
    %1751 = vmatprep.subr.mxu0 0.0
    %1752 = vmatpush1.msra.mxu0 0.0
    %1753 = vmatprep.subr.mxu0 0.0
    %1754 = vmatpush1.msra.mxu0 0.0
    %1755 = vmatprep.subr.mxu0 0.0
    %1756 = vmatpush1.msra.mxu0 0.0
    %1757 = vmatprep.subr.mxu0 0.0
    %1758 = vmatpush1.msra.mxu0 0.0
    %1759 = vmatprep.subr.mxu0 0.0
    %1760 = vmatpush1.msra.mxu0 0.0
    %1761 = vmatprep.subr.mxu0 0.0
    %1762 = vmatpush1.msra.mxu0 0.0
    %1763 = vmatprep.subr.mxu0 0.0
    %1764 = vmatpush1.msra.mxu0 0.0
    %1765 = vmatprep.subr.mxu0 0.0
    %1766 = vmatpush1.msra.mxu0 0.0
    %1767 = vmatprep.subr.mxu0 0.0
    %1768 = vmatpush1.msra.mxu0 0.0
    %1769 = vmatprep.subr.mxu0 0.0
    %1770 = vmatpush1.msra.mxu0 0.0
    %1771 = vmatprep.subr.mxu0 0.0
    %1772 = vmatpush1.msra.mxu0 0.0
    %1773 = vmatprep.subr.mxu0 0.0
    %1774 = vmatpush1.msra.mxu0 0.0
    %1775 = vmatprep.subr.mxu0 0.0
    %1776 = vmatpush1.msra.mxu0 0.0
    %1777 = vmatprep.subr.mxu0 0.0
    %1778 = vmatpush1.msra.mxu0 0.0
    %1779 = vmatprep.subr.mxu0 0.0
    %1780 = vmatpush1.msra.mxu0 0.0
    %1781 = vmatprep.subr.mxu0 0.0
    %1782 = vmatpush1.msra.mxu0 0.0
    %1783 = vmatprep.subr.mxu0 0.0
    %1784 = vmatpush1.msra.mxu0 0.0
    %1785 = vmatprep.subr.mxu0 0.0
    %1786 = vmatpush1.msra.mxu0 0.0
    %1787 = vmatprep.subr.mxu0 0.0
    %1788 = vmatpush1.msra.mxu0 0.0
    %1789 = vmatprep.subr.mxu0 0.0
    %1790 = vmatpush1.msra.mxu0 0.0
    %1791 = vmatprep.subr.mxu0 0.0
    %1792 = vmatpush1.msra.mxu0 0.0
    %1793 = vmatprep.subr.mxu0 0.0
    %1794 = vmatpush1.msra.mxu0 0.0
    %1795 = vmatprep.subr.mxu0 0.0
    %1796 = vmatpush1.msra.mxu0 0.0
    %1797 = vmatprep.subr.mxu0 0.0
    %1798 = vmatpush1.msra.mxu0 0.0
    %1799 = vmatprep.subr.mxu0 0.0
    %1800 = vmatpush1.msra.mxu0 0.0
    %1801 = vmatprep.subr.mxu0 0.0
    %1802 = vmatpush1.msra.mxu0 0.0
    %1803 = vmatprep.subr.mxu0 0.0
    %1804 = vmatpush1.msra.mxu0 0.0
    %1805 = vmatprep.subr.mxu0 0.0
    %1806 = vmatpush1.msra.mxu0 0.0
    %1807 = vmatprep.subr.mxu0 0.0
    %1808 = vmatpush1.msra.mxu0 0.0
    %1809 = vmatprep.subr.mxu0 0.0
    %1810 = vmatpush1.msra.mxu0 0.0
    %1811 = vmatprep.mubr.f32.mxu0 0.0
    %1812 = vmatmul.mubr.f32.gmra.mrb[0].mxu0 %v1554
    %v1813 = vpop.f32.mrb[0].mxu0
    %v1814 = vadd.f32 0.0, %v1813
    %v1815 = vpop.f32.mrb[0].mxu0
    %1816 = vmatprep.mubr.f32.mxu0 0.0
    %1817 = vmatmul.mubr.f32.gmra.mrb[0].mxu0 %v1557
    %v1818 = vpop.f32.mrb[0].mxu0
    %v1819 = vadd.f32 0.0, %v1818
    %v1820 = vpop.f32.mrb[0].mxu0
    %1821 = vdwg.mxu0
    %1822 = vmatprep.subr.mxu0 0.0
    %1823 = vmatpush1.msra.mxu0 %v1519
    %1824 = vmatprep.subr.mxu0 0.0
    %1825 = vmatpush1.msra.mxu0 0.0
    %1826 = vmatprep.subr.mxu0 0.0
    %1827 = vmatpush1.msra.mxu0 0.0
    %1828 = vmatprep.subr.mxu0 0.0
    %1829 = vmatpush1.msra.mxu0 0.0
    %1830 = vmatprep.subr.mxu0 0.0
    %1831 = vmatpush1.msra.mxu0 0.0
    %1832 = vmatprep.subr.mxu0 0.0
    %1833 = vmatpush1.msra.mxu0 0.0
    %1834 = vmatprep.subr.mxu0 0.0
    %1835 = vmatpush1.msra.mxu0 0.0
    %1836 = vmatprep.subr.mxu0 0.0
    %1837 = vmatpush1.msra.mxu0 0.0
    %1838 = vmatprep.subr.mxu0 0.0
    %1839 = vmatpush1.msra.mxu0 0.0
    %1840 = vmatprep.subr.mxu0 0.0
    %1841 = vmatpush1.msra.mxu0 0.0
    %1842 = vmatprep.subr.mxu0 0.0
    %1843 = vmatpush1.msra.mxu0 0.0
    %1844 = vmatprep.subr.mxu0 0.0
    %1845 = vmatpush1.msra.mxu0 0.0
    %1846 = vmatprep.subr.mxu0 0.0
    %1847 = vmatpush1.msra.mxu0 0.0
    %1848 = vmatprep.subr.mxu0 0.0
    %1849 = vmatpush1.msra.mxu0 0.0
    %1850 = vmatprep.subr.mxu0 0.0
    %1851 = vmatpush1.msra.mxu0 0.0
    %1852 = vmatprep.subr.mxu0 0.0
    %1853 = vmatpush1.msra.mxu0 0.0
    %1854 = vmatprep.subr.mxu0 0.0
    %1855 = vmatpush1.msra.mxu0 0.0
    %1856 = vmatprep.subr.mxu0 0.0
    %1857 = vmatpush1.msra.mxu0 0.0
    %1858 = vmatprep.subr.mxu0 0.0
    %1859 = vmatpush1.msra.mxu0 0.0
    %1860 = vmatprep.subr.mxu0 0.0
    %1861 = vmatpush1.msra.mxu0 0.0
    %1862 = vmatprep.subr.mxu0 0.0
    %1863 = vmatpush1.msra.mxu0 0.0
    %1864 = vmatprep.subr.mxu0 0.0
    %1865 = vmatpush1.msra.mxu0 0.0
    %1866 = vmatprep.subr.mxu0 0.0
    %1867 = vmatpush1.msra.mxu0 0.0
    %1868 = vmatprep.subr.mxu0 0.0
    %1869 = vmatpush1.msra.mxu0 0.0
    %1870 = vmatprep.subr.mxu0 0.0
    %1871 = vmatpush1.msra.mxu0 0.0
    %1872 = vmatprep.subr.mxu0 0.0
    %1873 = vmatpush1.msra.mxu0 0.0
    %1874 = vmatprep.subr.mxu0 0.0
    %1875 = vmatpush1.msra.mxu0 0.0
    %1876 = vmatprep.subr.mxu0 0.0
    %1877 = vmatpush1.msra.mxu0 0.0
    %1878 = vmatprep.subr.mxu0 0.0
    %1879 = vmatpush1.msra.mxu0 0.0
    %1880 = vmatprep.subr.mxu0 0.0
    %1881 = vmatpush1.msra.mxu0 0.0
    %1882 = vmatprep.subr.mxu0 0.0
    %1883 = vmatpush1.msra.mxu0 0.0
    %1884 = vmatprep.subr.mxu0 0.0
    %1885 = vmatpush1.msra.mxu0 0.0
    %1886 = vmatprep.mubr.f32.mxu0 0.0
    %1887 = vmatmul.mubr.f32.gmra.mrb[0].mxu0 %v1667
    %v1888 = vpop.f32.mrb[0].mxu0
    %v1889 = vadd.f32 0.0, %v1888
    %v1890 = vpop.f32.mrb[0].mxu0
    %1891 = vmatprep.mubr.f32.mxu0 0.0
    %1892 = vmatmul.mubr.f32.gmra.mrb[0].mxu0 %v1670
    %v1893 = vpop.f32.mrb[0].mxu0
    %v1894 = vadd.f32 0.0, %v1893
    %v1895 = vpop.f32.mrb[0].mxu0
    %1896 = vdwg.mxu0
    %v1897 = vadd.s32 %v294, 8
    %vm1898 = vcmp.eq.s32.totalorder %v294, %v45
    %vm1899 = vcmp.eq.s32.totalorder %v1897, %v45
    %v1900 = vsel %vm1898, 1, 0
    %v1901 = vsel %vm1899, 1, 0
    %v1902 = vcvt.s32.f32 %v1900
    %v1903 = vcvt.s32.f32 %v1901
    %v1904 = vsub.f32 %v1814, %v1902
    %v1905 = vsub.f32 %v1819, %v1903
    %v1906 = vsub.f32 %v1889, %v1902
    %v1907 = vsub.f32 %v1894, %v1903
    %v1908 = vmul.f32 %v1904, %v1904
    %v1909 = vmul.f32 %v1905, %v1905
    %v1910 = vmul.f32 %v1906, %v1906
    %v1911 = vmul.f32 %v1907, %v1907
    %v1912 = vsel %vm1481, %v1908, 0.0
    %vm1913 = vcmask 74752
    %v1914 = vsel %vm1913, %v1909, 0.0
    %v1915 = vadd.f32 %v1912, %v1914
    %v1916 = vsel %vm1481, %v1910, 0.0
    %v1917 = vadd.f32 %v1915, %v1916
    %v1918 = vsel %vm1913, %v1911, 0.0
    %v1919 = vadd.f32 %v1917, %v1918
    %1920 = vadd.xlane.f32.xlu0 %v1919
    %v1921 = vpop.xlane.xlu0 %1920
    %v1922 = vrot.slane %v1921, 4
    %v1923 = vadd.f32 %v1921, %v1922
    %v1924 = vrot.slane %v1923, 2
    %v1925 = vadd.f32 %v1923, %v1924
    %v1926 = vrot.slane %v1925, 1
    %v1927 = vadd.f32 %v1925, %v1926
    %s1928 = vtos %v1927
    %v1929 = vstv %s1928
    %vm1930 = vcmask 0
    %1931 = vst.msk [vmem:[#allocation5] sm:$0x1] %vm1930, %v1929
    %v1934 = vrot.slane %v1739, 7
    %vm1935 = vcmask 1041409
    %v1936 = vsel %vm1935, %v1934, %v1626
    %v1938 = vrot.slane %v1626, 1
    %v1939 = vsel %vm1935, %v1739, %v1938
    %1940 = vrot.lane.b32.xlu0 %v1939, 64
    %v1941 = vpop.permute.xlu0 %1940
    %v1943 = vrot.slane %v1626, 2
    %v1944 = vrot.slane %v1739, 1
    %v1945 = vsel %vm1935, %v1944, %v1943
    %v1947 = vrot.slane %v1626, 3
    %v1948 = vrot.slane %v1739, 2
    %v1949 = vsel %vm1935, %v1948, %v1947
    %1950 = vrot.lane.b32.xlu0 %v1949, 64
    %v1951 = vpop.permute.xlu0 %1950
    %v1953 = vrot.slane %v1626, 4
    %v1954 = vrot.slane %v1739, 3
    %v1955 = vsel %vm1935, %v1954, %v1953
    %v1957 = vrot.slane %v1626, 5
    %v1958 = vrot.slane %v1739, 4
    %v1959 = vsel %vm1935, %v1958, %v1957
    %1960 = vrot.lane.b32.xlu0 %v1959, 64
    %v1961 = vpop.permute.xlu0 %1960
    %v1963 = vrot.slane %v1626, 6
    %v1964 = vrot.slane %v1739, 5
    %v1965 = vsel %vm1935, %v1964, %v1963
    %v1967 = vrot.slane %v1626, 7
    %v1968 = vrot.slane %v1739, 6
    %v1969 = vsel %vm1935, %v1968, %v1967
    %1970 = vrot.lane.b32.xlu0 %v1969, 64
    %v1971 = vpop.permute.xlu0 %1970
    %v1975 = vrot.slane %v1744, 7
    %v1976 = vsel %vm1935, %v1975, %v1631
    %v1978 = vrot.slane %v1631, 1
    %v1979 = vsel %vm1935, %v1744, %v1978
    %1980 = vrot.lane.b32.xlu0 %v1979, 64
    %v1981 = vpop.permute.xlu0 %1980
    %v1983 = vsel %vm66, %v1936, %v1941
    %v1984 = vsel %vm66, %v1945, %v1951
    %v1985 = vsel %vm66, %v1955, %v1961
    %v1986 = vsel %vm66, %v1965, %v1971
    %v1987 = vsel %vm66, %v1976, %v1981
    %v1988 = vld [vmem:[%s7] sm:$0xff]
    %v1989 = vld [vmem:[%s7 + $0x8] sm:$0xff]
    %v1990 = vld [vmem:[%s7 + $0x10] sm:$0xff]
    %v1991 = vld [vmem:[%s7 + $0x18] sm:$0xff]
    %v1992 = vld [vmem:[%s7 + $0x20] sm:$0xff]
    %v1993 = vld [vmem:[%s7 + $0x28] sm:$0xff]
    %v1994 = vld [vmem:[%s7 + $0x30] sm:$0xff]
    %v1995 = vld [vmem:[%s7 + $0x38] sm:$0xff]
    %v1996 = vld [vmem:[%s7 + $0x40] sm:$0xff]
    %v1997 = vld [vmem:[%s7 + $0x48] sm:$0xff]
    %v1998 = vld [vmem:[%s7 + $0x50] sm:$0xff]
    %v1999 = vld [vmem:[%s7 + $0x58] sm:$0xff]
    %v2000 = vld [vmem:[%s7 + $0x60] sm:$0xff]
    %v2001 = vld [vmem:[%s7 + $0x68] sm:$0xff]
    %v2002 = vld [vmem:[%s7 + $0x70] sm:$0xff]
    %v2003 = vld [vmem:[%s7 + $0x78] sm:$0xff]
    %v2004 = vld [vmem:[%s7 + $0x80] sm:$0xff]
    %v2005 = vld [vmem:[%s7 + $0x88] sm:$0xff]
    %v2006 = vld [vmem:[%s7 + $0x90] sm:$0xff]
    %v2007 = vld [vmem:[%s7 + $0x98] sm:$0xff]
    %v2008 = vld [vmem:[%s7 + $0xa0] sm:$0xff]
    %v2009 = vld [vmem:[%s7 + $0xa8] sm:$0xff]
    %v2010 = vld [vmem:[%s7 + $0xb0] sm:$0xff]
    %v2011 = vld [vmem:[%s7 + $0xb8] sm:$0xff]
    %v2012 = vld [vmem:[%s7 + $0xc0] sm:$0xff]
    %v2013 = vld [vmem:[%s7 + $0xc8] sm:$0xff]
    %v2014 = vld [vmem:[%s7 + $0xd0] sm:$0xff]
    %v2015 = vld [vmem:[%s7 + $0xd8] sm:$0xff]
    %v2016 = vld [vmem:[%s7 + $0xe0] sm:$0xff]
    %v2017 = vld [vmem:[%s7 + $0xe8] sm:$0xff]
    %v2018 = vld [vmem:[%s7 + $0xf0] sm:$0xff]
    %v2019 = vld [vmem:[%s7 + $0xf8] sm:$0xff]
    %v2020 = vld [vmem:[%s7 + $0x100] sm:$0xff]
    %v2021 = vld [vmem:[%s7 + $0x108] sm:$0xff]
    %v2022 = vld [vmem:[%s7 + $0x110] sm:$0xff]
    %v2023 = vld [vmem:[%s7 + $0x118] sm:$0xff]
    %v2024 = vld [vmem:[%s7 + $0x120] sm:$0xff]
    %v2025 = vld [vmem:[%s7 + $0x128] sm:$0xff]
    %v2026 = vld [vmem:[%s7 + $0x130] sm:$0xff]
    %v2027 = vld [vmem:[%s7 + $0x138] sm:$0xff]
    %v2028 = vld [vmem:[%s7 + $0x140] sm:$0xff]
    %v2029 = vld [vmem:[%s7 + $0x148] sm:$0xff]
    %v2030 = vld [vmem:[%s7 + $0x150] sm:$0xff]
    %v2031 = vld [vmem:[%s7 + $0x158] sm:$0xff]
    %v2032 = vld [vmem:[%s7 + $0x160] sm:$0xff]
    %v2033 = vld [vmem:[%s7 + $0x168] sm:$0xff]
    %v2034 = vld [vmem:[%s7 + $0x170] sm:$0xff]
    %v2035 = vld [vmem:[%s7 + $0x178] sm:$0xff]
    %v2036 = vld [vmem:[%s7 + $0x180] sm:$0xff]
    %v2037 = vld [vmem:[%s7 + $0x188] sm:$0xff]
    %v2038 = vld [vmem:[%s7 + $0x190] sm:$0xff]
    %v2039 = vld [vmem:[%s7 + $0x198] sm:$0xff]
    %v2040 = vld [vmem:[%s7 + $0x1a0] sm:$0xff]
    %v2041 = vld [vmem:[%s7 + $0x1a8] sm:$0xff]
    %v2042 = vld [vmem:[%s7 + $0x1b0] sm:$0xff]
    %v2043 = vld [vmem:[%s7 + $0x1b8] sm:$0xff]
    %v2044 = vld [vmem:[%s7 + $0x1c0] sm:$0xff]
    %v2045 = vld [vmem:[%s7 + $0x1c8] sm:$0xff]
    %v2046 = vld [vmem:[%s7 + $0x1d0] sm:$0xff]
    %v2047 = vld [vmem:[%s7 + $0x1d8] sm:$0xff]
    %v2048 = vld [vmem:[%s7 + $0x1e0] sm:$0xff]
    %v2049 = vld [vmem:[%s7 + $0x1e8] sm:$0xff]
    %v2050 = vld [vmem:[%s7 + $0x1f0] sm:$0xff]
    %v2051 = vld [vmem:[%s7 + $0x1f8] sm:$0xff]
    %v2052 = vld [vmem:[%s7 + $0x200] sm:$0xff]
    %v2053 = vld [vmem:[%s7 + $0x208] sm:$0xff]
    %v2054 = vld [vmem:[%s7 + $0x210] sm:$0xff]
    %v2055 = vld [vmem:[%s7 + $0x218] sm:$0xff]
    %v2056 = vld [vmem:[%s7 + $0x220] sm:$0xff]
    %v2057 = vld [vmem:[%s7 + $0x228] sm:$0xff]
    %v2058 = vld [vmem:[%s7 + $0x230] sm:$0xff]
    %v2059 = vld [vmem:[%s7 + $0x238] sm:$0xff]
    %v2060 = vld [vmem:[%s7 + $0x240] sm:$0xff]
    %v2061 = vld [vmem:[%s7 + $0x248] sm:$0xff]
    %v2062 = vld [vmem:[%s7 + $0x250] sm:$0xff]
    %v2063 = vld [vmem:[%s7 + $0x258] sm:$0xff]
    %v2064 = vld [vmem:[%s7 + $0x260] sm:$0xff]
    %v2065 = vld [vmem:[%s7 + $0x268] sm:$0xff]
    %v2066 = vld [vmem:[%s7 + $0x270] sm:$0xff]
    %v2067 = vld [vmem:[%s7 + $0x278] sm:$0xff]
    %v2068 = vld [vmem:[%s8] sm:$0x1]
    %v2070 = vlaneseq
    %v2071 = vshrl.u32 %v2070, 7
    %v2072 = vsub.s32 0, %v2071
    %v2073 = vrot.slane %v2068, %v2072
    %2075 = vmatprep.subr.mxu0 0.0
    %2076 = vmatpush1.msra.mxu0 %v1988
    %2077 = vmatprep.subr.mxu0 0.0
    %2078 = vmatpush1.msra.mxu0 %v1989
    %2079 = vmatprep.subr.mxu0 0.0
    %2080 = vmatpush1.msra.mxu0 %v1990
    %2081 = vmatprep.subr.mxu0 0.0
    %2082 = vmatpush1.msra.mxu0 %v1991
    %2083 = vmatprep.subr.mxu0 0.0
    %2084 = vmatpush1.msra.mxu0 %v1992
    %2085 = vmatprep.subr.mxu0 0.0
    %2086 = vmatpush1.msra.mxu0 %v1993
    %2087 = vmatprep.subr.mxu0 0.0
    %2088 = vmatpush1.msra.mxu0 %v1994
    %2089 = vmatprep.subr.mxu0 0.0
    %2090 = vmatpush1.msra.mxu0 %v1995
    %2091 = vmatprep.subr.mxu0 0.0
    %2092 = vmatpush1.msra.mxu0 %v1996
    %2093 = vmatprep.subr.mxu0 0.0
    %2094 = vmatpush1.msra.mxu0 %v1997
    %2095 = vmatprep.subr.mxu0 0.0
    %2096 = vmatpush1.msra.mxu0 %v1998
    %2097 = vmatprep.subr.mxu0 0.0
    %2098 = vmatpush1.msra.mxu0 %v1999
    %2099 = vmatprep.subr.mxu0 0.0
    %2100 = vmatpush1.msra.mxu0 %v2000
    %2101 = vmatprep.subr.mxu0 0.0
    %2102 = vmatpush1.msra.mxu0 %v2001
    %2103 = vmatprep.subr.mxu0 0.0
    %2104 = vmatpush1.msra.mxu0 %v2002
    %2105 = vmatprep.subr.mxu0 0.0
    %2106 = vmatpush1.msra.mxu0 %v2003
    %2107 = vmatprep.subr.mxu0 0.0
    %2108 = vmatpush1.msra.mxu0 %v2004
    %2109 = vmatprep.subr.mxu0 0.0
    %2110 = vmatpush1.msra.mxu0 %v2005
    %2111 = vmatprep.subr.mxu0 0.0
    %2112 = vmatpush1.msra.mxu0 %v2006
    %2113 = vmatprep.subr.mxu0 0.0
    %2114 = vmatpush1.msra.mxu0 %v2007
    %2115 = vmatprep.subr.mxu0 0.0
    %2116 = vmatpush1.msra.mxu0 %v2008
    %2117 = vmatprep.subr.mxu0 0.0
    %2118 = vmatpush1.msra.mxu0 %v2009
    %2119 = vmatprep.subr.mxu0 0.0
    %2120 = vmatpush1.msra.mxu0 %v2010
    %2121 = vmatprep.subr.mxu0 0.0
    %2122 = vmatpush1.msra.mxu0 %v2011
    %2123 = vmatprep.subr.mxu0 0.0
    %2124 = vmatpush1.msra.mxu0 %v2012
    %2125 = vmatprep.subr.mxu0 0.0
    %2126 = vmatpush1.msra.mxu0 %v2013
    %2127 = vmatprep.subr.mxu0 0.0
    %2128 = vmatpush1.msra.mxu0 %v2014
    %2129 = vmatprep.subr.mxu0 0.0
    %2130 = vmatpush1.msra.mxu0 %v2015
    %2131 = vmatprep.subr.mxu0 0.0
    %2132 = vmatpush1.msra.mxu0 %v2016
    %2133 = vmatprep.subr.mxu0 0.0
    %2134 = vmatpush1.msra.mxu0 %v2017
    %2135 = vmatprep.subr.mxu0 0.0
    %2136 = vmatpush1.msra.mxu0 %v2018
    %2137 = vmatprep.subr.mxu0 0.0
    %2138 = vmatpush1.msra.mxu0 %v2019
    %2139 = vmatprep.mubr.f32.mxu0 %v1984
    %2140 = vmatmul.mubr.f32.gmra.mrb[0].mxu0 %v1983
    %v2141 = vpop.f32.mrb[0].mxu0
    %v2142 = vadd.f32 %v2073, %v2141
    %v2143 = vpop.f32.mrb[0].mxu0
    %2144 = vdwg.mxu0
    %2145 = vmatprep.subr.mxu0 0.0
    %2146 = vmatpush1.msra.mxu0 %v2020
    %2147 = vmatprep.subr.mxu0 0.0
    %2148 = vmatpush1.msra.mxu0 %v2021
    %2149 = vmatprep.subr.mxu0 0.0
    %2150 = vmatpush1.msra.mxu0 %v2022
    %2151 = vmatprep.subr.mxu0 0.0
    %2152 = vmatpush1.msra.mxu0 %v2023
    %2153 = vmatprep.subr.mxu0 0.0
    %2154 = vmatpush1.msra.mxu0 %v2024
    %2155 = vmatprep.subr.mxu0 0.0
    %2156 = vmatpush1.msra.mxu0 %v2025
    %2157 = vmatprep.subr.mxu0 0.0
    %2158 = vmatpush1.msra.mxu0 %v2026
    %2159 = vmatprep.subr.mxu0 0.0
    %2160 = vmatpush1.msra.mxu0 %v2027
    %2161 = vmatprep.subr.mxu0 0.0
    %2162 = vmatpush1.msra.mxu0 %v2028
    %2163 = vmatprep.subr.mxu0 0.0
    %2164 = vmatpush1.msra.mxu0 %v2029
    %2165 = vmatprep.subr.mxu0 0.0
    %2166 = vmatpush1.msra.mxu0 %v2030
    %2167 = vmatprep.subr.mxu0 0.0
    %2168 = vmatpush1.msra.mxu0 %v2031
    %2169 = vmatprep.subr.mxu0 0.0
    %2170 = vmatpush1.msra.mxu0 %v2032
    %2171 = vmatprep.subr.mxu0 0.0
    %2172 = vmatpush1.msra.mxu0 %v2033
    %2173 = vmatprep.subr.mxu0 0.0
    %2174 = vmatpush1.msra.mxu0 %v2034
    %2175 = vmatprep.subr.mxu0 0.0
    %2176 = vmatpush1.msra.mxu0 %v2035
    %2177 = vmatprep.subr.mxu0 0.0
    %2178 = vmatpush1.msra.mxu0 %v2036
    %2179 = vmatprep.subr.mxu0 0.0
    %2180 = vmatpush1.msra.mxu0 %v2037
    %2181 = vmatprep.subr.mxu0 0.0
    %2182 = vmatpush1.msra.mxu0 %v2038
    %2183 = vmatprep.subr.mxu0 0.0
    %2184 = vmatpush1.msra.mxu0 %v2039
    %2185 = vmatprep.subr.mxu0 0.0
    %2186 = vmatpush1.msra.mxu0 %v2040
    %2187 = vmatprep.subr.mxu0 0.0
    %2188 = vmatpush1.msra.mxu0 %v2041
    %2189 = vmatprep.subr.mxu0 0.0
    %2190 = vmatpush1.msra.mxu0 %v2042
    %2191 = vmatprep.subr.mxu0 0.0
    %2192 = vmatpush1.msra.mxu0 %v2043
    %2193 = vmatprep.subr.mxu0 0.0
    %2194 = vmatpush1.msra.mxu0 %v2044
    %2195 = vmatprep.subr.mxu0 0.0
    %2196 = vmatpush1.msra.mxu0 %v2045
    %2197 = vmatprep.subr.mxu0 0.0
    %2198 = vmatpush1.msra.mxu0 %v2046
    %2199 = vmatprep.subr.mxu0 0.0
    %2200 = vmatpush1.msra.mxu0 %v2047
    %2201 = vmatprep.subr.mxu0 0.0
    %2202 = vmatpush1.msra.mxu0 %v2048
    %2203 = vmatprep.subr.mxu0 0.0
    %2204 = vmatpush1.msra.mxu0 %v2049
    %2205 = vmatprep.subr.mxu0 0.0
    %2206 = vmatpush1.msra.mxu0 %v2050
    %2207 = vmatprep.subr.mxu0 0.0
    %2208 = vmatpush1.msra.mxu0 %v2051
    %2209 = vmatprep.mubr.f32.mxu0 %v1986
    %2210 = vmatmul.mubr.f32.gmra.mrb[0].mxu0 %v1985
    %v2211 = vpop.f32.mrb[0].mxu0
    %v2212 = vadd.f32 %v2142, %v2211
    %v2213 = vpop.f32.mrb[0].mxu0
    %2214 = vdwg.mxu0
    %2215 = vmatprep.subr.mxu0 0.0
    %2216 = vmatpush1.msra.mxu0 %v2052
    %2217 = vmatprep.subr.mxu0 0.0
    %2218 = vmatpush1.msra.mxu0 %v2053
    %2219 = vmatprep.subr.mxu0 0.0
    %2220 = vmatpush1.msra.mxu0 %v2054
    %2221 = vmatprep.subr.mxu0 0.0
    %2222 = vmatpush1.msra.mxu0 %v2055
    %2223 = vmatprep.subr.mxu0 0.0
    %2224 = vmatpush1.msra.mxu0 %v2056
    %2225 = vmatprep.subr.mxu0 0.0
    %2226 = vmatpush1.msra.mxu0 %v2057
    %2227 = vmatprep.subr.mxu0 0.0
    %2228 = vmatpush1.msra.mxu0 %v2058
    %2229 = vmatprep.subr.mxu0 0.0
    %2230 = vmatpush1.msra.mxu0 %v2059
    %2231 = vmatprep.subr.mxu0 0.0
    %2232 = vmatpush1.msra.mxu0 %v2060
    %2233 = vmatprep.subr.mxu0 0.0
    %2234 = vmatpush1.msra.mxu0 %v2061
    %2235 = vmatprep.subr.mxu0 0.0
    %2236 = vmatpush1.msra.mxu0 %v2062
    %2237 = vmatprep.subr.mxu0 0.0
    %2238 = vmatpush1.msra.mxu0 %v2063
    %2239 = vmatprep.subr.mxu0 0.0
    %2240 = vmatpush1.msra.mxu0 %v2064
    %2241 = vmatprep.subr.mxu0 0.0
    %2242 = vmatpush1.msra.mxu0 %v2065
    %2243 = vmatprep.subr.mxu0 0.0
    %2244 = vmatpush1.msra.mxu0 %v2066
    %2245 = vmatprep.subr.mxu0 0.0
    %2246 = vmatpush1.msra.mxu0 %v2067
    %2247 = vmatprep.subr.mxu0 0.0
    %2248 = vmatpush1.msra.mxu0 0.0
    %2249 = vmatprep.subr.mxu0 0.0
    %2250 = vmatpush1.msra.mxu0 0.0
    %2251 = vmatprep.subr.mxu0 0.0
    %2252 = vmatpush1.msra.mxu0 0.0
    %2253 = vmatprep.subr.mxu0 0.0
    %2254 = vmatpush1.msra.mxu0 0.0
    %2255 = vmatprep.subr.mxu0 0.0
    %2256 = vmatpush1.msra.mxu0 0.0
    %2257 = vmatprep.subr.mxu0 0.0
    %2258 = vmatpush1.msra.mxu0 0.0
    %2259 = vmatprep.subr.mxu0 0.0
    %2260 = vmatpush1.msra.mxu0 0.0
    %2261 = vmatprep.subr.mxu0 0.0
    %2262 = vmatpush1.msra.mxu0 0.0
    %2263 = vmatprep.subr.mxu0 0.0
    %2264 = vmatpush1.msra.mxu0 0.0
    %2265 = vmatprep.subr.mxu0 0.0
    %2266 = vmatpush1.msra.mxu0 0.0
    %2267 = vmatprep.subr.mxu0 0.0
    %2268 = vmatpush1.msra.mxu0 0.0
    %2269 = vmatprep.subr.mxu0 0.0
    %2270 = vmatpush1.msra.mxu0 0.0
    %2271 = vmatprep.subr.mxu0 0.0
    %2272 = vmatpush1.msra.mxu0 0.0
    %2273 = vmatprep.subr.mxu0 0.0
    %2274 = vmatpush1.msra.mxu0 0.0
    %2275 = vmatprep.subr.mxu0 0.0
    %2276 = vmatpush1.msra.mxu0 0.0
    %2277 = vmatprep.subr.mxu0 0.0
    %2278 = vmatpush1.msra.mxu0 0.0
    %2279 = vmatprep.mubr.f32.mxu0 0.0
    %2280 = vmatmul.mubr.f32.gmra.mrb[0].mxu0 %v1987
    %v2281 = vpop.f32.mrb[0].mxu0
    %v2282 = vadd.f32 %v2212, %v2281
    %v2283 = vpop.f32.mrb[0].mxu0
    %2284 = vdwg.mxu0
    %v2285 = vmax.f32 %v2282, 0.0
    %v2286 = vld [vmem:[%s9] sm:$0xff]
    %v2287 = vld [vmem:[%s9 + $0x8] sm:$0xff]
    %v2288 = vld [vmem:[%s9 + $0x10] sm:$0xff]
    %v2289 = vld [vmem:[%s9 + $0x18] sm:$0xff]
    %v2290 = vld [vmem:[%s9 + $0x20] sm:$0xff]
    %v2291 = vld [vmem:[%s9 + $0x28] sm:$0xff]
    %v2292 = vld [vmem:[%s9 + $0x30] sm:$0xff]
    %v2293 = vld [vmem:[%s9 + $0x38] sm:$0xff]
    %v2294 = vld [vmem:[%s10] sm:$0x1]
    %v2296 = vlaneseq
    %v2297 = vshrl.u32 %v2296, 7
    %v2298 = vsub.s32 0, %v2297
    %v2299 = vrot.slane %v2294, %v2298
    %v2302 = vsel %vm66, %v2285, 0
    %2304 = vmatprep.subr.mxu0 0.0
    %2305 = vmatpush1.msra.mxu0 %v2286
    %2306 = vmatprep.subr.mxu0 0.0
    %2307 = vmatpush1.msra.mxu0 %v2287
    %2308 = vmatprep.subr.mxu0 0.0
    %2309 = vmatpush1.msra.mxu0 %v2288
    %2310 = vmatprep.subr.mxu0 0.0
    %2311 = vmatpush1.msra.mxu0 %v2289
    %2312 = vmatprep.subr.mxu0 0.0
    %2313 = vmatpush1.msra.mxu0 %v2290
    %2314 = vmatprep.subr.mxu0 0.0
    %2315 = vmatpush1.msra.mxu0 %v2291
    %2316 = vmatprep.subr.mxu0 0.0
    %2317 = vmatpush1.msra.mxu0 %v2292
    %2318 = vmatprep.subr.mxu0 0.0
    %2319 = vmatpush1.msra.mxu0 %v2293
    %2320 = vmatprep.subr.mxu0 0.0
    %2321 = vmatpush1.msra.mxu0 0.0
    %2322 = vmatprep.subr.mxu0 0.0
    %2323 = vmatpush1.msra.mxu0 0.0
    %2324 = vmatprep.subr.mxu0 0.0
    %2325 = vmatpush1.msra.mxu0 0.0
    %2326 = vmatprep.subr.mxu0 0.0
    %2327 = vmatpush1.msra.mxu0 0.0
    %2328 = vmatprep.subr.mxu0 0.0
    %2329 = vmatpush1.msra.mxu0 0.0
    %2330 = vmatprep.subr.mxu0 0.0
    %2331 = vmatpush1.msra.mxu0 0.0
    %2332 = vmatprep.subr.mxu0 0.0
    %2333 = vmatpush1.msra.mxu0 0.0
    %2334 = vmatprep.subr.mxu0 0.0
    %2335 = vmatpush1.msra.mxu0 0.0
    %2336 = vmatprep.subr.mxu0 0.0
    %2337 = vmatpush1.msra.mxu0 0.0
    %2338 = vmatprep.subr.mxu0 0.0
    %2339 = vmatpush1.msra.mxu0 0.0
    %2340 = vmatprep.subr.mxu0 0.0
    %2341 = vmatpush1.msra.mxu0 0.0
    %2342 = vmatprep.subr.mxu0 0.0
    %2343 = vmatpush1.msra.mxu0 0.0
    %2344 = vmatprep.subr.mxu0 0.0
    %2345 = vmatpush1.msra.mxu0 0.0
    %2346 = vmatprep.subr.mxu0 0.0
    %2347 = vmatpush1.msra.mxu0 0.0
    %2348 = vmatprep.subr.mxu0 0.0
    %2349 = vmatpush1.msra.mxu0 0.0
    %2350 = vmatprep.subr.mxu0 0.0
    %2351 = vmatpush1.msra.mxu0 0.0
    %2352 = vmatprep.subr.mxu0 0.0
    %2353 = vmatpush1.msra.mxu0 0.0
    %2354 = vmatprep.subr.mxu0 0.0
    %2355 = vmatpush1.msra.mxu0 0.0
    %2356 = vmatprep.subr.mxu0 0.0
    %2357 = vmatpush1.msra.mxu0 0.0
    %2358 = vmatprep.subr.mxu0 0.0
    %2359 = vmatpush1.msra.mxu0 0.0
    %2360 = vmatprep.subr.mxu0 0.0
    %2361 = vmatpush1.msra.mxu0 0.0
    %2362 = vmatprep.subr.mxu0 0.0
    %2363 = vmatpush1.msra.mxu0 0.0
    %2364 = vmatprep.subr.mxu0 0.0
    %2365 = vmatpush1.msra.mxu0 0.0
    %2366 = vmatprep.subr.mxu0 0.0
    %2367 = vmatpush1.msra.mxu0 0.0
    %2368 = vmatprep.mubr.f32.mxu0 0.0
    %2369 = vmatmul.mubr.f32.gmra.mrb[0].mxu0 %v2302
    %v2370 = vpop.f32.mrb[0].mxu0
    %v2371 = vadd.f32 %v2299, %v2370
    %v2372 = vpop.f32.mrb[0].mxu0
    %2373 = vdwg.mxu0
    %vm2374 = vcmask 33792
    %2375 = vst.msk [vmem:[#allocation3] sm:$0x3] %vm2374, %v2371
    // Predicated region
    $region46: #{net_forward.1} parent=1 // pred_check
      _
    $region47: #{net_forward.1} parent=1 // pred_check_branch
      %2377 = sbr.rel (0) target = $region49
    $region48: #{net_forward.1} parent=1 // pred_region
      %s2379 = ssub.s32 32, 32
      %2380 = vsyncadd [#allocation4], %s2379
      %s2382 = sshll.u32 [#allocation3], 4
      %s2383 = int_to_ptr.vmem [resolvable:$true] %s2382
      %2385 = dma.vmem_to_hbm [thread:$0]  %s2383, 32, %s11, [#allocation4]
    $region49: #{net_forward.1} parent=1 // pred_fallthru
      _
    // Predicated region
    $region50: #{net_forward.1} parent=1 // pred_check
      _
    $region51: #{net_forward.1} parent=1 // pred_check_branch
      %2387 = sbr.rel (0) target = $region53
    $region52: #{net_forward.1} parent=1 // pred_region
      %s2389 = ssub.s32 16, 16
      %2390 = vsyncadd [#allocation6], %s2389
      %s2392 = sshll.u32 [#allocation5], 4
      %s2393 = int_to_ptr.vmem [resolvable:$true] %s2392
      %2395 = dma.vmem_to_hbm [thread:$0]  %s2393, 16, %s12, [#allocation6]
    $region53: #{net_forward.1} parent=1 // pred_fallthru
      _
    // Predicated region
    $region54: #{net_forward.1} parent=1 // pred_check
      _
    $region55: #{net_forward.1} parent=1 // pred_check_branch
      %2397 = sbr.rel (0) target = $region57
    $region56: #{net_forward.1} parent=1 // pred_region
      %2398 = dma.done [#allocation4], 32
    $region57: #{net_forward.1} parent=1 // pred_fallthru
      _
    // Predicated region
    $region58: #{net_forward.1} parent=1 // pred_check
      _
    $region59: #{net_forward.1} parent=1 // pred_check_branch
      %2400 = sbr.rel (0) target = $region61
    $region60: #{net_forward.1} parent=1 // pred_region
      %2401 = dma.done [#allocation6], 16
    $region61: #{net_forward.1} parent=1 // pred_fallthru
      _
    %2402 = vsyncpa [#allocation4], 1
    %2403 = vsyncpa [#allocation6], 1

</llo_original>
